<compile_context>
chip_gen: v5e
topology: v5e:2x2
jax: 0.10.0
libtpu: 0.0.40
codegen_flags: <defaults>
</compile_context>

<pallas_src>
import functools

import jax
import jax.numpy as jnp
from jax.experimental import pallas as pl
from jax.experimental.pallas import tpu as pltpu

_A = 10.0            # slope constant from the PyTorch module
_HALF_A = 5.0        # A / 2, used by the tanh formulation
_LANES = 128
_MIN_PALLAS_BYTES = 256 * 1024   # below this, the pure-JAX fallback wins (fusion, no dispatch)


def _hard_threshold_kernel(scal_ref, x_ref, o_ref):
    """Elementwise asymmetric soft-gated hard threshold.

    scal_ref : SMEM (2,) float32  -> [5*thr_p, 5*thr_n] (pre-folded in the wrapper)
    x_ref    : VMEM (block_rows, 128) tile of the flattened input (native dtype)
    o_ref    : VMEM (block_rows, 128) tile of the output (native dtype)

    NOTE: the last grid block may be partial (rows % block_rows != 0).  Pallas masks
    the out-of-bounds stores; the op is purely elementwise so the garbage read in the
    pad region never contaminates valid outputs.  Keep it that way (no reductions).
    """
    sp = scal_ref[0]                          # 5 * thr_p
    sn = scal_ref[1]                          # 5 * thr_n
    xf = x_ref[...].astype(jnp.float32)
    hx = _HALF_A * xf
    # sigmoid(10(x-p)) + sigmoid(-10(x+n)) == 1 + 0.5*(tanh(5(x-p)) - tanh(5(x+n)))
    gate = 1.0 + 0.5 * (jnp.tanh(hx - sp) - jnp.tanh(hx + sn))
    o_ref[...] = (xf * gate).astype(o_ref.dtype)


def _reference(x, thr_p, thr_n):
    """Pure-JAX formula matching the PyTorch formulation (sigmoid form).

    Also used as the small / ragged-tensor fallback so XLA can fuse the gate with
    whatever produced x (deep DeSpaWN levels are tiny)."""
    p = jnp.reshape(thr_p, ()).astype(jnp.float32)
    n = jnp.reshape(thr_n, ()).astype(jnp.float32)
    xf = x.astype(jnp.float32)
    gate = jax.nn.sigmoid(_A * (xf - p)) + jax.nn.sigmoid(-_A * (xf + n))
    return (xf * gate).astype(x.dtype)


@functools.lru_cache(maxsize=1)
def _generation_config():
    """Return (block_bytes, vmem_limit_bytes_or_None, two_tensorcores) for this TPU.

    Double-buffered in+out = 4x block, so block is sized per generation:
      v6e/v5p/v4 (128 MiB VMEM): 8 MiB block, 40 MiB scoped limit
      v7x        ( 64 MiB VMEM): 6 MiB block, 28 MiB scoped limit, 2 TCs/chip
      v5e        (128 MiB VMEM, slow HBM): 4 MiB block, 24 MiB scoped limit
      unknown: conservative known-good 2 MiB block, default scoped VMEM.
    """
    kind = ""
    try:
        kind = jax.devices()[0].device_kind.lower()
    except Exception:
        pass
    if "v7" in kind:
        block_bytes, vmem_limit, two_tc = 6 << 20, 28 << 20, True
    elif "v6" in kind:
        block_bytes, vmem_limit, two_tc = 8 << 20, 40 << 20, False
    elif "v5p" in kind or "v4" in kind:
        block_bytes, vmem_limit, two_tc = 8 << 20, 40 << 20, False
    elif "v5" in kind:  # "TPU v5 lite" / v5e
        block_bytes, vmem_limit, two_tc = 4 << 20, 24 << 20, False
    else:
        block_bytes, vmem_limit, two_tc = 2 << 20, None, False
    # Cross-check against physical VMEM when the query is available: 4x block plus
    # ~8 MiB of headroom for Mosaic internal scratch must fit.
    try:
        vmem_cap = int(pltpu.get_tpu_info().vmem_capacity_bytes)
        block_bytes = min(block_bytes, max(1 << 20, (vmem_cap - (8 << 20)) // 4))
        if vmem_limit is not None:
            vmem_limit = min(vmem_limit, max(8 << 20, vmem_cap - (4 << 20)))
    except Exception:
        pass
    return block_bytes, vmem_limit, two_tc


def hard_threshold_assym(x, thr_p, thr_n, *,
                         min_pallas_bytes=_MIN_PALLAS_BYTES,
                         block_bytes=None,
                         donate_input=False):
    """x: any-shaped tensor (DeSpaWN uses (N, L, 1, C)). thr_p/thr_n: scalar-like params.

    donate_input=True adds input_output_aliases={1: 0} (safe inside EnhancedDeSpaWN,
    which never reuses the pre-threshold coefficients); keep False for standalone use.
    """
    orig_shape = x.shape
    dtype = x.dtype
    itemsize = jnp.dtype(dtype).itemsize
    total = int(x.size)
    nbytes = total * itemsize

    # Fallback path: empty, tiny, or not lane-reshapeable -> pure JAX (XLA fuses it,
    # no pallas_call dispatch, no pad/slice HBM round trips).
    if total == 0 or total % _LANES != 0 or nbytes < min_pallas_bytes:
        return _reference(x, thr_p, thr_n)

    gen_block, vmem_limit, two_tc = _generation_config()
    if block_bytes is None:
        block_bytes = gen_block

    sublane = max(8, 32 // itemsize)          # (8,128) f32 / (16,128) bf16 min tiles
    rows = total // _LANES
    slab = jnp.ravel(x).reshape(rows, _LANES)  # row-major bitcast-style reshape, no copy

    def _round_up(v, m):
        return ((v + m - 1) // m) * m

    budget_rows = max(sublane, (block_bytes // (_LANES * itemsize)) // sublane * sublane)
    block_rows = min(budget_rows, _round_up(rows, sublane))
    if two_tc and rows > 2 * sublane:
        # Ensure at least two grid steps so both v7x TensorCores get work.
        block_rows = min(block_rows, _round_up(pl.cdiv(rows, 2), sublane))
    num_blocks = pl.cdiv(rows, block_rows)

    # Fold the thresholds into the tanh arguments once, host-side (scalar math).
    scal = jnp.stack([
        _HALF_A * jnp.reshape(thr_p, ()).astype(jnp.float32),
        _HALF_A * jnp.reshape(thr_n, ()).astype(jnp.float32),
    ])

    core_parallel = getattr(pltpu, "CORE_PARALLEL", None)
    if two_tc and num_blocks >= 2 and core_parallel is not None:
        dim_sem = (core_parallel,)            # shard the 1-D grid across the 2 v7x TCs
    else:
        dim_sem = ("parallel",)

    cp_kwargs = dict(dimension_semantics=dim_sem)
    if vmem_limit is not None:
        cp_kwargs["vmem_limit_bytes"] = int(vmem_limit)

    call_kwargs = {}
    if donate_input:
        call_kwargs["input_output_aliases"] = {1: 0}

    cost = pl.CostEstimate(
        flops=8 * total,
        transcendentals=2 * total,
        bytes_accessed=2 * nbytes,
    )

    out = pl.pallas_call(
        _hard_threshold_kernel,
        out_shape=jax.ShapeDtypeStruct((rows, _LANES), dtype),
        grid=(num_blocks,),
        in_specs=[
            pl.BlockSpec(memory_space=pltpu.MemorySpace.SMEM),        # [5*thr_p, 5*thr_n]
            pl.BlockSpec((block_rows, _LANES), lambda i: (i, 0)),     # x tile
        ],
        out_specs=pl.BlockSpec((block_rows, _LANES), lambda i: (i, 0)),
        compiler_params=pltpu.CompilerParams(**cp_kwargs),
        cost_estimate=cost,
        **call_kwargs,
    )(scal, slab)

    return out.reshape(orig_shape)


if __name__ == "__main__":
    key = jax.random.PRNGKey(0)
    k1, k2, k3, k4 = jax.random.split(key, 4)

    # nn.Parameter(torch.ones(1,1,1,1) * init) equivalents.
    init = 1.0
    thr_p = jnp.ones((1, 1, 1, 1), jnp.float32) * init
    thr_n = jnp.ones((1, 1, 1, 1), jnp.float32) * init

    # (N, L, 1, C) layout used inside EnhancedDeSpaWN (signal length in dim 1).
    x_big = jax.random.normal(k1, (2, 8192, 1, 40), jnp.float32) * 2.0     # Pallas path, big block
    x_small = jax.random.normal(k2, (2, 64, 1, 4), jnp.float32) * 2.0      # tiny -> pure-JAX fallback
    x_bf16 = (jax.random.normal(k3, (2, 128, 1, 8), jnp.float32) * 2.0).astype(jnp.bfloat16)
    x_ragged = jax.random.normal(k4, (2, 20, 1, 64), jnp.float32) * 2.0    # partial last block

    cases = (
        (x_big, dict(), 1e-4, 1e-4),
        (x_small, dict(), 1e-5, 1e-5),
        # force the Pallas path (min_pallas_bytes=0) to exercise bf16 and the
        # masked partial-block tail (tiny block_bytes -> 3 grid steps, last partial).
        (x_bf16, dict(min_pallas_bytes=0), 2e-2, 2e-2),
        (x_ragged, dict(min_pallas_bytes=0, block_bytes=8 * 128 * 4), 1e-4, 1e-4),
    )
    for x, kwargs, atol, rtol in cases:
        out = jax.block_until_ready(hard_threshold_assym(x, thr_p, thr_n, **kwargs))
        ref = _reference(x, thr_p, thr_n)
        assert out.shape == x.shape and out.dtype == x.dtype
        assert jnp.allclose(out.astype(jnp.float32), ref.astype(jnp.float32),
                            atol=atol, rtol=rtol), "mismatch vs reference"

    print("KERNEL_OK")
</pallas_src>

<mosaic_0001>
module attributes {stable_mosaic.version = 11 : i64} {
  func.func @_hard_threshold_kernel(%arg0: i32, %arg1: memref<2xf32, #tpu.memory_space<smem>>, %arg2: memref<4096x128xf32, #tpu.memory_space<vmem>>, %arg3: memref<4096x128xf32, #tpu.memory_space<vmem>>) attributes {dimension_semantics = [#tpu.dimension_semantics<parallel>], iteration_bounds = array<i64: 2>, scalar_prefetch = 0 : i64, scratch_operands = 0 : i64, tpu.core_type = #tpu.core_type<tc>, window_params = [{transform_indices = @transform_0, window_bounds = array<i64: 2>}, {transform_indices = @transform_1, window_bounds = array<i64: 4096, 128>}, {transform_indices = @transform_2, window_bounds = array<i64: 4096, 128>}]} {
    %c0 = arith.constant 0 : index
    %0 = memref.load %arg1[%c0] : memref<2xf32, #tpu.memory_space<smem>>
    %c1 = arith.constant 1 : index
    %1 = memref.load %arg1[%c1] : memref<2xf32, #tpu.memory_space<smem>>
    %c0_0 = arith.constant 0 : index
    %c0_1 = arith.constant 0 : index
    %2 = vector.load %arg2[%c0_0, %c0_1] : memref<4096x128xf32, #tpu.memory_space<vmem>>, vector<4096x128xf32>
    %cst = arith.constant 5.000000e+00 : f32
    %3 = vector.broadcast %cst : f32 to vector<4096x128xf32>
    %4 = arith.mulf %3, %2 : vector<4096x128xf32>
    %5 = vector.broadcast %0 : f32 to vector<4096x128xf32>
    %6 = arith.subf %4, %5 : vector<4096x128xf32>
    %7 = math.tanh %6 : vector<4096x128xf32>
    %8 = vector.broadcast %1 : f32 to vector<4096x128xf32>
    %9 = arith.addf %4, %8 : vector<4096x128xf32>
    %10 = math.tanh %9 : vector<4096x128xf32>
    %11 = arith.subf %7, %10 : vector<4096x128xf32>
    %cst_2 = arith.constant 5.000000e-01 : f32
    %12 = vector.broadcast %cst_2 : f32 to vector<4096x128xf32>
    %13 = arith.mulf %12, %11 : vector<4096x128xf32>
    %cst_3 = arith.constant 1.000000e+00 : f32
    %14 = vector.broadcast %cst_3 : f32 to vector<4096x128xf32>
    %15 = arith.addf %14, %13 : vector<4096x128xf32>
    %16 = arith.mulf %2, %15 : vector<4096x128xf32>
    %c0_4 = arith.constant 0 : index
    %c0_5 = arith.constant 0 : index
    %17 = vector.load %arg3[%c0_4, %c0_5] : memref<4096x128xf32, #tpu.memory_space<vmem>>, vector<4096x128xf32>
    tpu.vector_store %arg3[%c0_4, %c0_5], %16 {strides = array<i32>} : memref<4096x128xf32, #tpu.memory_space<vmem>>, vector<4096x128xf32>,
    return
  }
  func.func @transform_0(%arg0: i32) -> i32 {
    %c0_i32 = arith.constant 0 : i32
    %c0_i32_0 = arith.constant 0 : i32
    return %c0_i32 : i32
  }
  func.func @transform_1(%arg0: i32) -> (i32, i32) {
    %c0_i32 = arith.constant 0 : i32
    %c0_i32_0 = arith.constant 0 : i32
    return %arg0, %c0_i32 : i32, i32
  }
  func.func @transform_2(%arg0: i32) -> (i32, i32) {
    %c0_i32 = arith.constant 0 : i32
    %c0_i32_0 = arith.constant 0 : i32
    return %arg0, %c0_i32 : i32, i32
  }
}

</mosaic_0001>

<llo_original>
// kernel: tpu_custom_call.1
$region0: #{tpu_custom_call.1}
  #allocation0 [shape = 'u32[]', space=smem, size = 0x4, offset = 0x4, fixed_abs, tag = 'smem constant byte address 0x4 - core index']
  #allocation1 [shape = 'u32[72,128]{1,0:T(1,128)}', space=vmem, size = 0x9000, scoped, tag = 'internal scratch']
  %s0 = inlined_call_operand.hbm [shape: f32[2], index: 0, kind: input, shape index: {}]
  %s1 = inlined_call_operand.hbm [shape: f32[5120,128], index: 1, kind: input, shape index: {}]
  %s2 = inlined_call_operand.hbm [shape: f32[5120,128], index: 2, kind: output, shape index: {}]
  %s3 = sld [smem:[#allocation0]]
  $region49: #{tpu_custom_call.1} parent=0
    _
  %s5 = ssub.s32 1, %s3
  %s6 = scalar_select 0, %s5, %s3
  $region1: #{tpu_custom_call.1} parent=0
    #allocation2 [shape = 'u8[512]{0}', space=smem, size = 0x200, scoped, tag = 'input window, operand 0, single buffered']
    #allocation3 [shape = 's32[2]{0}', space=sflag, size = 0x8, scoped, tag = 'scoped memory for tpu_custom_call.1']
    #allocation4 [shape = 's32[2]{0}', space=sflag, size = 0x8, scoped, tag = 'scoped memory for tpu_custom_call.1']
    #allocation5 [shape = 's32[2]{0}', space=sflag, size = 0x8, scoped, tag = 'scoped memory for tpu_custom_call.1']
    #allocation6 [shape = 'u8[4194304]{0}', space=vmem, size = 0x400000, scoped, tag = 'input window, operand 1']
    #allocation7 [shape = 'u8[4194304]{0}', space=vmem, size = 0x400000, scoped, tag = 'output window, operand 0']
    %7 = vsyncpa [#allocation5], 0
    %8 = vsyncpa [#allocation3], 0
    %s9 = scalar_lea.sflag [#allocation3], 1
    %10 = vsyncpa %s9, 0
    %11 = vsyncpa [#allocation4], 0
    %s12 = scalar_lea.sflag [#allocation4], 1
    %13 = vsyncpa %s12, 0
    loop: start=0, step=1, limit=4
    $region2: #{tpu_custom_call.1} parent=1 // loop_pre_header
      _
    $region3: #{tpu_custom_call.1} parent=1 // loop_header
      %s15 = sphi 0, %s19
      %p16 = scmp.ge.s32.totalorder %s15, 4
      %s23 = sphi 0, %s23
      %s25 = sphi 0, %s23
      %s26 = sphi 0, %s25
      %s40 = sphi 0, %s26
      %s46 = sphi 0, %s48
      %s49 = sphi 0, %s46
      %s50 = sphi 0, %s49
      %s66 = sphi 0, %s50
      %s72 = sphi 0, %s74
      %s75 = sphi 0, %s72
      %s76 = sphi 0, %s75
      %s92 = sphi 0, %s76
    $region4: #{tpu_custom_call.1} parent=1 // loop_header_branch
      %18 = sbr.rel (%p16) target = $region8
    $region5: #{tpu_custom_call.1} parent=1 // loop_body
      %s20 = ssub.s32 %s15, 1
      %s21 = ssub.s32 %s15, 2
      %s22 = sadd.s32 %s15, 1
      %s24 = sadd.s32 %s23, 1
      %p27 = scmp.eq.s32.totalorder %s15, 1
      %p28 = scmp.ne.s32.totalorder %s23, %s25
      %p29 = scmp.eq.s32.totalorder %s15, 0
      %p30 = por %p28, %p29
      %p31 = scmp.ne.s32.totalorder %s23, %s25
      %p32 = scmp.eq.s32.totalorder %s20, 1
      %p33 = por %p31, %p32
      %p34 = scmp.ne.s32.totalorder %s25, %s26
      %p35 = scmp.eq.s32.totalorder %s20, 0
      %p36 = por %p34, %p35
      %p37 = scmp.ne.s32.totalorder %s25, %s26
      %p38 = scmp.eq.s32.totalorder %s21, 1
      %p39 = por %p37, %p38
      %p41 = scmp.ne.s32.totalorder %s26, %s40
      %p42 = scmp.eq.s32.totalorder %s21, 0
      %p43 = por %p41, %p42
      %s44 = ssub.s32 %s15, %s22
      %p45 = scmp.eq.s32.totalorder %s44, 0
      %s47 = sadd.s32 %s46, 1
      %s48 = scalar_select %p45, %s46, %s47
      %p51 = pneg %p45
      %p52 = scmp.eq.s32.totalorder %s15, 1
      %p53 = por %p51, %p52
      %p54 = scmp.ne.s32.totalorder %s46, %s49
      %p55 = scmp.eq.s32.totalorder %s15, 0
      %p56 = por %p54, %p55
      %p57 = scmp.ne.s32.totalorder %s46, %s49
      %p58 = scmp.eq.s32.totalorder %s20, 1
      %p59 = por %p57, %p58
      %p60 = scmp.ne.s32.totalorder %s49, %s50
      %p61 = scmp.eq.s32.totalorder %s20, 0
      %p62 = por %p60, %p61
      %p63 = scmp.ne.s32.totalorder %s49, %s50
      %p64 = scmp.eq.s32.totalorder %s21, 1
      %p65 = por %p63, %p64
      %p67 = scmp.ne.s32.totalorder %s50, %s66
      %p68 = scmp.eq.s32.totalorder %s21, 0
      %p69 = por %p67, %p68
      %s70 = ssub.s32 %s15, %s22
      %p71 = scmp.eq.s32.totalorder %s70, 0
      %s73 = sadd.s32 %s72, 1
      %s74 = scalar_select %p71, %s72, %s73
      %p77 = pneg %p71
      %p78 = scmp.eq.s32.totalorder %s15, 1
      %p79 = por %p77, %p78
      %p80 = scmp.ne.s32.totalorder %s72, %s75
      %p81 = scmp.eq.s32.totalorder %s15, 0
      %p82 = por %p80, %p81
      %p83 = scmp.ne.s32.totalorder %s72, %s75
      %p84 = scmp.eq.s32.totalorder %s20, 1
      %p85 = por %p83, %p84
      %p86 = scmp.ne.s32.totalorder %s75, %s76
      %p87 = scmp.eq.s32.totalorder %s20, 0
      %p88 = por %p86, %p87
      %p89 = scmp.ne.s32.totalorder %s75, %s76
      %p90 = scmp.eq.s32.totalorder %s21, 1
      %p91 = por %p89, %p90
      %p93 = scmp.ne.s32.totalorder %s76, %s92
      %p94 = scmp.eq.s32.totalorder %s21, 0
      %p95 = por %p93, %p94
      %p96 = scmp.le.s32.totalorder 1, %s15
      %p97 = scmp.lt.s32.totalorder %s15, 3
      %p98 = pnand %p96, %p97
      %p99 = pneg %p98
      // Predicated region
      $region9: #{tpu_custom_call.1} parent=5 // pred_check
        _
      $region10: #{tpu_custom_call.1} parent=5 // pred_check_branch
        %101 = sbr.rel (%p98) target = $region12
      $region11: #{tpu_custom_call.1} parent=5 // pred_region
        %s102 = ssub.s32 %s15, 1
        // Predicated region
        $region13: #{tpu_custom_call.1} parent=11 // pred_check
          %p103 = pneg %p36
        $region14: #{tpu_custom_call.1} parent=11 // pred_check_branch
          %105 = sbr.rel (%p103) target = $region16
        $region15: #{tpu_custom_call.1} parent=11 // pred_region
          %107 = vsyncadd [#allocation5], 0
          %s109 = sshll.u32 %s0, 4
          %s110 = int_to_ptr.hbm [resolvable:$true] %s109
          %112 = dma.hbm_to_smem %s110, 16, [#allocation2], [#allocation5]
        $region16: #{tpu_custom_call.1} parent=11 // pred_fallthru
          _
      $region12: #{tpu_custom_call.1} parent=5 // pred_fallthru
        _
      %p113 = scmp.lt.s32.totalorder %s15, 2
      // Predicated region
      $region17: #{tpu_custom_call.1} parent=5 // pred_check
        %p114 = pneg %p113
      $region18: #{tpu_custom_call.1} parent=5 // pred_check_branch
        %116 = sbr.rel (%p114) target = $region20
      $region19: #{tpu_custom_call.1} parent=5 // pred_region
        // Predicated region
        $region21: #{tpu_custom_call.1} parent=19 // pred_check
          %p117 = pneg %p56
        $region22: #{tpu_custom_call.1} parent=19 // pred_check_branch
          %119 = sbr.rel (%p117) target = $region24
        $region23: #{tpu_custom_call.1} parent=19 // pred_region
          %s120 = sand.u32 %s46, 1
          %s121 = scalar_lea.sflag [#allocation3], %s120
          %s122 = sand.u32 %s46, 1
          %s123 = smul.addr %s122, 4096
          %s124 = scalar_lea.vmem [#allocation6], %s123
          %s125 = smul.u32 512, %s15
          %s126 = ssub.s32 640, %s125
          %p127 = scmp.lt.s32.totalorder %s126, 512
          %s128 = scalar_select %p127, %s126, 512
          %s129 = smul.u32 8, %s128
          %s130 = ssub.s32 4096, %s129
          %s131 = sshll.u32 %s130, 4
          %132 = vsyncadd %s121, %s131
          %p133 = scmp.ne.s32.totalorder 0, %s129
          %s134 = smul.addr %s125, 8
          %s135 = scalar_lea.hbm %s1, %s134
          %s136 = smul.u32 8, %s128
          %s137 = sshll.u32 %s135, 4
          %s138 = int_to_ptr.hbm [resolvable:$true] %s137
          %s139 = sshll.u32 %s124, 4
          %s140 = int_to_ptr.vmem [resolvable:$true] %s139
          %s141 = sshll.u32 %s136, 4
          %145 = dma.hbm_to_vmem [thread:$0]  (%p133), %s138, %s141, %s140, %s121, 128, 128, 8
        $region24: #{tpu_custom_call.1} parent=19 // pred_fallthru
          _
      $region20: #{tpu_custom_call.1} parent=5 // pred_fallthru
        _
      %p146 = scmp.le.s32.totalorder 1, %s15
      %p147 = scmp.lt.s32.totalorder %s15, 3
      %p148 = pnand %p146, %p147
      %p149 = pneg %p148
      // Predicated region
      $region25: #{tpu_custom_call.1} parent=5 // pred_check
        _
      $region26: #{tpu_custom_call.1} parent=5 // pred_check_branch
        %151 = sbr.rel (%p148) target = $region28
      $region27: #{tpu_custom_call.1} parent=5 // pred_region
        %s152 = ssub.s32 %s15, 1
        // Predicated region
        $region29: #{tpu_custom_call.1} parent=27 // pred_check
          %p153 = pneg %p36
        $region30: #{tpu_custom_call.1} parent=27 // pred_check_branch
          %155 = sbr.rel (%p153) target = $region32
        $region31: #{tpu_custom_call.1} parent=27 // pred_region
          %157 = dma.done [#allocation5], 16
        $region32: #{tpu_custom_call.1} parent=27 // pred_fallthru
          _
        %s158 = sand.u32 %s49, 1
        %s159 = scalar_lea.sflag [#allocation3], %s158
        %s160 = sand.u32 %s49, 1
        %s161 = smul.addr %s160, 4096
        %s162 = scalar_lea.vmem [#allocation6], %s161
        // Predicated region
        $region33: #{tpu_custom_call.1} parent=27 // pred_check
          %p163 = pneg %p62
        $region34: #{tpu_custom_call.1} parent=27 // pred_check_branch
          %165 = sbr.rel (%p163) target = $region36
        $region35: #{tpu_custom_call.1} parent=27 // pred_region
          %167 = dma.done %s159, 65536
        $region36: #{tpu_custom_call.1} parent=27 // pred_fallthru
          _
        %168 = sfence
        %p169 = pneg %p36
        %p170 = pneg %p33
        %s171 = sand.u32 %s49, 1
        %s172 = scalar_lea.sflag [#allocation3], %s171
        %s173 = sand.u32 %s49, 1
        %s174 = smul.addr %s173, 4096
        %s175 = scalar_lea.vmem [#allocation6], %s174
        %p176 = pneg %p62
        %p177 = pneg %p59
        %p178 = pneg %p88
        %p179 = pneg %p85
        %s180 = sand.u32 %s75, 1
        %s181 = scalar_lea.sflag [#allocation4], %s180
        %s182 = sand.u32 %s75, 1
        %s183 = smul.addr %s182, 4096
        %s184 = scalar_lea.vmem [#allocation7], %s183
        %s185 = smul.u32 512, %s20
        %s186 = ssub.s32 640, %s185
        %p187 = scmp.lt.s32.totalorder %s186, 512
        %s188 = scalar_select %p187, %s186, 512
        %s189 = smul.u32 8, %s188
        %s190 = smul.u32 512, %s20
        %s191 = ssub.s32 640, %s190
        %p192 = scmp.lt.s32.totalorder %s191, 512
        %s193 = scalar_select %p192, %s191, 512
        %s194 = smul.u32 8, %s193
        %s195 = sld [smem:[#allocation2]]
        %s196 = sld [smem:[#allocation2 + $0x1]]
        %v197 = vld [vmem:[%s162] sm:$0xff]
        %v198 = vld [vmem:[%s162 + $0x8] sm:$0xff]
        %v199 = vld [vmem:[%s162 + $0x10] sm:$0xff]
        %v200 = vld [vmem:[%s162 + $0x18] sm:$0xff]
        %v201 = vld [vmem:[%s162 + $0x20] sm:$0xff]
        %v202 = vld [vmem:[%s162 + $0x28] sm:$0xff]
        %v203 = vld [vmem:[%s162 + $0x30] sm:$0xff]
        %v204 = vld [vmem:[%s162 + $0x38] sm:$0xff]
        %v205 = vld [vmem:[%s162 + $0x40] sm:$0xff]
        %v206 = vld [vmem:[%s162 + $0x48] sm:$0xff]
        %v207 = vld [vmem:[%s162 + $0x50] sm:$0xff]
        %v208 = vld [vmem:[%s162 + $0x58] sm:$0xff]
        %v209 = vld [vmem:[%s162 + $0x60] sm:$0xff]
        %v210 = vld [vmem:[%s162 + $0x68] sm:$0xff]
        %v211 = vld [vmem:[%s162 + $0x70] sm:$0xff]
        %v212 = vld [vmem:[%s162 + $0x78] sm:$0xff]
        %v213 = vld [vmem:[%s162 + $0x80] sm:$0xff]
        %v214 = vld [vmem:[%s162 + $0x88] sm:$0xff]
        %v215 = vld [vmem:[%s162 + $0x90] sm:$0xff]
        %v216 = vld [vmem:[%s162 + $0x98] sm:$0xff]
        %v217 = vld [vmem:[%s162 + $0xa0] sm:$0xff]
        %v218 = vld [vmem:[%s162 + $0xa8] sm:$0xff]
        %v219 = vld [vmem:[%s162 + $0xb0] sm:$0xff]
        %v220 = vld [vmem:[%s162 + $0xb8] sm:$0xff]
        %v221 = vld [vmem:[%s162 + $0xc0] sm:$0xff]
        %v222 = vld [vmem:[%s162 + $0xc8] sm:$0xff]
        %v223 = vld [vmem:[%s162 + $0xd0] sm:$0xff]
        %v224 = vld [vmem:[%s162 + $0xd8] sm:$0xff]
        %v225 = vld [vmem:[%s162 + $0xe0] sm:$0xff]
        %v226 = vld [vmem:[%s162 + $0xe8] sm:$0xff]
        %v227 = vld [vmem:[%s162 + $0xf0] sm:$0xff]
        %v228 = vld [vmem:[%s162 + $0xf8] sm:$0xff]
        %v229 = vld [vmem:[%s162 + $0x100] sm:$0xff]
        %v230 = vld [vmem:[%s162 + $0x108] sm:$0xff]
        %v231 = vld [vmem:[%s162 + $0x110] sm:$0xff]
        %v232 = vld [vmem:[%s162 + $0x118] sm:$0xff]
        %v233 = vld [vmem:[%s162 + $0x120] sm:$0xff]
        %v234 = vld [vmem:[%s162 + $0x128] sm:$0xff]
        %v235 = vld [vmem:[%s162 + $0x130] sm:$0xff]
        %v236 = vld [vmem:[%s162 + $0x138] sm:$0xff]
        %v237 = vld [vmem:[%s162 + $0x140] sm:$0xff]
        %v238 = vld [vmem:[%s162 + $0x148] sm:$0xff]
        %v239 = vld [vmem:[%s162 + $0x150] sm:$0xff]
        %v240 = vld [vmem:[%s162 + $0x158] sm:$0xff]
        %v241 = vld [vmem:[%s162 + $0x160] sm:$0xff]
        %v242 = vld [vmem:[%s162 + $0x168] sm:$0xff]
        %v243 = vld [vmem:[%s162 + $0x170] sm:$0xff]
        %v244 = vld [vmem:[%s162 + $0x178] sm:$0xff]
        %v245 = vld [vmem:[%s162 + $0x180] sm:$0xff]
        %v246 = vld [vmem:[%s162 + $0x188] sm:$0xff]
        %v247 = vld [vmem:[%s162 + $0x190] sm:$0xff]
        %v248 = vld [vmem:[%s162 + $0x198] sm:$0xff]
        %v249 = vld [vmem:[%s162 + $0x1a0] sm:$0xff]
        %v250 = vld [vmem:[%s162 + $0x1a8] sm:$0xff]
        %v251 = vld [vmem:[%s162 + $0x1b0] sm:$0xff]
        %v252 = vld [vmem:[%s162 + $0x1b8] sm:$0xff]
        %v253 = vld [vmem:[%s162 + $0x1c0] sm:$0xff]
        %v254 = vld [vmem:[%s162 + $0x1c8] sm:$0xff]
        %v255 = vld [vmem:[%s162 + $0x1d0] sm:$0xff]
        %v256 = vld [vmem:[%s162 + $0x1d8] sm:$0xff]
        %v257 = vld [vmem:[%s162 + $0x1e0] sm:$0xff]
        %v258 = vld [vmem:[%s162 + $0x1e8] sm:$0xff]
        %v259 = vld [vmem:[%s162 + $0x1f0] sm:$0xff]
        %v260 = vld [vmem:[%s162 + $0x1f8] sm:$0xff]
        %v261 = vld [vmem:[%s162 + $0x200] sm:$0xff]
        %v262 = vld [vmem:[%s162 + $0x208] sm:$0xff]
        %v263 = vld [vmem:[%s162 + $0x210] sm:$0xff]
        %v264 = vld [vmem:[%s162 + $0x218] sm:$0xff]
        %v265 = vld [vmem:[%s162 + $0x220] sm:$0xff]
        %v266 = vld [vmem:[%s162 + $0x228] sm:$0xff]
        %v267 = vld [vmem:[%s162 + $0x230] sm:$0xff]
        %v268 = vld [vmem:[%s162 + $0x238] sm:$0xff]
        %v269 = vld [vmem:[%s162 + $0x240] sm:$0xff]
        %v270 = vld [vmem:[%s162 + $0x248] sm:$0xff]
        %v271 = vld [vmem:[%s162 + $0x250] sm:$0xff]
        %v272 = vld [vmem:[%s162 + $0x258] sm:$0xff]
        %v273 = vld [vmem:[%s162 + $0x260] sm:$0xff]
        %v274 = vld [vmem:[%s162 + $0x268] sm:$0xff]
        %v275 = vld [vmem:[%s162 + $0x270] sm:$0xff]
        %v276 = vld [vmem:[%s162 + $0x278] sm:$0xff]
        %v277 = vld [vmem:[%s162 + $0x280] sm:$0xff]
        %v278 = vld [vmem:[%s162 + $0x288] sm:$0xff]
        %v279 = vld [vmem:[%s162 + $0x290] sm:$0xff]
        %v280 = vld [vmem:[%s162 + $0x298] sm:$0xff]
        %v281 = vld [vmem:[%s162 + $0x2a0] sm:$0xff]
        %v282 = vld [vmem:[%s162 + $0x2a8] sm:$0xff]
        %v283 = vld [vmem:[%s162 + $0x2b0] sm:$0xff]
        %v284 = vld [vmem:[%s162 + $0x2b8] sm:$0xff]
        %v285 = vld [vmem:[%s162 + $0x2c0] sm:$0xff]
        %v286 = vld [vmem:[%s162 + $0x2c8] sm:$0xff]
        %v287 = vld [vmem:[%s162 + $0x2d0] sm:$0xff]
        %v288 = vld [vmem:[%s162 + $0x2d8] sm:$0xff]
        %v289 = vld [vmem:[%s162 + $0x2e0] sm:$0xff]
        %v290 = vld [vmem:[%s162 + $0x2e8] sm:$0xff]
        %v291 = vld [vmem:[%s162 + $0x2f0] sm:$0xff]
        %v292 = vld [vmem:[%s162 + $0x2f8] sm:$0xff]
        %v293 = vld [vmem:[%s162 + $0x300] sm:$0xff]
        %v294 = vld [vmem:[%s162 + $0x308] sm:$0xff]
        %v295 = vld [vmem:[%s162 + $0x310] sm:$0xff]
        %v296 = vld [vmem:[%s162 + $0x318] sm:$0xff]
        %v297 = vld [vmem:[%s162 + $0x320] sm:$0xff]
        %v298 = vld [vmem:[%s162 + $0x328] sm:$0xff]
        %v299 = vld [vmem:[%s162 + $0x330] sm:$0xff]
        %v300 = vld [vmem:[%s162 + $0x338] sm:$0xff]
        %v301 = vld [vmem:[%s162 + $0x340] sm:$0xff]
        %v302 = vld [vmem:[%s162 + $0x348] sm:$0xff]
        %v303 = vld [vmem:[%s162 + $0x350] sm:$0xff]
        %v304 = vld [vmem:[%s162 + $0x358] sm:$0xff]
        %v305 = vld [vmem:[%s162 + $0x360] sm:$0xff]
        %v306 = vld [vmem:[%s162 + $0x368] sm:$0xff]
        %v307 = vld [vmem:[%s162 + $0x370] sm:$0xff]
        %v308 = vld [vmem:[%s162 + $0x378] sm:$0xff]
        %v309 = vld [vmem:[%s162 + $0x380] sm:$0xff]
        %v310 = vld [vmem:[%s162 + $0x388] sm:$0xff]
        %v311 = vld [vmem:[%s162 + $0x390] sm:$0xff]
        %v312 = vld [vmem:[%s162 + $0x398] sm:$0xff]
        %v313 = vld [vmem:[%s162 + $0x3a0] sm:$0xff]
        %v314 = vld [vmem:[%s162 + $0x3a8] sm:$0xff]
        %v315 = vld [vmem:[%s162 + $0x3b0] sm:$0xff]
        %v316 = vld [vmem:[%s162 + $0x3b8] sm:$0xff]
        %v317 = vld [vmem:[%s162 + $0x3c0] sm:$0xff]
        %v318 = vld [vmem:[%s162 + $0x3c8] sm:$0xff]
        %v319 = vld [vmem:[%s162 + $0x3d0] sm:$0xff]
        %v320 = vld [vmem:[%s162 + $0x3d8] sm:$0xff]
        %v321 = vld [vmem:[%s162 + $0x3e0] sm:$0xff]
        %v322 = vld [vmem:[%s162 + $0x3e8] sm:$0xff]
        %v323 = vld [vmem:[%s162 + $0x3f0] sm:$0xff]
        %v324 = vld [vmem:[%s162 + $0x3f8] sm:$0xff]
        %v325 = vld [vmem:[%s162 + $0x400] sm:$0xff]
        %v326 = vld [vmem:[%s162 + $0x408] sm:$0xff]
        %v327 = vld [vmem:[%s162 + $0x410] sm:$0xff]
        %v328 = vld [vmem:[%s162 + $0x418] sm:$0xff]
        %v329 = vld [vmem:[%s162 + $0x420] sm:$0xff]
        %v330 = vld [vmem:[%s162 + $0x428] sm:$0xff]
        %v331 = vld [vmem:[%s162 + $0x430] sm:$0xff]
        %v332 = vld [vmem:[%s162 + $0x438] sm:$0xff]
        %v333 = vld [vmem:[%s162 + $0x440] sm:$0xff]
        %v334 = vld [vmem:[%s162 + $0x448] sm:$0xff]
        %v335 = vld [vmem:[%s162 + $0x450] sm:$0xff]
        %v336 = vld [vmem:[%s162 + $0x458] sm:$0xff]
        %v337 = vld [vmem:[%s162 + $0x460] sm:$0xff]
        %v338 = vld [vmem:[%s162 + $0x468] sm:$0xff]
        %v339 = vld [vmem:[%s162 + $0x470] sm:$0xff]
        %v340 = vld [vmem:[%s162 + $0x478] sm:$0xff]
        %v341 = vld [vmem:[%s162 + $0x480] sm:$0xff]
        %v342 = vld [vmem:[%s162 + $0x488] sm:$0xff]
        %v343 = vld [vmem:[%s162 + $0x490] sm:$0xff]
        %v344 = vld [vmem:[%s162 + $0x498] sm:$0xff]
        %v345 = vld [vmem:[%s162 + $0x4a0] sm:$0xff]
        %v346 = vld [vmem:[%s162 + $0x4a8] sm:$0xff]
        %v347 = vld [vmem:[%s162 + $0x4b0] sm:$0xff]
        %v348 = vld [vmem:[%s162 + $0x4b8] sm:$0xff]
        %v349 = vld [vmem:[%s162 + $0x4c0] sm:$0xff]
        %v350 = vld [vmem:[%s162 + $0x4c8] sm:$0xff]
        %v351 = vld [vmem:[%s162 + $0x4d0] sm:$0xff]
        %v352 = vld [vmem:[%s162 + $0x4d8] sm:$0xff]
        %v353 = vld [vmem:[%s162 + $0x4e0] sm:$0xff]
        %v354 = vld [vmem:[%s162 + $0x4e8] sm:$0xff]
        %v355 = vld [vmem:[%s162 + $0x4f0] sm:$0xff]
        %v356 = vld [vmem:[%s162 + $0x4f8] sm:$0xff]
        %v357 = vld [vmem:[%s162 + $0x500] sm:$0xff]
        %v358 = vld [vmem:[%s162 + $0x508] sm:$0xff]
        %v359 = vld [vmem:[%s162 + $0x510] sm:$0xff]
        %v360 = vld [vmem:[%s162 + $0x518] sm:$0xff]
        %v361 = vld [vmem:[%s162 + $0x520] sm:$0xff]
        %v362 = vld [vmem:[%s162 + $0x528] sm:$0xff]
        %v363 = vld [vmem:[%s162 + $0x530] sm:$0xff]
        %v364 = vld [vmem:[%s162 + $0x538] sm:$0xff]
        %v365 = vld [vmem:[%s162 + $0x540] sm:$0xff]
        %v366 = vld [vmem:[%s162 + $0x548] sm:$0xff]
        %v367 = vld [vmem:[%s162 + $0x550] sm:$0xff]
        %v368 = vld [vmem:[%s162 + $0x558] sm:$0xff]
        %v369 = vld [vmem:[%s162 + $0x560] sm:$0xff]
        %v370 = vld [vmem:[%s162 + $0x568] sm:$0xff]
        %v371 = vld [vmem:[%s162 + $0x570] sm:$0xff]
        %v372 = vld [vmem:[%s162 + $0x578] sm:$0xff]
        %v373 = vld [vmem:[%s162 + $0x580] sm:$0xff]
        %v374 = vld [vmem:[%s162 + $0x588] sm:$0xff]
        %v375 = vld [vmem:[%s162 + $0x590] sm:$0xff]
        %v376 = vld [vmem:[%s162 + $0x598] sm:$0xff]
        %v377 = vld [vmem:[%s162 + $0x5a0] sm:$0xff]
        %v378 = vld [vmem:[%s162 + $0x5a8] sm:$0xff]
        %v379 = vld [vmem:[%s162 + $0x5b0] sm:$0xff]
        %v380 = vld [vmem:[%s162 + $0x5b8] sm:$0xff]
        %v381 = vld [vmem:[%s162 + $0x5c0] sm:$0xff]
        %v382 = vld [vmem:[%s162 + $0x5c8] sm:$0xff]
        %v383 = vld [vmem:[%s162 + $0x5d0] sm:$0xff]
        %v384 = vld [vmem:[%s162 + $0x5d8] sm:$0xff]
        %v385 = vld [vmem:[%s162 + $0x5e0] sm:$0xff]
        %v386 = vld [vmem:[%s162 + $0x5e8] sm:$0xff]
        %v387 = vld [vmem:[%s162 + $0x5f0] sm:$0xff]
        %v388 = vld [vmem:[%s162 + $0x5f8] sm:$0xff]
        %v389 = vld [vmem:[%s162 + $0x600] sm:$0xff]
        %v390 = vld [vmem:[%s162 + $0x608] sm:$0xff]
        %v391 = vld [vmem:[%s162 + $0x610] sm:$0xff]
        %v392 = vld [vmem:[%s162 + $0x618] sm:$0xff]
        %v393 = vld [vmem:[%s162 + $0x620] sm:$0xff]
        %v394 = vld [vmem:[%s162 + $0x628] sm:$0xff]
        %v395 = vld [vmem:[%s162 + $0x630] sm:$0xff]
        %v396 = vld [vmem:[%s162 + $0x638] sm:$0xff]
        %v397 = vld [vmem:[%s162 + $0x640] sm:$0xff]
        %v398 = vld [vmem:[%s162 + $0x648] sm:$0xff]
        %v399 = vld [vmem:[%s162 + $0x650] sm:$0xff]
        %v400 = vld [vmem:[%s162 + $0x658] sm:$0xff]
        %v401 = vld [vmem:[%s162 + $0x660] sm:$0xff]
        %v402 = vld [vmem:[%s162 + $0x668] sm:$0xff]
        %v403 = vld [vmem:[%s162 + $0x670] sm:$0xff]
        %v404 = vld [vmem:[%s162 + $0x678] sm:$0xff]
        %v405 = vld [vmem:[%s162 + $0x680] sm:$0xff]
        %v406 = vld [vmem:[%s162 + $0x688] sm:$0xff]
        %v407 = vld [vmem:[%s162 + $0x690] sm:$0xff]
        %v408 = vld [vmem:[%s162 + $0x698] sm:$0xff]
        %v409 = vld [vmem:[%s162 + $0x6a0] sm:$0xff]
        %v410 = vld [vmem:[%s162 + $0x6a8] sm:$0xff]
        %v411 = vld [vmem:[%s162 + $0x6b0] sm:$0xff]
        %v412 = vld [vmem:[%s162 + $0x6b8] sm:$0xff]
        %v413 = vld [vmem:[%s162 + $0x6c0] sm:$0xff]
        %v414 = vld [vmem:[%s162 + $0x6c8] sm:$0xff]
        %v415 = vld [vmem:[%s162 + $0x6d0] sm:$0xff]
        %v416 = vld [vmem:[%s162 + $0x6d8] sm:$0xff]
        %v417 = vld [vmem:[%s162 + $0x6e0] sm:$0xff]
        %v418 = vld [vmem:[%s162 + $0x6e8] sm:$0xff]
        %v419 = vld [vmem:[%s162 + $0x6f0] sm:$0xff]
        %v420 = vld [vmem:[%s162 + $0x6f8] sm:$0xff]
        %v421 = vld [vmem:[%s162 + $0x700] sm:$0xff]
        %v422 = vld [vmem:[%s162 + $0x708] sm:$0xff]
        %v423 = vld [vmem:[%s162 + $0x710] sm:$0xff]
        %v424 = vld [vmem:[%s162 + $0x718] sm:$0xff]
        %v425 = vld [vmem:[%s162 + $0x720] sm:$0xff]
        %v426 = vld [vmem:[%s162 + $0x728] sm:$0xff]
        %v427 = vld [vmem:[%s162 + $0x730] sm:$0xff]
        %v428 = vld [vmem:[%s162 + $0x738] sm:$0xff]
        %v429 = vld [vmem:[%s162 + $0x740] sm:$0xff]
        %v430 = vld [vmem:[%s162 + $0x748] sm:$0xff]
        %v431 = vld [vmem:[%s162 + $0x750] sm:$0xff]
        %v432 = vld [vmem:[%s162 + $0x758] sm:$0xff]
        %v433 = vld [vmem:[%s162 + $0x760] sm:$0xff]
        %v434 = vld [vmem:[%s162 + $0x768] sm:$0xff]
        %v435 = vld [vmem:[%s162 + $0x770] sm:$0xff]
        %v436 = vld [vmem:[%s162 + $0x778] sm:$0xff]
        %v437 = vld [vmem:[%s162 + $0x780] sm:$0xff]
        %v438 = vld [vmem:[%s162 + $0x788] sm:$0xff]
        %v439 = vld [vmem:[%s162 + $0x790] sm:$0xff]
        %v440 = vld [vmem:[%s162 + $0x798] sm:$0xff]
        %v441 = vld [vmem:[%s162 + $0x7a0] sm:$0xff]
        %v442 = vld [vmem:[%s162 + $0x7a8] sm:$0xff]
        %v443 = vld [vmem:[%s162 + $0x7b0] sm:$0xff]
        %v444 = vld [vmem:[%s162 + $0x7b8] sm:$0xff]
        %v445 = vld [vmem:[%s162 + $0x7c0] sm:$0xff]
        %v446 = vld [vmem:[%s162 + $0x7c8] sm:$0xff]
        %v447 = vld [vmem:[%s162 + $0x7d0] sm:$0xff]
        %v448 = vld [vmem:[%s162 + $0x7d8] sm:$0xff]
        %v449 = vld [vmem:[%s162 + $0x7e0] sm:$0xff]
        %v450 = vld [vmem:[%s162 + $0x7e8] sm:$0xff]
        %v451 = vld [vmem:[%s162 + $0x7f0] sm:$0xff]
        %v452 = vld [vmem:[%s162 + $0x7f8] sm:$0xff]
        %v453 = vld [vmem:[%s162 + $0x800] sm:$0xff]
        %v454 = vld [vmem:[%s162 + $0x808] sm:$0xff]
        %v455 = vld [vmem:[%s162 + $0x810] sm:$0xff]
        %v456 = vld [vmem:[%s162 + $0x818] sm:$0xff]
        %v457 = vld [vmem:[%s162 + $0x820] sm:$0xff]
        %v458 = vld [vmem:[%s162 + $0x828] sm:$0xff]
        %v459 = vld [vmem:[%s162 + $0x830] sm:$0xff]
        %v460 = vld [vmem:[%s162 + $0x838] sm:$0xff]
        %v461 = vld [vmem:[%s162 + $0x840] sm:$0xff]
        %v462 = vld [vmem:[%s162 + $0x848] sm:$0xff]
        %v463 = vld [vmem:[%s162 + $0x850] sm:$0xff]
        %v464 = vld [vmem:[%s162 + $0x858] sm:$0xff]
        %v465 = vld [vmem:[%s162 + $0x860] sm:$0xff]
        %v466 = vld [vmem:[%s162 + $0x868] sm:$0xff]
        %v467 = vld [vmem:[%s162 + $0x870] sm:$0xff]
        %v468 = vld [vmem:[%s162 + $0x878] sm:$0xff]
        %v469 = vld [vmem:[%s162 + $0x880] sm:$0xff]
        %v470 = vld [vmem:[%s162 + $0x888] sm:$0xff]
        %v471 = vld [vmem:[%s162 + $0x890] sm:$0xff]
        %v472 = vld [vmem:[%s162 + $0x898] sm:$0xff]
        %v473 = vld [vmem:[%s162 + $0x8a0] sm:$0xff]
        %v474 = vld [vmem:[%s162 + $0x8a8] sm:$0xff]
        %v475 = vld [vmem:[%s162 + $0x8b0] sm:$0xff]
        %v476 = vld [vmem:[%s162 + $0x8b8] sm:$0xff]
        %v477 = vld [vmem:[%s162 + $0x8c0] sm:$0xff]
        %v478 = vld [vmem:[%s162 + $0x8c8] sm:$0xff]
        %v479 = vld [vmem:[%s162 + $0x8d0] sm:$0xff]
        %v480 = vld [vmem:[%s162 + $0x8d8] sm:$0xff]
        %v481 = vld [vmem:[%s162 + $0x8e0] sm:$0xff]
        %v482 = vld [vmem:[%s162 + $0x8e8] sm:$0xff]
        %v483 = vld [vmem:[%s162 + $0x8f0] sm:$0xff]
        %v484 = vld [vmem:[%s162 + $0x8f8] sm:$0xff]
        %v485 = vld [vmem:[%s162 + $0x900] sm:$0xff]
        %v486 = vld [vmem:[%s162 + $0x908] sm:$0xff]
        %v487 = vld [vmem:[%s162 + $0x910] sm:$0xff]
        %v488 = vld [vmem:[%s162 + $0x918] sm:$0xff]
        %v489 = vld [vmem:[%s162 + $0x920] sm:$0xff]
        %v490 = vld [vmem:[%s162 + $0x928] sm:$0xff]
        %v491 = vld [vmem:[%s162 + $0x930] sm:$0xff]
        %v492 = vld [vmem:[%s162 + $0x938] sm:$0xff]
        %v493 = vld [vmem:[%s162 + $0x940] sm:$0xff]
        %v494 = vld [vmem:[%s162 + $0x948] sm:$0xff]
        %v495 = vld [vmem:[%s162 + $0x950] sm:$0xff]
        %v496 = vld [vmem:[%s162 + $0x958] sm:$0xff]
        %v497 = vld [vmem:[%s162 + $0x960] sm:$0xff]
        %v498 = vld [vmem:[%s162 + $0x968] sm:$0xff]
        %v499 = vld [vmem:[%s162 + $0x970] sm:$0xff]
        %v500 = vld [vmem:[%s162 + $0x978] sm:$0xff]
        %v501 = vld [vmem:[%s162 + $0x980] sm:$0xff]
        %v502 = vld [vmem:[%s162 + $0x988] sm:$0xff]
        %v503 = vld [vmem:[%s162 + $0x990] sm:$0xff]
        %v504 = vld [vmem:[%s162 + $0x998] sm:$0xff]
        %v505 = vld [vmem:[%s162 + $0x9a0] sm:$0xff]
        %v506 = vld [vmem:[%s162 + $0x9a8] sm:$0xff]
        %v507 = vld [vmem:[%s162 + $0x9b0] sm:$0xff]
        %v508 = vld [vmem:[%s162 + $0x9b8] sm:$0xff]
        %v509 = vld [vmem:[%s162 + $0x9c0] sm:$0xff]
        %v510 = vld [vmem:[%s162 + $0x9c8] sm:$0xff]
        %v511 = vld [vmem:[%s162 + $0x9d0] sm:$0xff]
        %v512 = vld [vmem:[%s162 + $0x9d8] sm:$0xff]
        %v513 = vld [vmem:[%s162 + $0x9e0] sm:$0xff]
        %v514 = vld [vmem:[%s162 + $0x9e8] sm:$0xff]
        %v515 = vld [vmem:[%s162 + $0x9f0] sm:$0xff]
        %v516 = vld [vmem:[%s162 + $0x9f8] sm:$0xff]
        %v517 = vld [vmem:[%s162 + $0xa00] sm:$0xff]
        %v518 = vld [vmem:[%s162 + $0xa08] sm:$0xff]
        %v519 = vld [vmem:[%s162 + $0xa10] sm:$0xff]
        %v520 = vld [vmem:[%s162 + $0xa18] sm:$0xff]
        %v521 = vld [vmem:[%s162 + $0xa20] sm:$0xff]
        %v522 = vld [vmem:[%s162 + $0xa28] sm:$0xff]
        %v523 = vld [vmem:[%s162 + $0xa30] sm:$0xff]
        %v524 = vld [vmem:[%s162 + $0xa38] sm:$0xff]
        %v525 = vld [vmem:[%s162 + $0xa40] sm:$0xff]
        %v526 = vld [vmem:[%s162 + $0xa48] sm:$0xff]
        %v527 = vld [vmem:[%s162 + $0xa50] sm:$0xff]
        %v528 = vld [vmem:[%s162 + $0xa58] sm:$0xff]
        %v529 = vld [vmem:[%s162 + $0xa60] sm:$0xff]
        %v530 = vld [vmem:[%s162 + $0xa68] sm:$0xff]
        %v531 = vld [vmem:[%s162 + $0xa70] sm:$0xff]
        %v532 = vld [vmem:[%s162 + $0xa78] sm:$0xff]
        %v533 = vld [vmem:[%s162 + $0xa80] sm:$0xff]
        %v534 = vld [vmem:[%s162 + $0xa88] sm:$0xff]
        %v535 = vld [vmem:[%s162 + $0xa90] sm:$0xff]
        %v536 = vld [vmem:[%s162 + $0xa98] sm:$0xff]
        %v537 = vld [vmem:[%s162 + $0xaa0] sm:$0xff]
        %v538 = vld [vmem:[%s162 + $0xaa8] sm:$0xff]
        %v539 = vld [vmem:[%s162 + $0xab0] sm:$0xff]
        %v540 = vld [vmem:[%s162 + $0xab8] sm:$0xff]
        %v541 = vld [vmem:[%s162 + $0xac0] sm:$0xff]
        %v542 = vld [vmem:[%s162 + $0xac8] sm:$0xff]
        %v543 = vld [vmem:[%s162 + $0xad0] sm:$0xff]
        %v544 = vld [vmem:[%s162 + $0xad8] sm:$0xff]
        %v545 = vld [vmem:[%s162 + $0xae0] sm:$0xff]
        %v546 = vld [vmem:[%s162 + $0xae8] sm:$0xff]
        %v547 = vld [vmem:[%s162 + $0xaf0] sm:$0xff]
        %v548 = vld [vmem:[%s162 + $0xaf8] sm:$0xff]
        %v549 = vld [vmem:[%s162 + $0xb00] sm:$0xff]
        %v550 = vld [vmem:[%s162 + $0xb08] sm:$0xff]
        %v551 = vld [vmem:[%s162 + $0xb10] sm:$0xff]
        %v552 = vld [vmem:[%s162 + $0xb18] sm:$0xff]
        %v553 = vld [vmem:[%s162 + $0xb20] sm:$0xff]
        %v554 = vld [vmem:[%s162 + $0xb28] sm:$0xff]
        %v555 = vld [vmem:[%s162 + $0xb30] sm:$0xff]
        %v556 = vld [vmem:[%s162 + $0xb38] sm:$0xff]
        %v557 = vld [vmem:[%s162 + $0xb40] sm:$0xff]
        %v558 = vld [vmem:[%s162 + $0xb48] sm:$0xff]
        %v559 = vld [vmem:[%s162 + $0xb50] sm:$0xff]
        %v560 = vld [vmem:[%s162 + $0xb58] sm:$0xff]
        %v561 = vld [vmem:[%s162 + $0xb60] sm:$0xff]
        %v562 = vld [vmem:[%s162 + $0xb68] sm:$0xff]
        %v563 = vld [vmem:[%s162 + $0xb70] sm:$0xff]
        %v564 = vld [vmem:[%s162 + $0xb78] sm:$0xff]
        %v565 = vld [vmem:[%s162 + $0xb80] sm:$0xff]
        %v566 = vld [vmem:[%s162 + $0xb88] sm:$0xff]
        %v567 = vld [vmem:[%s162 + $0xb90] sm:$0xff]
        %v568 = vld [vmem:[%s162 + $0xb98] sm:$0xff]
        %v569 = vld [vmem:[%s162 + $0xba0] sm:$0xff]
        %v570 = vld [vmem:[%s162 + $0xba8] sm:$0xff]
        %v571 = vld [vmem:[%s162 + $0xbb0] sm:$0xff]
        %v572 = vld [vmem:[%s162 + $0xbb8] sm:$0xff]
        %v573 = vld [vmem:[%s162 + $0xbc0] sm:$0xff]
        %v574 = vld [vmem:[%s162 + $0xbc8] sm:$0xff]
        %v575 = vld [vmem:[%s162 + $0xbd0] sm:$0xff]
        %v576 = vld [vmem:[%s162 + $0xbd8] sm:$0xff]
        %v577 = vld [vmem:[%s162 + $0xbe0] sm:$0xff]
        %v578 = vld [vmem:[%s162 + $0xbe8] sm:$0xff]
        %v579 = vld [vmem:[%s162 + $0xbf0] sm:$0xff]
        %v580 = vld [vmem:[%s162 + $0xbf8] sm:$0xff]
        %v581 = vld [vmem:[%s162 + $0xc00] sm:$0xff]
        %v582 = vld [vmem:[%s162 + $0xc08] sm:$0xff]
        %v583 = vld [vmem:[%s162 + $0xc10] sm:$0xff]
        %v584 = vld [vmem:[%s162 + $0xc18] sm:$0xff]
        %v585 = vld [vmem:[%s162 + $0xc20] sm:$0xff]
        %v586 = vld [vmem:[%s162 + $0xc28] sm:$0xff]
        %v587 = vld [vmem:[%s162 + $0xc30] sm:$0xff]
        %v588 = vld [vmem:[%s162 + $0xc38] sm:$0xff]
        %v589 = vld [vmem:[%s162 + $0xc40] sm:$0xff]
        %v590 = vld [vmem:[%s162 + $0xc48] sm:$0xff]
        %v591 = vld [vmem:[%s162 + $0xc50] sm:$0xff]
        %v592 = vld [vmem:[%s162 + $0xc58] sm:$0xff]
        %v593 = vld [vmem:[%s162 + $0xc60] sm:$0xff]
        %v594 = vld [vmem:[%s162 + $0xc68] sm:$0xff]
        %v595 = vld [vmem:[%s162 + $0xc70] sm:$0xff]
        %v596 = vld [vmem:[%s162 + $0xc78] sm:$0xff]
        %v597 = vld [vmem:[%s162 + $0xc80] sm:$0xff]
        %v598 = vld [vmem:[%s162 + $0xc88] sm:$0xff]
        %v599 = vld [vmem:[%s162 + $0xc90] sm:$0xff]
        %v600 = vld [vmem:[%s162 + $0xc98] sm:$0xff]
        %v601 = vld [vmem:[%s162 + $0xca0] sm:$0xff]
        %v602 = vld [vmem:[%s162 + $0xca8] sm:$0xff]
        %v603 = vld [vmem:[%s162 + $0xcb0] sm:$0xff]
        %v604 = vld [vmem:[%s162 + $0xcb8] sm:$0xff]
        %v605 = vld [vmem:[%s162 + $0xcc0] sm:$0xff]
        %v606 = vld [vmem:[%s162 + $0xcc8] sm:$0xff]
        %v607 = vld [vmem:[%s162 + $0xcd0] sm:$0xff]
        %v608 = vld [vmem:[%s162 + $0xcd8] sm:$0xff]
        %v609 = vld [vmem:[%s162 + $0xce0] sm:$0xff]
        %v610 = vld [vmem:[%s162 + $0xce8] sm:$0xff]
        %v611 = vld [vmem:[%s162 + $0xcf0] sm:$0xff]
        %v612 = vld [vmem:[%s162 + $0xcf8] sm:$0xff]
        %v613 = vld [vmem:[%s162 + $0xd00] sm:$0xff]
        %v614 = vld [vmem:[%s162 + $0xd08] sm:$0xff]
        %v615 = vld [vmem:[%s162 + $0xd10] sm:$0xff]
        %v616 = vld [vmem:[%s162 + $0xd18] sm:$0xff]
        %v617 = vld [vmem:[%s162 + $0xd20] sm:$0xff]
        %v618 = vld [vmem:[%s162 + $0xd28] sm:$0xff]
        %v619 = vld [vmem:[%s162 + $0xd30] sm:$0xff]
        %v620 = vld [vmem:[%s162 + $0xd38] sm:$0xff]
        %v621 = vld [vmem:[%s162 + $0xd40] sm:$0xff]
        %v622 = vld [vmem:[%s162 + $0xd48] sm:$0xff]
        %v623 = vld [vmem:[%s162 + $0xd50] sm:$0xff]
        %v624 = vld [vmem:[%s162 + $0xd58] sm:$0xff]
        %v625 = vld [vmem:[%s162 + $0xd60] sm:$0xff]
        %v626 = vld [vmem:[%s162 + $0xd68] sm:$0xff]
        %v627 = vld [vmem:[%s162 + $0xd70] sm:$0xff]
        %v628 = vld [vmem:[%s162 + $0xd78] sm:$0xff]
        %v629 = vld [vmem:[%s162 + $0xd80] sm:$0xff]
        %v630 = vld [vmem:[%s162 + $0xd88] sm:$0xff]
        %v631 = vld [vmem:[%s162 + $0xd90] sm:$0xff]
        %v632 = vld [vmem:[%s162 + $0xd98] sm:$0xff]
        %v633 = vld [vmem:[%s162 + $0xda0] sm:$0xff]
        %v634 = vld [vmem:[%s162 + $0xda8] sm:$0xff]
        %v635 = vld [vmem:[%s162 + $0xdb0] sm:$0xff]
        %v636 = vld [vmem:[%s162 + $0xdb8] sm:$0xff]
        %v637 = vld [vmem:[%s162 + $0xdc0] sm:$0xff]
        %v638 = vld [vmem:[%s162 + $0xdc8] sm:$0xff]
        %v639 = vld [vmem:[%s162 + $0xdd0] sm:$0xff]
        %v640 = vld [vmem:[%s162 + $0xdd8] sm:$0xff]
        %v641 = vld [vmem:[%s162 + $0xde0] sm:$0xff]
        %v642 = vld [vmem:[%s162 + $0xde8] sm:$0xff]
        %v643 = vld [vmem:[%s162 + $0xdf0] sm:$0xff]
        %v644 = vld [vmem:[%s162 + $0xdf8] sm:$0xff]
        %v645 = vld [vmem:[%s162 + $0xe00] sm:$0xff]
        %v646 = vld [vmem:[%s162 + $0xe08] sm:$0xff]
        %v647 = vld [vmem:[%s162 + $0xe10] sm:$0xff]
        %v648 = vld [vmem:[%s162 + $0xe18] sm:$0xff]
        %v649 = vld [vmem:[%s162 + $0xe20] sm:$0xff]
        %v650 = vld [vmem:[%s162 + $0xe28] sm:$0xff]
        %v651 = vld [vmem:[%s162 + $0xe30] sm:$0xff]
        %v652 = vld [vmem:[%s162 + $0xe38] sm:$0xff]
        %v653 = vld [vmem:[%s162 + $0xe40] sm:$0xff]
        %v654 = vld [vmem:[%s162 + $0xe48] sm:$0xff]
        %v655 = vld [vmem:[%s162 + $0xe50] sm:$0xff]
        %v656 = vld [vmem:[%s162 + $0xe58] sm:$0xff]
        %v657 = vld [vmem:[%s162 + $0xe60] sm:$0xff]
        %v658 = vld [vmem:[%s162 + $0xe68] sm:$0xff]
        %v659 = vld [vmem:[%s162 + $0xe70] sm:$0xff]
        %v660 = vld [vmem:[%s162 + $0xe78] sm:$0xff]
        %v661 = vld [vmem:[%s162 + $0xe80] sm:$0xff]
        %v662 = vld [vmem:[%s162 + $0xe88] sm:$0xff]
        %v663 = vld [vmem:[%s162 + $0xe90] sm:$0xff]
        %v664 = vld [vmem:[%s162 + $0xe98] sm:$0xff]
        %v665 = vld [vmem:[%s162 + $0xea0] sm:$0xff]
        %v666 = vld [vmem:[%s162 + $0xea8] sm:$0xff]
        %v667 = vld [vmem:[%s162 + $0xeb0] sm:$0xff]
        %v668 = vld [vmem:[%s162 + $0xeb8] sm:$0xff]
        %v669 = vld [vmem:[%s162 + $0xec0] sm:$0xff]
        %v670 = vld [vmem:[%s162 + $0xec8] sm:$0xff]
        %v671 = vld [vmem:[%s162 + $0xed0] sm:$0xff]
        %v672 = vld [vmem:[%s162 + $0xed8] sm:$0xff]
        %v673 = vld [vmem:[%s162 + $0xee0] sm:$0xff]
        %v674 = vld [vmem:[%s162 + $0xee8] sm:$0xff]
        %v675 = vld [vmem:[%s162 + $0xef0] sm:$0xff]
        %v676 = vld [vmem:[%s162 + $0xef8] sm:$0xff]
        %v677 = vld [vmem:[%s162 + $0xf00] sm:$0xff]
        %v678 = vld [vmem:[%s162 + $0xf08] sm:$0xff]
        %v679 = vld [vmem:[%s162 + $0xf10] sm:$0xff]
        %v680 = vld [vmem:[%s162 + $0xf18] sm:$0xff]
        %v681 = vld [vmem:[%s162 + $0xf20] sm:$0xff]
        %v682 = vld [vmem:[%s162 + $0xf28] sm:$0xff]
        %v683 = vld [vmem:[%s162 + $0xf30] sm:$0xff]
        %v684 = vld [vmem:[%s162 + $0xf38] sm:$0xff]
        %v685 = vld [vmem:[%s162 + $0xf40] sm:$0xff]
        %v686 = vld [vmem:[%s162 + $0xf48] sm:$0xff]
        %v687 = vld [vmem:[%s162 + $0xf50] sm:$0xff]
        %v688 = vld [vmem:[%s162 + $0xf58] sm:$0xff]
        %v689 = vld [vmem:[%s162 + $0xf60] sm:$0xff]
        %v690 = vld [vmem:[%s162 + $0xf68] sm:$0xff]
        %v691 = vld [vmem:[%s162 + $0xf70] sm:$0xff]
        %v692 = vld [vmem:[%s162 + $0xf78] sm:$0xff]
        %v693 = vld [vmem:[%s162 + $0xf80] sm:$0xff]
        %v694 = vld [vmem:[%s162 + $0xf88] sm:$0xff]
        %v695 = vld [vmem:[%s162 + $0xf90] sm:$0xff]
        %v696 = vld [vmem:[%s162 + $0xf98] sm:$0xff]
        %v697 = vld [vmem:[%s162 + $0xfa0] sm:$0xff]
        %v698 = vld [vmem:[%s162 + $0xfa8] sm:$0xff]
        %v699 = vld [vmem:[%s162 + $0xfb0] sm:$0xff]
        %v700 = vld [vmem:[%s162 + $0xfb8] sm:$0xff]
        %v701 = vld [vmem:[%s162 + $0xfc0] sm:$0xff]
        %v702 = vld [vmem:[%s162 + $0xfc8] sm:$0xff]
        %v703 = vld [vmem:[%s162 + $0xfd0] sm:$0xff]
        %v704 = vld [vmem:[%s162 + $0xfd8] sm:$0xff]
        %v705 = vld [vmem:[%s162 + $0xfe0] sm:$0xff]
        %v706 = vld [vmem:[%s162 + $0xfe8] sm:$0xff]
        %v707 = vld [vmem:[%s162 + $0xff0] sm:$0xff]
        %v708 = vld [vmem:[%s162 + $0xff8] sm:$0xff]
        %v709 = vmul.f32 %v197, 5.0
        %v710 = vmul.f32 %v198, 5.0
        %v711 = vmul.f32 %v199, 5.0
        %v712 = vmul.f32 %v200, 5.0
        %v713 = vmul.f32 %v201, 5.0
        %v714 = vmul.f32 %v202, 5.0
        %v715 = vmul.f32 %v203, 5.0
        %v716 = vmul.f32 %v204, 5.0
        %v717 = vmul.f32 %v205, 5.0
        %v718 = vmul.f32 %v206, 5.0
        %v719 = vmul.f32 %v207, 5.0
        %v720 = vmul.f32 %v208, 5.0
        %v721 = vmul.f32 %v209, 5.0
        %v722 = vmul.f32 %v210, 5.0
        %v723 = vmul.f32 %v211, 5.0
        %v724 = vmul.f32 %v212, 5.0
        %v725 = vmul.f32 %v213, 5.0
        %v726 = vmul.f32 %v214, 5.0
        %v727 = vmul.f32 %v215, 5.0
        %v728 = vmul.f32 %v216, 5.0
        %v729 = vmul.f32 %v217, 5.0
        %v730 = vmul.f32 %v218, 5.0
        %v731 = vmul.f32 %v219, 5.0
        %v732 = vmul.f32 %v220, 5.0
        %v733 = vmul.f32 %v221, 5.0
        %v734 = vmul.f32 %v222, 5.0
        %v735 = vmul.f32 %v223, 5.0
        %v736 = vmul.f32 %v224, 5.0
        %v737 = vmul.f32 %v225, 5.0
        %v738 = vmul.f32 %v226, 5.0
        %v739 = vmul.f32 %v227, 5.0
        %v740 = vmul.f32 %v228, 5.0
        %v741 = vmul.f32 %v229, 5.0
        %v742 = vmul.f32 %v230, 5.0
        %v743 = vmul.f32 %v231, 5.0
        %v744 = vmul.f32 %v232, 5.0
        %v745 = vmul.f32 %v233, 5.0
        %v746 = vmul.f32 %v234, 5.0
        %v747 = vmul.f32 %v235, 5.0
        %v748 = vmul.f32 %v236, 5.0
        %v749 = vmul.f32 %v237, 5.0
        %v750 = vmul.f32 %v238, 5.0
        %v751 = vmul.f32 %v239, 5.0
        %v752 = vmul.f32 %v240, 5.0
        %v753 = vmul.f32 %v241, 5.0
        %v754 = vmul.f32 %v242, 5.0
        %v755 = vmul.f32 %v243, 5.0
        %v756 = vmul.f32 %v244, 5.0
        %v757 = vmul.f32 %v245, 5.0
        %v758 = vmul.f32 %v246, 5.0
        %v759 = vmul.f32 %v247, 5.0
        %v760 = vmul.f32 %v248, 5.0
        %v761 = vmul.f32 %v249, 5.0
        %v762 = vmul.f32 %v250, 5.0
        %v763 = vmul.f32 %v251, 5.0
        %v764 = vmul.f32 %v252, 5.0
        %v765 = vmul.f32 %v253, 5.0
        %v766 = vmul.f32 %v254, 5.0
        %v767 = vmul.f32 %v255, 5.0
        %v768 = vmul.f32 %v256, 5.0
        %v769 = vmul.f32 %v257, 5.0
        %v770 = vmul.f32 %v258, 5.0
        %v771 = vmul.f32 %v259, 5.0
        %v772 = vmul.f32 %v260, 5.0
        %v773 = vmul.f32 %v261, 5.0
        %v774 = vmul.f32 %v262, 5.0
        %v775 = vmul.f32 %v263, 5.0
        %v776 = vmul.f32 %v264, 5.0
        %v777 = vmul.f32 %v265, 5.0
        %v778 = vmul.f32 %v266, 5.0
        %v779 = vmul.f32 %v267, 5.0
        %v780 = vmul.f32 %v268, 5.0
        %v781 = vmul.f32 %v269, 5.0
        %v782 = vmul.f32 %v270, 5.0
        %v783 = vmul.f32 %v271, 5.0
        %v784 = vmul.f32 %v272, 5.0
        %v785 = vmul.f32 %v273, 5.0
        %v786 = vmul.f32 %v274, 5.0
        %v787 = vmul.f32 %v275, 5.0
        %v788 = vmul.f32 %v276, 5.0
        %v789 = vmul.f32 %v277, 5.0
        %v790 = vmul.f32 %v278, 5.0
        %v791 = vmul.f32 %v279, 5.0
        %v792 = vmul.f32 %v280, 5.0
        %v793 = vmul.f32 %v281, 5.0
        %v794 = vmul.f32 %v282, 5.0
        %v795 = vmul.f32 %v283, 5.0
        %v796 = vmul.f32 %v284, 5.0
        %v797 = vmul.f32 %v285, 5.0
        %v798 = vmul.f32 %v286, 5.0
        %v799 = vmul.f32 %v287, 5.0
        %v800 = vmul.f32 %v288, 5.0
        %v801 = vmul.f32 %v289, 5.0
        %v802 = vmul.f32 %v290, 5.0
        %v803 = vmul.f32 %v291, 5.0
        %v804 = vmul.f32 %v292, 5.0
        %v805 = vmul.f32 %v293, 5.0
        %v806 = vmul.f32 %v294, 5.0
        %v807 = vmul.f32 %v295, 5.0
        %v808 = vmul.f32 %v296, 5.0
        %v809 = vmul.f32 %v297, 5.0
        %v810 = vmul.f32 %v298, 5.0
        %v811 = vmul.f32 %v299, 5.0
        %v812 = vmul.f32 %v300, 5.0
        %v813 = vmul.f32 %v301, 5.0
        %v814 = vmul.f32 %v302, 5.0
        %v815 = vmul.f32 %v303, 5.0
        %v816 = vmul.f32 %v304, 5.0
        %v817 = vmul.f32 %v305, 5.0
        %v818 = vmul.f32 %v306, 5.0
        %v819 = vmul.f32 %v307, 5.0
        %v820 = vmul.f32 %v308, 5.0
        %v821 = vmul.f32 %v309, 5.0
        %v822 = vmul.f32 %v310, 5.0
        %v823 = vmul.f32 %v311, 5.0
        %v824 = vmul.f32 %v312, 5.0
        %v825 = vmul.f32 %v313, 5.0
        %v826 = vmul.f32 %v314, 5.0
        %v827 = vmul.f32 %v315, 5.0
        %v828 = vmul.f32 %v316, 5.0
        %v829 = vmul.f32 %v317, 5.0
        %v830 = vmul.f32 %v318, 5.0
        %v831 = vmul.f32 %v319, 5.0
        %v832 = vmul.f32 %v320, 5.0
        %v833 = vmul.f32 %v321, 5.0
        %v834 = vmul.f32 %v322, 5.0
        %v835 = vmul.f32 %v323, 5.0
        %v836 = vmul.f32 %v324, 5.0
        %v837 = vmul.f32 %v325, 5.0
        %v838 = vmul.f32 %v326, 5.0
        %v839 = vmul.f32 %v327, 5.0
        %v840 = vmul.f32 %v328, 5.0
        %v841 = vmul.f32 %v329, 5.0
        %v842 = vmul.f32 %v330, 5.0
        %v843 = vmul.f32 %v331, 5.0
        %v844 = vmul.f32 %v332, 5.0
        %v845 = vmul.f32 %v333, 5.0
        %v846 = vmul.f32 %v334, 5.0
        %v847 = vmul.f32 %v335, 5.0
        %v848 = vmul.f32 %v336, 5.0
        %v849 = vmul.f32 %v337, 5.0
        %v850 = vmul.f32 %v338, 5.0
        %v851 = vmul.f32 %v339, 5.0
        %v852 = vmul.f32 %v340, 5.0
        %v853 = vmul.f32 %v341, 5.0
        %v854 = vmul.f32 %v342, 5.0
        %v855 = vmul.f32 %v343, 5.0
        %v856 = vmul.f32 %v344, 5.0
        %v857 = vmul.f32 %v345, 5.0
        %v858 = vmul.f32 %v346, 5.0
        %v859 = vmul.f32 %v347, 5.0
        %v860 = vmul.f32 %v348, 5.0
        %v861 = vmul.f32 %v349, 5.0
        %v862 = vmul.f32 %v350, 5.0
        %v863 = vmul.f32 %v351, 5.0
        %v864 = vmul.f32 %v352, 5.0
        %v865 = vmul.f32 %v353, 5.0
        %v866 = vmul.f32 %v354, 5.0
        %v867 = vmul.f32 %v355, 5.0
        %v868 = vmul.f32 %v356, 5.0
        %v869 = vmul.f32 %v357, 5.0
        %v870 = vmul.f32 %v358, 5.0
        %v871 = vmul.f32 %v359, 5.0
        %v872 = vmul.f32 %v360, 5.0
        %v873 = vmul.f32 %v361, 5.0
        %v874 = vmul.f32 %v362, 5.0
        %v875 = vmul.f32 %v363, 5.0
        %v876 = vmul.f32 %v364, 5.0
        %v877 = vmul.f32 %v365, 5.0
        %v878 = vmul.f32 %v366, 5.0
        %v879 = vmul.f32 %v367, 5.0
        %v880 = vmul.f32 %v368, 5.0
        %v881 = vmul.f32 %v369, 5.0
        %v882 = vmul.f32 %v370, 5.0
        %v883 = vmul.f32 %v371, 5.0
        %v884 = vmul.f32 %v372, 5.0
        %v885 = vmul.f32 %v373, 5.0
        %v886 = vmul.f32 %v374, 5.0
        %v887 = vmul.f32 %v375, 5.0
        %v888 = vmul.f32 %v376, 5.0
        %v889 = vmul.f32 %v377, 5.0
        %v890 = vmul.f32 %v378, 5.0
        %v891 = vmul.f32 %v379, 5.0
        %v892 = vmul.f32 %v380, 5.0
        %v893 = vmul.f32 %v381, 5.0
        %v894 = vmul.f32 %v382, 5.0
        %v895 = vmul.f32 %v383, 5.0
        %v896 = vmul.f32 %v384, 5.0
        %v897 = vmul.f32 %v385, 5.0
        %v898 = vmul.f32 %v386, 5.0
        %v899 = vmul.f32 %v387, 5.0
        %v900 = vmul.f32 %v388, 5.0
        %v901 = vmul.f32 %v389, 5.0
        %v902 = vmul.f32 %v390, 5.0
        %v903 = vmul.f32 %v391, 5.0
        %v904 = vmul.f32 %v392, 5.0
        %v905 = vmul.f32 %v393, 5.0
        %v906 = vmul.f32 %v394, 5.0
        %v907 = vmul.f32 %v395, 5.0
        %v908 = vmul.f32 %v396, 5.0
        %v909 = vmul.f32 %v397, 5.0
        %v910 = vmul.f32 %v398, 5.0
        %v911 = vmul.f32 %v399, 5.0
        %v912 = vmul.f32 %v400, 5.0
        %v913 = vmul.f32 %v401, 5.0
        %v914 = vmul.f32 %v402, 5.0
        %v915 = vmul.f32 %v403, 5.0
        %v916 = vmul.f32 %v404, 5.0
        %v917 = vmul.f32 %v405, 5.0
        %v918 = vmul.f32 %v406, 5.0
        %v919 = vmul.f32 %v407, 5.0
        %v920 = vmul.f32 %v408, 5.0
        %v921 = vmul.f32 %v409, 5.0
        %v922 = vmul.f32 %v410, 5.0
        %v923 = vmul.f32 %v411, 5.0
        %v924 = vmul.f32 %v412, 5.0
        %v925 = vmul.f32 %v413, 5.0
        %v926 = vmul.f32 %v414, 5.0
        %v927 = vmul.f32 %v415, 5.0
        %v928 = vmul.f32 %v416, 5.0
        %v929 = vmul.f32 %v417, 5.0
        %v930 = vmul.f32 %v418, 5.0
        %v931 = vmul.f32 %v419, 5.0
        %v932 = vmul.f32 %v420, 5.0
        %v933 = vmul.f32 %v421, 5.0
        %v934 = vmul.f32 %v422, 5.0
        %v935 = vmul.f32 %v423, 5.0
        %v936 = vmul.f32 %v424, 5.0
        %v937 = vmul.f32 %v425, 5.0
        %v938 = vmul.f32 %v426, 5.0
        %v939 = vmul.f32 %v427, 5.0
        %v940 = vmul.f32 %v428, 5.0
        %v941 = vmul.f32 %v429, 5.0
        %v942 = vmul.f32 %v430, 5.0
        %v943 = vmul.f32 %v431, 5.0
        %v944 = vmul.f32 %v432, 5.0
        %v945 = vmul.f32 %v433, 5.0
        %v946 = vmul.f32 %v434, 5.0
        %v947 = vmul.f32 %v435, 5.0
        %v948 = vmul.f32 %v436, 5.0
        %v949 = vmul.f32 %v437, 5.0
        %v950 = vmul.f32 %v438, 5.0
        %v951 = vmul.f32 %v439, 5.0
        %v952 = vmul.f32 %v440, 5.0
        %v953 = vmul.f32 %v441, 5.0
        %v954 = vmul.f32 %v442, 5.0
        %v955 = vmul.f32 %v443, 5.0
        %v956 = vmul.f32 %v444, 5.0
        %v957 = vmul.f32 %v445, 5.0
        %v958 = vmul.f32 %v446, 5.0
        %v959 = vmul.f32 %v447, 5.0
        %v960 = vmul.f32 %v448, 5.0
        %v961 = vmul.f32 %v449, 5.0
        %v962 = vmul.f32 %v450, 5.0
        %v963 = vmul.f32 %v451, 5.0
        %v964 = vmul.f32 %v452, 5.0
        %v965 = vmul.f32 %v453, 5.0
        %v966 = vmul.f32 %v454, 5.0
        %v967 = vmul.f32 %v455, 5.0
        %v968 = vmul.f32 %v456, 5.0
        %v969 = vmul.f32 %v457, 5.0
        %v970 = vmul.f32 %v458, 5.0
        %v971 = vmul.f32 %v459, 5.0
        %v972 = vmul.f32 %v460, 5.0
        %v973 = vmul.f32 %v461, 5.0
        %v974 = vmul.f32 %v462, 5.0
        %v975 = vmul.f32 %v463, 5.0
        %v976 = vmul.f32 %v464, 5.0
        %v977 = vmul.f32 %v465, 5.0
        %v978 = vmul.f32 %v466, 5.0
        %v979 = vmul.f32 %v467, 5.0
        %v980 = vmul.f32 %v468, 5.0
        %v981 = vmul.f32 %v469, 5.0
        %v982 = vmul.f32 %v470, 5.0
        %v983 = vmul.f32 %v471, 5.0
        %v984 = vmul.f32 %v472, 5.0
        %v985 = vmul.f32 %v473, 5.0
        %v986 = vmul.f32 %v474, 5.0
        %v987 = vmul.f32 %v475, 5.0
        %v988 = vmul.f32 %v476, 5.0
        %v989 = vmul.f32 %v477, 5.0
        %v990 = vmul.f32 %v478, 5.0
        %v991 = vmul.f32 %v479, 5.0
        %v992 = vmul.f32 %v480, 5.0
        %v993 = vmul.f32 %v481, 5.0
        %v994 = vmul.f32 %v482, 5.0
        %v995 = vmul.f32 %v483, 5.0
        %v996 = vmul.f32 %v484, 5.0
        %v997 = vmul.f32 %v485, 5.0
        %v998 = vmul.f32 %v486, 5.0
        %v999 = vmul.f32 %v487, 5.0
        %v1000 = vmul.f32 %v488, 5.0
        %v1001 = vmul.f32 %v489, 5.0
        %v1002 = vmul.f32 %v490, 5.0
        %v1003 = vmul.f32 %v491, 5.0
        %v1004 = vmul.f32 %v492, 5.0
        %v1005 = vmul.f32 %v493, 5.0
        %v1006 = vmul.f32 %v494, 5.0
        %v1007 = vmul.f32 %v495, 5.0
        %v1008 = vmul.f32 %v496, 5.0
        %v1009 = vmul.f32 %v497, 5.0
        %v1010 = vmul.f32 %v498, 5.0
        %v1011 = vmul.f32 %v499, 5.0
        %v1012 = vmul.f32 %v500, 5.0
        %v1013 = vmul.f32 %v501, 5.0
        %v1014 = vmul.f32 %v502, 5.0
        %v1015 = vmul.f32 %v503, 5.0
        %v1016 = vmul.f32 %v504, 5.0
        %v1017 = vmul.f32 %v505, 5.0
        %v1018 = vmul.f32 %v506, 5.0
        %v1019 = vmul.f32 %v507, 5.0
        %v1020 = vmul.f32 %v508, 5.0
        %v1021 = vmul.f32 %v509, 5.0
        %v1022 = vmul.f32 %v510, 5.0
        %v1023 = vmul.f32 %v511, 5.0
        %v1024 = vmul.f32 %v512, 5.0
        %v1025 = vmul.f32 %v513, 5.0
        %v1026 = vmul.f32 %v514, 5.0
        %v1027 = vmul.f32 %v515, 5.0
        %v1028 = vmul.f32 %v516, 5.0
        %v1029 = vmul.f32 %v517, 5.0
        %v1030 = vmul.f32 %v518, 5.0
        %v1031 = vmul.f32 %v519, 5.0
        %v1032 = vmul.f32 %v520, 5.0
        %v1033 = vmul.f32 %v521, 5.0
        %v1034 = vmul.f32 %v522, 5.0
        %v1035 = vmul.f32 %v523, 5.0
        %v1036 = vmul.f32 %v524, 5.0
        %v1037 = vmul.f32 %v525, 5.0
        %v1038 = vmul.f32 %v526, 5.0
        %v1039 = vmul.f32 %v527, 5.0
        %v1040 = vmul.f32 %v528, 5.0
        %v1041 = vmul.f32 %v529, 5.0
        %v1042 = vmul.f32 %v530, 5.0
        %v1043 = vmul.f32 %v531, 5.0
        %v1044 = vmul.f32 %v532, 5.0
        %v1045 = vmul.f32 %v533, 5.0
        %v1046 = vmul.f32 %v534, 5.0
        %v1047 = vmul.f32 %v535, 5.0
        %v1048 = vmul.f32 %v536, 5.0
        %v1049 = vmul.f32 %v537, 5.0
        %v1050 = vmul.f32 %v538, 5.0
        %v1051 = vmul.f32 %v539, 5.0
        %v1052 = vmul.f32 %v540, 5.0
        %v1053 = vmul.f32 %v541, 5.0
        %v1054 = vmul.f32 %v542, 5.0
        %v1055 = vmul.f32 %v543, 5.0
        %v1056 = vmul.f32 %v544, 5.0
        %v1057 = vmul.f32 %v545, 5.0
        %v1058 = vmul.f32 %v546, 5.0
        %v1059 = vmul.f32 %v547, 5.0
        %v1060 = vmul.f32 %v548, 5.0
        %v1061 = vmul.f32 %v549, 5.0
        %v1062 = vmul.f32 %v550, 5.0
        %v1063 = vmul.f32 %v551, 5.0
        %v1064 = vmul.f32 %v552, 5.0
        %v1065 = vmul.f32 %v553, 5.0
        %v1066 = vmul.f32 %v554, 5.0
        %v1067 = vmul.f32 %v555, 5.0
        %v1068 = vmul.f32 %v556, 5.0
        %v1069 = vmul.f32 %v557, 5.0
        %v1070 = vmul.f32 %v558, 5.0
        %v1071 = vmul.f32 %v559, 5.0
        %v1072 = vmul.f32 %v560, 5.0
        %v1073 = vmul.f32 %v561, 5.0
        %v1074 = vmul.f32 %v562, 5.0
        %v1075 = vmul.f32 %v563, 5.0
        %v1076 = vmul.f32 %v564, 5.0
        %v1077 = vmul.f32 %v565, 5.0
        %v1078 = vmul.f32 %v566, 5.0
        %v1079 = vmul.f32 %v567, 5.0
        %v1080 = vmul.f32 %v568, 5.0
        %v1081 = vmul.f32 %v569, 5.0
        %v1082 = vmul.f32 %v570, 5.0
        %v1083 = vmul.f32 %v571, 5.0
        %v1084 = vmul.f32 %v572, 5.0
        %v1085 = vmul.f32 %v573, 5.0
        %v1086 = vmul.f32 %v574, 5.0
        %v1087 = vmul.f32 %v575, 5.0
        %v1088 = vmul.f32 %v576, 5.0
        %v1089 = vmul.f32 %v577, 5.0
        %v1090 = vmul.f32 %v578, 5.0
        %v1091 = vmul.f32 %v579, 5.0
        %v1092 = vmul.f32 %v580, 5.0
        %v1093 = vmul.f32 %v581, 5.0
        %v1094 = vmul.f32 %v582, 5.0
        %v1095 = vmul.f32 %v583, 5.0
        %v1096 = vmul.f32 %v584, 5.0
        %v1097 = vmul.f32 %v585, 5.0
        %v1098 = vmul.f32 %v586, 5.0
        %v1099 = vmul.f32 %v587, 5.0
        %v1100 = vmul.f32 %v588, 5.0
        %v1101 = vmul.f32 %v589, 5.0
        %v1102 = vmul.f32 %v590, 5.0
        %v1103 = vmul.f32 %v591, 5.0
        %v1104 = vmul.f32 %v592, 5.0
        %v1105 = vmul.f32 %v593, 5.0
        %v1106 = vmul.f32 %v594, 5.0
        %v1107 = vmul.f32 %v595, 5.0
        %v1108 = vmul.f32 %v596, 5.0
        %v1109 = vmul.f32 %v597, 5.0
        %v1110 = vmul.f32 %v598, 5.0
        %v1111 = vmul.f32 %v599, 5.0
        %v1112 = vmul.f32 %v600, 5.0
        %v1113 = vmul.f32 %v601, 5.0
        %v1114 = vmul.f32 %v602, 5.0
        %v1115 = vmul.f32 %v603, 5.0
        %v1116 = vmul.f32 %v604, 5.0
        %v1117 = vmul.f32 %v605, 5.0
        %v1118 = vmul.f32 %v606, 5.0
        %v1119 = vmul.f32 %v607, 5.0
        %v1120 = vmul.f32 %v608, 5.0
        %v1121 = vmul.f32 %v609, 5.0
        %v1122 = vmul.f32 %v610, 5.0
        %v1123 = vmul.f32 %v611, 5.0
        %v1124 = vmul.f32 %v612, 5.0
        %v1125 = vmul.f32 %v613, 5.0
        %v1126 = vmul.f32 %v614, 5.0
        %v1127 = vmul.f32 %v615, 5.0
        %v1128 = vmul.f32 %v616, 5.0
        %v1129 = vmul.f32 %v617, 5.0
        %v1130 = vmul.f32 %v618, 5.0
        %v1131 = vmul.f32 %v619, 5.0
        %v1132 = vmul.f32 %v620, 5.0
        %v1133 = vmul.f32 %v621, 5.0
        %v1134 = vmul.f32 %v622, 5.0
        %v1135 = vmul.f32 %v623, 5.0
        %v1136 = vmul.f32 %v624, 5.0
        %v1137 = vmul.f32 %v625, 5.0
        %v1138 = vmul.f32 %v626, 5.0
        %v1139 = vmul.f32 %v627, 5.0
        %v1140 = vmul.f32 %v628, 5.0
        %v1141 = vmul.f32 %v629, 5.0
        %v1142 = vmul.f32 %v630, 5.0
        %v1143 = vmul.f32 %v631, 5.0
        %v1144 = vmul.f32 %v632, 5.0
        %v1145 = vmul.f32 %v633, 5.0
        %v1146 = vmul.f32 %v634, 5.0
        %v1147 = vmul.f32 %v635, 5.0
        %v1148 = vmul.f32 %v636, 5.0
        %v1149 = vmul.f32 %v637, 5.0
        %v1150 = vmul.f32 %v638, 5.0
        %v1151 = vmul.f32 %v639, 5.0
        %v1152 = vmul.f32 %v640, 5.0
        %v1153 = vmul.f32 %v641, 5.0
        %v1154 = vmul.f32 %v642, 5.0
        %v1155 = vmul.f32 %v643, 5.0
        %v1156 = vmul.f32 %v644, 5.0
        %v1157 = vmul.f32 %v645, 5.0
        %v1158 = vmul.f32 %v646, 5.0
        %v1159 = vmul.f32 %v647, 5.0
        %v1160 = vmul.f32 %v648, 5.0
        %v1161 = vmul.f32 %v649, 5.0
        %v1162 = vmul.f32 %v650, 5.0
        %v1163 = vmul.f32 %v651, 5.0
        %v1164 = vmul.f32 %v652, 5.0
        %v1165 = vmul.f32 %v653, 5.0
        %v1166 = vmul.f32 %v654, 5.0
        %v1167 = vmul.f32 %v655, 5.0
        %v1168 = vmul.f32 %v656, 5.0
        %v1169 = vmul.f32 %v657, 5.0
        %v1170 = vmul.f32 %v658, 5.0
        %v1171 = vmul.f32 %v659, 5.0
        %v1172 = vmul.f32 %v660, 5.0
        %v1173 = vmul.f32 %v661, 5.0
        %v1174 = vmul.f32 %v662, 5.0
        %v1175 = vmul.f32 %v663, 5.0
        %v1176 = vmul.f32 %v664, 5.0
        %v1177 = vmul.f32 %v665, 5.0
        %v1178 = vmul.f32 %v666, 5.0
        %v1179 = vmul.f32 %v667, 5.0
        %v1180 = vmul.f32 %v668, 5.0
        %v1181 = vmul.f32 %v669, 5.0
        %v1182 = vmul.f32 %v670, 5.0
        %v1183 = vmul.f32 %v671, 5.0
        %v1184 = vmul.f32 %v672, 5.0
        %v1185 = vmul.f32 %v673, 5.0
        %v1186 = vmul.f32 %v674, 5.0
        %v1187 = vmul.f32 %v675, 5.0
        %v1188 = vmul.f32 %v676, 5.0
        %v1189 = vmul.f32 %v677, 5.0
        %v1190 = vmul.f32 %v678, 5.0
        %v1191 = vmul.f32 %v679, 5.0
        %v1192 = vmul.f32 %v680, 5.0
        %v1193 = vmul.f32 %v681, 5.0
        %v1194 = vmul.f32 %v682, 5.0
        %v1195 = vmul.f32 %v683, 5.0
        %v1196 = vmul.f32 %v684, 5.0
        %v1197 = vmul.f32 %v685, 5.0
        %v1198 = vmul.f32 %v686, 5.0
        %v1199 = vmul.f32 %v687, 5.0
        %v1200 = vmul.f32 %v688, 5.0
        %v1201 = vmul.f32 %v689, 5.0
        %v1202 = vmul.f32 %v690, 5.0
        %v1203 = vmul.f32 %v691, 5.0
        %v1204 = vmul.f32 %v692, 5.0
        %v1205 = vmul.f32 %v693, 5.0
        %v1206 = vmul.f32 %v694, 5.0
        %v1207 = vmul.f32 %v695, 5.0
        %v1208 = vmul.f32 %v696, 5.0
        %v1209 = vmul.f32 %v697, 5.0
        %v1210 = vmul.f32 %v698, 5.0
        %v1211 = vmul.f32 %v699, 5.0
        %v1212 = vmul.f32 %v700, 5.0
        %v1213 = vmul.f32 %v701, 5.0
        %v1214 = vmul.f32 %v702, 5.0
        %v1215 = vmul.f32 %v703, 5.0
        %v1216 = vmul.f32 %v704, 5.0
        %v1217 = vmul.f32 %v705, 5.0
        %v1218 = vmul.f32 %v706, 5.0
        %v1219 = vmul.f32 %v707, 5.0
        %v1220 = vmul.f32 %v708, 5.0
        %v1221 = vstv %s195
        %v1222 = vsub.f32 %v709, %v1221
        %v1223 = vsub.f32 %v710, %v1221
        %v1224 = vsub.f32 %v711, %v1221
        %v1225 = vsub.f32 %v712, %v1221
        %v1226 = vsub.f32 %v713, %v1221
        %v1227 = vsub.f32 %v714, %v1221
        %v1228 = vsub.f32 %v715, %v1221
        %v1229 = vsub.f32 %v716, %v1221
        %v1230 = vsub.f32 %v717, %v1221
        %v1231 = vsub.f32 %v718, %v1221
        %v1232 = vsub.f32 %v719, %v1221
        %v1233 = vsub.f32 %v720, %v1221
        %v1234 = vsub.f32 %v721, %v1221
        %v1235 = vsub.f32 %v722, %v1221
        %v1236 = vsub.f32 %v723, %v1221
        %v1237 = vsub.f32 %v724, %v1221
        %v1238 = vsub.f32 %v725, %v1221
        %v1239 = vsub.f32 %v726, %v1221
        %v1240 = vsub.f32 %v727, %v1221
        %v1241 = vsub.f32 %v728, %v1221
        %v1242 = vsub.f32 %v729, %v1221
        %v1243 = vsub.f32 %v730, %v1221
        %v1244 = vsub.f32 %v731, %v1221
        %v1245 = vsub.f32 %v732, %v1221
        %v1246 = vsub.f32 %v733, %v1221
        %v1247 = vsub.f32 %v734, %v1221
        %v1248 = vsub.f32 %v735, %v1221
        %v1249 = vsub.f32 %v736, %v1221
        %v1250 = vsub.f32 %v737, %v1221
        %v1251 = vsub.f32 %v738, %v1221
        %v1252 = vsub.f32 %v739, %v1221
        %v1253 = vsub.f32 %v740, %v1221
        %v1254 = vsub.f32 %v741, %v1221
        %v1255 = vsub.f32 %v742, %v1221
        %v1256 = vsub.f32 %v743, %v1221
        %v1257 = vsub.f32 %v744, %v1221
        %v1258 = vsub.f32 %v745, %v1221
        %v1259 = vsub.f32 %v746, %v1221
        %v1260 = vsub.f32 %v747, %v1221
        %v1261 = vsub.f32 %v748, %v1221
        %v1262 = vsub.f32 %v749, %v1221
        %v1263 = vsub.f32 %v750, %v1221
        %v1264 = vsub.f32 %v751, %v1221
        %v1265 = vsub.f32 %v752, %v1221
        %v1266 = vsub.f32 %v753, %v1221
        %v1267 = vsub.f32 %v754, %v1221
        %v1268 = vsub.f32 %v755, %v1221
        %v1269 = vsub.f32 %v756, %v1221
        %v1270 = vsub.f32 %v757, %v1221
        %v1271 = vsub.f32 %v758, %v1221
        %v1272 = vsub.f32 %v759, %v1221
        %v1273 = vsub.f32 %v760, %v1221
        %v1274 = vsub.f32 %v761, %v1221
        %v1275 = vsub.f32 %v762, %v1221
        %v1276 = vsub.f32 %v763, %v1221
        %v1277 = vsub.f32 %v764, %v1221
        %v1278 = vsub.f32 %v765, %v1221
        %v1279 = vsub.f32 %v766, %v1221
        %v1280 = vsub.f32 %v767, %v1221
        %v1281 = vsub.f32 %v768, %v1221
        %v1282 = vsub.f32 %v769, %v1221
        %v1283 = vsub.f32 %v770, %v1221
        %v1284 = vsub.f32 %v771, %v1221
        %v1285 = vsub.f32 %v772, %v1221
        %v1286 = vsub.f32 %v773, %v1221
        %v1287 = vsub.f32 %v774, %v1221
        %v1288 = vsub.f32 %v775, %v1221
        %v1289 = vsub.f32 %v776, %v1221
        %v1290 = vsub.f32 %v777, %v1221
        %v1291 = vsub.f32 %v778, %v1221
        %v1292 = vsub.f32 %v779, %v1221
        %v1293 = vsub.f32 %v780, %v1221
        %v1294 = vsub.f32 %v781, %v1221
        %v1295 = vsub.f32 %v782, %v1221
        %v1296 = vsub.f32 %v783, %v1221
        %v1297 = vsub.f32 %v784, %v1221
        %v1298 = vsub.f32 %v785, %v1221
        %v1299 = vsub.f32 %v786, %v1221
        %v1300 = vsub.f32 %v787, %v1221
        %v1301 = vsub.f32 %v788, %v1221
        %v1302 = vsub.f32 %v789, %v1221
        %v1303 = vsub.f32 %v790, %v1221
        %v1304 = vsub.f32 %v791, %v1221
        %v1305 = vsub.f32 %v792, %v1221
        %v1306 = vsub.f32 %v793, %v1221
        %v1307 = vsub.f32 %v794, %v1221
        %v1308 = vsub.f32 %v795, %v1221
        %v1309 = vsub.f32 %v796, %v1221
        %v1310 = vsub.f32 %v797, %v1221
        %v1311 = vsub.f32 %v798, %v1221
        %v1312 = vsub.f32 %v799, %v1221
        %v1313 = vsub.f32 %v800, %v1221
        %v1314 = vsub.f32 %v801, %v1221
        %v1315 = vsub.f32 %v802, %v1221
        %v1316 = vsub.f32 %v803, %v1221
        %v1317 = vsub.f32 %v804, %v1221
        %v1318 = vsub.f32 %v805, %v1221
        %v1319 = vsub.f32 %v806, %v1221
        %v1320 = vsub.f32 %v807, %v1221
        %v1321 = vsub.f32 %v808, %v1221
        %v1322 = vsub.f32 %v809, %v1221
        %v1323 = vsub.f32 %v810, %v1221
        %v1324 = vsub.f32 %v811, %v1221
        %v1325 = vsub.f32 %v812, %v1221
        %v1326 = vsub.f32 %v813, %v1221
        %v1327 = vsub.f32 %v814, %v1221
        %v1328 = vsub.f32 %v815, %v1221
        %v1329 = vsub.f32 %v816, %v1221
        %v1330 = vsub.f32 %v817, %v1221
        %v1331 = vsub.f32 %v818, %v1221
        %v1332 = vsub.f32 %v819, %v1221
        %v1333 = vsub.f32 %v820, %v1221
        %v1334 = vsub.f32 %v821, %v1221
        %v1335 = vsub.f32 %v822, %v1221
        %v1336 = vsub.f32 %v823, %v1221
        %v1337 = vsub.f32 %v824, %v1221
        %v1338 = vsub.f32 %v825, %v1221
        %v1339 = vsub.f32 %v826, %v1221
        %v1340 = vsub.f32 %v827, %v1221
        %v1341 = vsub.f32 %v828, %v1221
        %v1342 = vsub.f32 %v829, %v1221
        %v1343 = vsub.f32 %v830, %v1221
        %v1344 = vsub.f32 %v831, %v1221
        %v1345 = vsub.f32 %v832, %v1221
        %v1346 = vsub.f32 %v833, %v1221
        %v1347 = vsub.f32 %v834, %v1221
        %v1348 = vsub.f32 %v835, %v1221
        %v1349 = vsub.f32 %v836, %v1221
        %v1350 = vsub.f32 %v837, %v1221
        %v1351 = vsub.f32 %v838, %v1221
        %v1352 = vsub.f32 %v839, %v1221
        %v1353 = vsub.f32 %v840, %v1221
        %v1354 = vsub.f32 %v841, %v1221
        %v1355 = vsub.f32 %v842, %v1221
        %v1356 = vsub.f32 %v843, %v1221
        %v1357 = vsub.f32 %v844, %v1221
        %v1358 = vsub.f32 %v845, %v1221
        %v1359 = vsub.f32 %v846, %v1221
        %v1360 = vsub.f32 %v847, %v1221
        %v1361 = vsub.f32 %v848, %v1221
        %v1362 = vsub.f32 %v849, %v1221
        %v1363 = vsub.f32 %v850, %v1221
        %v1364 = vsub.f32 %v851, %v1221
        %v1365 = vsub.f32 %v852, %v1221
        %v1366 = vsub.f32 %v853, %v1221
        %v1367 = vsub.f32 %v854, %v1221
        %v1368 = vsub.f32 %v855, %v1221
        %v1369 = vsub.f32 %v856, %v1221
        %v1370 = vsub.f32 %v857, %v1221
        %v1371 = vsub.f32 %v858, %v1221
        %v1372 = vsub.f32 %v859, %v1221
        %v1373 = vsub.f32 %v860, %v1221
        %v1374 = vsub.f32 %v861, %v1221
        %v1375 = vsub.f32 %v862, %v1221
        %v1376 = vsub.f32 %v863, %v1221
        %v1377 = vsub.f32 %v864, %v1221
        %v1378 = vsub.f32 %v865, %v1221
        %v1379 = vsub.f32 %v866, %v1221
        %v1380 = vsub.f32 %v867, %v1221
        %v1381 = vsub.f32 %v868, %v1221
        %v1382 = vsub.f32 %v869, %v1221
        %v1383 = vsub.f32 %v870, %v1221
        %v1384 = vsub.f32 %v871, %v1221
        %v1385 = vsub.f32 %v872, %v1221
        %v1386 = vsub.f32 %v873, %v1221
        %v1387 = vsub.f32 %v874, %v1221
        %v1388 = vsub.f32 %v875, %v1221
        %v1389 = vsub.f32 %v876, %v1221
        %v1390 = vsub.f32 %v877, %v1221
        %v1391 = vsub.f32 %v878, %v1221
        %v1392 = vsub.f32 %v879, %v1221
        %v1393 = vsub.f32 %v880, %v1221
        %v1394 = vsub.f32 %v881, %v1221
        %v1395 = vsub.f32 %v882, %v1221
        %v1396 = vsub.f32 %v883, %v1221
        %v1397 = vsub.f32 %v884, %v1221
        %v1398 = vsub.f32 %v885, %v1221
        %v1399 = vsub.f32 %v886, %v1221
        %v1400 = vsub.f32 %v887, %v1221
        %v1401 = vsub.f32 %v888, %v1221
        %v1402 = vsub.f32 %v889, %v1221
        %v1403 = vsub.f32 %v890, %v1221
        %v1404 = vsub.f32 %v891, %v1221
        %v1405 = vsub.f32 %v892, %v1221
        %v1406 = vsub.f32 %v893, %v1221
        %v1407 = vsub.f32 %v894, %v1221
        %v1408 = vsub.f32 %v895, %v1221
        %v1409 = vsub.f32 %v896, %v1221
        %v1410 = vsub.f32 %v897, %v1221
        %v1411 = vsub.f32 %v898, %v1221
        %v1412 = vsub.f32 %v899, %v1221
        %v1413 = vsub.f32 %v900, %v1221
        %v1414 = vsub.f32 %v901, %v1221
        %v1415 = vsub.f32 %v902, %v1221
        %v1416 = vsub.f32 %v903, %v1221
        %v1417 = vsub.f32 %v904, %v1221
        %v1418 = vsub.f32 %v905, %v1221
        %v1419 = vsub.f32 %v906, %v1221
        %v1420 = vsub.f32 %v907, %v1221
        %v1421 = vsub.f32 %v908, %v1221
        %v1422 = vsub.f32 %v909, %v1221
        %v1423 = vsub.f32 %v910, %v1221
        %v1424 = vsub.f32 %v911, %v1221
        %v1425 = vsub.f32 %v912, %v1221
        %v1426 = vsub.f32 %v913, %v1221
        %v1427 = vsub.f32 %v914, %v1221
        %v1428 = vsub.f32 %v915, %v1221
        %v1429 = vsub.f32 %v916, %v1221
        %v1430 = vsub.f32 %v917, %v1221
        %v1431 = vsub.f32 %v918, %v1221
        %v1432 = vsub.f32 %v919, %v1221
        %v1433 = vsub.f32 %v920, %v1221
        %v1434 = vsub.f32 %v921, %v1221
        %v1435 = vsub.f32 %v922, %v1221
        %v1436 = vsub.f32 %v923, %v1221
        %v1437 = vsub.f32 %v924, %v1221
        %v1438 = vsub.f32 %v925, %v1221
        %v1439 = vsub.f32 %v926, %v1221
        %v1440 = vsub.f32 %v927, %v1221
        %v1441 = vsub.f32 %v928, %v1221
        %v1442 = vsub.f32 %v929, %v1221
        %v1443 = vsub.f32 %v930, %v1221
        %v1444 = vsub.f32 %v931, %v1221
        %v1445 = vsub.f32 %v932, %v1221
        %v1446 = vsub.f32 %v933, %v1221
        %v1447 = vsub.f32 %v934, %v1221
        %v1448 = vsub.f32 %v935, %v1221
        %v1449 = vsub.f32 %v936, %v1221
        %v1450 = vsub.f32 %v937, %v1221
        %v1451 = vsub.f32 %v938, %v1221
        %v1452 = vsub.f32 %v939, %v1221
        %v1453 = vsub.f32 %v940, %v1221
        %v1454 = vsub.f32 %v941, %v1221
        %v1455 = vsub.f32 %v942, %v1221
        %v1456 = vsub.f32 %v943, %v1221
        %v1457 = vsub.f32 %v944, %v1221
        %v1458 = vsub.f32 %v945, %v1221
        %v1459 = vsub.f32 %v946, %v1221
        %v1460 = vsub.f32 %v947, %v1221
        %v1461 = vsub.f32 %v948, %v1221
        %v1462 = vsub.f32 %v949, %v1221
        %v1463 = vsub.f32 %v950, %v1221
        %v1464 = vsub.f32 %v951, %v1221
        %v1465 = vsub.f32 %v952, %v1221
        %v1466 = vsub.f32 %v953, %v1221
        %v1467 = vsub.f32 %v954, %v1221
        %v1468 = vsub.f32 %v955, %v1221
        %v1469 = vsub.f32 %v956, %v1221
        %v1470 = vsub.f32 %v957, %v1221
        %v1471 = vsub.f32 %v958, %v1221
        %v1472 = vsub.f32 %v959, %v1221
        %v1473 = vsub.f32 %v960, %v1221
        %v1474 = vsub.f32 %v961, %v1221
        %v1475 = vsub.f32 %v962, %v1221
        %v1476 = vsub.f32 %v963, %v1221
        %v1477 = vsub.f32 %v964, %v1221
        %v1478 = vsub.f32 %v965, %v1221
        %v1479 = vsub.f32 %v966, %v1221
        %v1480 = vsub.f32 %v967, %v1221
        %v1481 = vsub.f32 %v968, %v1221
        %v1482 = vsub.f32 %v969, %v1221
        %v1483 = vsub.f32 %v970, %v1221
        %v1484 = vsub.f32 %v971, %v1221
        %v1485 = vsub.f32 %v972, %v1221
        %v1486 = vsub.f32 %v973, %v1221
        %v1487 = vsub.f32 %v974, %v1221
        %v1488 = vsub.f32 %v975, %v1221
        %v1489 = vsub.f32 %v976, %v1221
        %v1490 = vsub.f32 %v977, %v1221
        %v1491 = vsub.f32 %v978, %v1221
        %v1492 = vsub.f32 %v979, %v1221
        %v1493 = vsub.f32 %v980, %v1221
        %v1494 = vsub.f32 %v981, %v1221
        %v1495 = vsub.f32 %v982, %v1221
        %v1496 = vsub.f32 %v983, %v1221
        %v1497 = vsub.f32 %v984, %v1221
        %v1498 = vsub.f32 %v985, %v1221
        %v1499 = vsub.f32 %v986, %v1221
        %v1500 = vsub.f32 %v987, %v1221
        %v1501 = vsub.f32 %v988, %v1221
        %v1502 = vsub.f32 %v989, %v1221
        %v1503 = vsub.f32 %v990, %v1221
        %v1504 = vsub.f32 %v991, %v1221
        %v1505 = vsub.f32 %v992, %v1221
        %v1506 = vsub.f32 %v993, %v1221
        %v1507 = vsub.f32 %v994, %v1221
        %v1508 = vsub.f32 %v995, %v1221
        %v1509 = vsub.f32 %v996, %v1221
        %v1510 = vsub.f32 %v997, %v1221
        %v1511 = vsub.f32 %v998, %v1221
        %v1512 = vsub.f32 %v999, %v1221
        %v1513 = vsub.f32 %v1000, %v1221
        %v1514 = vsub.f32 %v1001, %v1221
        %v1515 = vsub.f32 %v1002, %v1221
        %v1516 = vsub.f32 %v1003, %v1221
        %v1517 = vsub.f32 %v1004, %v1221
        %v1518 = vsub.f32 %v1005, %v1221
        %v1519 = vsub.f32 %v1006, %v1221
        %v1520 = vsub.f32 %v1007, %v1221
        %v1521 = vsub.f32 %v1008, %v1221
        %v1522 = vsub.f32 %v1009, %v1221
        %v1523 = vsub.f32 %v1010, %v1221
        %v1524 = vsub.f32 %v1011, %v1221
        %v1525 = vsub.f32 %v1012, %v1221
        %v1526 = vsub.f32 %v1013, %v1221
        %v1527 = vsub.f32 %v1014, %v1221
        %v1528 = vsub.f32 %v1015, %v1221
        %v1529 = vsub.f32 %v1016, %v1221
        %v1530 = vsub.f32 %v1017, %v1221
        %v1531 = vsub.f32 %v1018, %v1221
        %v1532 = vsub.f32 %v1019, %v1221
        %v1533 = vsub.f32 %v1020, %v1221
        %v1534 = vsub.f32 %v1021, %v1221
        %v1535 = vsub.f32 %v1022, %v1221
        %v1536 = vsub.f32 %v1023, %v1221
        %v1537 = vsub.f32 %v1024, %v1221
        %v1538 = vsub.f32 %v1025, %v1221
        %v1539 = vsub.f32 %v1026, %v1221
        %v1540 = vsub.f32 %v1027, %v1221
        %v1541 = vsub.f32 %v1028, %v1221
        %v1542 = vsub.f32 %v1029, %v1221
        %v1543 = vsub.f32 %v1030, %v1221
        %v1544 = vsub.f32 %v1031, %v1221
        %v1545 = vsub.f32 %v1032, %v1221
        %v1546 = vsub.f32 %v1033, %v1221
        %v1547 = vsub.f32 %v1034, %v1221
        %v1548 = vsub.f32 %v1035, %v1221
        %v1549 = vsub.f32 %v1036, %v1221
        %v1550 = vsub.f32 %v1037, %v1221
        %v1551 = vsub.f32 %v1038, %v1221
        %v1552 = vsub.f32 %v1039, %v1221
        %v1553 = vsub.f32 %v1040, %v1221
        %v1554 = vsub.f32 %v1041, %v1221
        %v1555 = vsub.f32 %v1042, %v1221
        %v1556 = vsub.f32 %v1043, %v1221
        %v1557 = vsub.f32 %v1044, %v1221
        %v1558 = vsub.f32 %v1045, %v1221
        %v1559 = vsub.f32 %v1046, %v1221
        %v1560 = vsub.f32 %v1047, %v1221
        %v1561 = vsub.f32 %v1048, %v1221
        %v1562 = vsub.f32 %v1049, %v1221
        %v1563 = vsub.f32 %v1050, %v1221
        %v1564 = vsub.f32 %v1051, %v1221
        %v1565 = vsub.f32 %v1052, %v1221
        %v1566 = vsub.f32 %v1053, %v1221
        %v1567 = vsub.f32 %v1054, %v1221
        %v1568 = vsub.f32 %v1055, %v1221
        %v1569 = vsub.f32 %v1056, %v1221
        %v1570 = vsub.f32 %v1057, %v1221
        %v1571 = vsub.f32 %v1058, %v1221
        %v1572 = vsub.f32 %v1059, %v1221
        %v1573 = vsub.f32 %v1060, %v1221
        %v1574 = vsub.f32 %v1061, %v1221
        %v1575 = vsub.f32 %v1062, %v1221
        %v1576 = vsub.f32 %v1063, %v1221
        %v1577 = vsub.f32 %v1064, %v1221
        %v1578 = vsub.f32 %v1065, %v1221
        %v1579 = vsub.f32 %v1066, %v1221
        %v1580 = vsub.f32 %v1067, %v1221
        %v1581 = vsub.f32 %v1068, %v1221
        %v1582 = vsub.f32 %v1069, %v1221
        %v1583 = vsub.f32 %v1070, %v1221
        %v1584 = vsub.f32 %v1071, %v1221
        %v1585 = vsub.f32 %v1072, %v1221
        %v1586 = vsub.f32 %v1073, %v1221
        %v1587 = vsub.f32 %v1074, %v1221
        %v1588 = vsub.f32 %v1075, %v1221
        %v1589 = vsub.f32 %v1076, %v1221
        %v1590 = vsub.f32 %v1077, %v1221
        %v1591 = vsub.f32 %v1078, %v1221
        %v1592 = vsub.f32 %v1079, %v1221
        %v1593 = vsub.f32 %v1080, %v1221
        %v1594 = vsub.f32 %v1081, %v1221
        %v1595 = vsub.f32 %v1082, %v1221
        %v1596 = vsub.f32 %v1083, %v1221
        %v1597 = vsub.f32 %v1084, %v1221
        %v1598 = vsub.f32 %v1085, %v1221
        %v1599 = vsub.f32 %v1086, %v1221
        %v1600 = vsub.f32 %v1087, %v1221
        %v1601 = vsub.f32 %v1088, %v1221
        %v1602 = vsub.f32 %v1089, %v1221
        %v1603 = vsub.f32 %v1090, %v1221
        %v1604 = vsub.f32 %v1091, %v1221
        %v1605 = vsub.f32 %v1092, %v1221
        %v1606 = vsub.f32 %v1093, %v1221
        %v1607 = vsub.f32 %v1094, %v1221
        %v1608 = vsub.f32 %v1095, %v1221
        %v1609 = vsub.f32 %v1096, %v1221
        %v1610 = vsub.f32 %v1097, %v1221
        %v1611 = vsub.f32 %v1098, %v1221
        %v1612 = vsub.f32 %v1099, %v1221
        %v1613 = vsub.f32 %v1100, %v1221
        %v1614 = vsub.f32 %v1101, %v1221
        %v1615 = vsub.f32 %v1102, %v1221
        %v1616 = vsub.f32 %v1103, %v1221
        %v1617 = vsub.f32 %v1104, %v1221
        %v1618 = vsub.f32 %v1105, %v1221
        %v1619 = vsub.f32 %v1106, %v1221
        %v1620 = vsub.f32 %v1107, %v1221
        %v1621 = vsub.f32 %v1108, %v1221
        %v1622 = vsub.f32 %v1109, %v1221
        %v1623 = vsub.f32 %v1110, %v1221
        %v1624 = vsub.f32 %v1111, %v1221
        %v1625 = vsub.f32 %v1112, %v1221
        %v1626 = vsub.f32 %v1113, %v1221
        %v1627 = vsub.f32 %v1114, %v1221
        %v1628 = vsub.f32 %v1115, %v1221
        %v1629 = vsub.f32 %v1116, %v1221
        %v1630 = vsub.f32 %v1117, %v1221
        %v1631 = vsub.f32 %v1118, %v1221
        %v1632 = vsub.f32 %v1119, %v1221
        %v1633 = vsub.f32 %v1120, %v1221
        %v1634 = vsub.f32 %v1121, %v1221
        %v1635 = vsub.f32 %v1122, %v1221
        %v1636 = vsub.f32 %v1123, %v1221
        %v1637 = vsub.f32 %v1124, %v1221
        %v1638 = vsub.f32 %v1125, %v1221
        %v1639 = vsub.f32 %v1126, %v1221
        %v1640 = vsub.f32 %v1127, %v1221
        %v1641 = vsub.f32 %v1128, %v1221
        %v1642 = vsub.f32 %v1129, %v1221
        %v1643 = vsub.f32 %v1130, %v1221
        %v1644 = vsub.f32 %v1131, %v1221
        %v1645 = vsub.f32 %v1132, %v1221
        %v1646 = vsub.f32 %v1133, %v1221
        %v1647 = vsub.f32 %v1134, %v1221
        %v1648 = vsub.f32 %v1135, %v1221
        %v1649 = vsub.f32 %v1136, %v1221
        %v1650 = vsub.f32 %v1137, %v1221
        %v1651 = vsub.f32 %v1138, %v1221
        %v1652 = vsub.f32 %v1139, %v1221
        %v1653 = vsub.f32 %v1140, %v1221
        %v1654 = vsub.f32 %v1141, %v1221
        %v1655 = vsub.f32 %v1142, %v1221
        %v1656 = vsub.f32 %v1143, %v1221
        %v1657 = vsub.f32 %v1144, %v1221
        %v1658 = vsub.f32 %v1145, %v1221
        %v1659 = vsub.f32 %v1146, %v1221
        %v1660 = vsub.f32 %v1147, %v1221
        %v1661 = vsub.f32 %v1148, %v1221
        %v1662 = vsub.f32 %v1149, %v1221
        %v1663 = vsub.f32 %v1150, %v1221
        %v1664 = vsub.f32 %v1151, %v1221
        %v1665 = vsub.f32 %v1152, %v1221
        %v1666 = vsub.f32 %v1153, %v1221
        %v1667 = vsub.f32 %v1154, %v1221
        %v1668 = vsub.f32 %v1155, %v1221
        %v1669 = vsub.f32 %v1156, %v1221
        %v1670 = vsub.f32 %v1157, %v1221
        %v1671 = vsub.f32 %v1158, %v1221
        %v1672 = vsub.f32 %v1159, %v1221
        %v1673 = vsub.f32 %v1160, %v1221
        %v1674 = vsub.f32 %v1161, %v1221
        %v1675 = vsub.f32 %v1162, %v1221
        %v1676 = vsub.f32 %v1163, %v1221
        %v1677 = vsub.f32 %v1164, %v1221
        %v1678 = vsub.f32 %v1165, %v1221
        %v1679 = vsub.f32 %v1166, %v1221
        %v1680 = vsub.f32 %v1167, %v1221
        %v1681 = vsub.f32 %v1168, %v1221
        %v1682 = vsub.f32 %v1169, %v1221
        %v1683 = vsub.f32 %v1170, %v1221
        %v1684 = vsub.f32 %v1171, %v1221
        %v1685 = vsub.f32 %v1172, %v1221
        %v1686 = vsub.f32 %v1173, %v1221
        %v1687 = vsub.f32 %v1174, %v1221
        %v1688 = vsub.f32 %v1175, %v1221
        %v1689 = vsub.f32 %v1176, %v1221
        %v1690 = vsub.f32 %v1177, %v1221
        %v1691 = vsub.f32 %v1178, %v1221
        %v1692 = vsub.f32 %v1179, %v1221
        %v1693 = vsub.f32 %v1180, %v1221
        %v1694 = vsub.f32 %v1181, %v1221
        %v1695 = vsub.f32 %v1182, %v1221
        %v1696 = vsub.f32 %v1183, %v1221
        %v1697 = vsub.f32 %v1184, %v1221
        %v1698 = vsub.f32 %v1185, %v1221
        %v1699 = vsub.f32 %v1186, %v1221
        %v1700 = vsub.f32 %v1187, %v1221
        %v1701 = vsub.f32 %v1188, %v1221
        %v1702 = vsub.f32 %v1189, %v1221
        %v1703 = vsub.f32 %v1190, %v1221
        %v1704 = vsub.f32 %v1191, %v1221
        %v1705 = vsub.f32 %v1192, %v1221
        %v1706 = vsub.f32 %v1193, %v1221
        %v1707 = vsub.f32 %v1194, %v1221
        %v1708 = vsub.f32 %v1195, %v1221
        %v1709 = vsub.f32 %v1196, %v1221
        %v1710 = vsub.f32 %v1197, %v1221
        %v1711 = vsub.f32 %v1198, %v1221
        %v1712 = vsub.f32 %v1199, %v1221
        %v1713 = vsub.f32 %v1200, %v1221
        %v1714 = vsub.f32 %v1201, %v1221
        %v1715 = vsub.f32 %v1202, %v1221
        %v1716 = vsub.f32 %v1203, %v1221
        %v1717 = vsub.f32 %v1204, %v1221
        %v1718 = vsub.f32 %v1205, %v1221
        %v1719 = vsub.f32 %v1206, %v1221
        %v1720 = vsub.f32 %v1207, %v1221
        %v1721 = vsub.f32 %v1208, %v1221
        %v1722 = vsub.f32 %v1209, %v1221
        %v1723 = vsub.f32 %v1210, %v1221
        %v1724 = vsub.f32 %v1211, %v1221
        %v1725 = vsub.f32 %v1212, %v1221
        %v1726 = vsub.f32 %v1213, %v1221
        %v1727 = vsub.f32 %v1214, %v1221
        %v1728 = vsub.f32 %v1215, %v1221
        %v1729 = vsub.f32 %v1216, %v1221
        %v1730 = vsub.f32 %v1217, %v1221
        %v1731 = vsub.f32 %v1218, %v1221
        %v1732 = vsub.f32 %v1219, %v1221
        %v1733 = vsub.f32 %v1220, %v1221
        %v1734 = vtanh.pop %v1222
        %v1735 = vtanh.pop %v1223
        %v1736 = vtanh.pop %v1224
        %v1737 = vtanh.pop %v1225
        %v1738 = vtanh.pop %v1226
        %v1739 = vtanh.pop %v1227
        %v1740 = vtanh.pop %v1228
        %v1741 = vtanh.pop %v1229
        %v1742 = vtanh.pop %v1230
        %v1743 = vtanh.pop %v1231
        %v1744 = vtanh.pop %v1232
        %v1745 = vtanh.pop %v1233
        %v1746 = vtanh.pop %v1234
        %v1747 = vtanh.pop %v1235
        %v1748 = vtanh.pop %v1236
        %v1749 = vtanh.pop %v1237
        %v1750 = vtanh.pop %v1238
        %v1751 = vtanh.pop %v1239
        %v1752 = vtanh.pop %v1240
        %v1753 = vtanh.pop %v1241
        %v1754 = vtanh.pop %v1242
        %v1755 = vtanh.pop %v1243
        %v1756 = vtanh.pop %v1244
        %v1757 = vtanh.pop %v1245
        %v1758 = vtanh.pop %v1246
        %v1759 = vtanh.pop %v1247
        %v1760 = vtanh.pop %v1248
        %v1761 = vtanh.pop %v1249
        %v1762 = vtanh.pop %v1250
        %v1763 = vtanh.pop %v1251
        %v1764 = vtanh.pop %v1252
        %v1765 = vtanh.pop %v1253
        %v1766 = vtanh.pop %v1254
        %v1767 = vtanh.pop %v1255
        %v1768 = vtanh.pop %v1256
        %v1769 = vtanh.pop %v1257
        %v1770 = vtanh.pop %v1258
        %v1771 = vtanh.pop %v1259
        %v1772 = vtanh.pop %v1260
        %v1773 = vtanh.pop %v1261
        %v1774 = vtanh.pop %v1262
        %v1775 = vtanh.pop %v1263
        %v1776 = vtanh.pop %v1264
        %v1777 = vtanh.pop %v1265
        %v1778 = vtanh.pop %v1266
        %v1779 = vtanh.pop %v1267
        %v1780 = vtanh.pop %v1268
        %v1781 = vtanh.pop %v1269
        %v1782 = vtanh.pop %v1270
        %v1783 = vtanh.pop %v1271
        %v1784 = vtanh.pop %v1272
        %v1785 = vtanh.pop %v1273
        %v1786 = vtanh.pop %v1274
        %v1787 = vtanh.pop %v1275
        %v1788 = vtanh.pop %v1276
        %v1789 = vtanh.pop %v1277
        %v1790 = vtanh.pop %v1278
        %v1791 = vtanh.pop %v1279
        %v1792 = vtanh.pop %v1280
        %v1793 = vtanh.pop %v1281
        %v1794 = vtanh.pop %v1282
        %v1795 = vtanh.pop %v1283
        %v1796 = vtanh.pop %v1284
        %v1797 = vtanh.pop %v1285
        %v1798 = vtanh.pop %v1286
        %v1799 = vtanh.pop %v1287
        %v1800 = vtanh.pop %v1288
        %v1801 = vtanh.pop %v1289
        %v1802 = vtanh.pop %v1290
        %v1803 = vtanh.pop %v1291
        %v1804 = vtanh.pop %v1292
        %v1805 = vtanh.pop %v1293
        %v1806 = vtanh.pop %v1294
        %v1807 = vtanh.pop %v1295
        %v1808 = vtanh.pop %v1296
        %v1809 = vtanh.pop %v1297
        %v1810 = vtanh.pop %v1298
        %v1811 = vtanh.pop %v1299
        %v1812 = vtanh.pop %v1300
        %v1813 = vtanh.pop %v1301
        %v1814 = vtanh.pop %v1302
        %v1815 = vtanh.pop %v1303
        %v1816 = vtanh.pop %v1304
        %v1817 = vtanh.pop %v1305
        %v1818 = vtanh.pop %v1306
        %v1819 = vtanh.pop %v1307
        %v1820 = vtanh.pop %v1308
        %v1821 = vtanh.pop %v1309
        %v1822 = vtanh.pop %v1310
        %v1823 = vtanh.pop %v1311
        %v1824 = vtanh.pop %v1312
        %v1825 = vtanh.pop %v1313
        %v1826 = vtanh.pop %v1314
        %v1827 = vtanh.pop %v1315
        %v1828 = vtanh.pop %v1316
        %v1829 = vtanh.pop %v1317
        %v1830 = vtanh.pop %v1318
        %v1831 = vtanh.pop %v1319
        %v1832 = vtanh.pop %v1320
        %v1833 = vtanh.pop %v1321
        %v1834 = vtanh.pop %v1322
        %v1835 = vtanh.pop %v1323
        %v1836 = vtanh.pop %v1324
        %v1837 = vtanh.pop %v1325
        %v1838 = vtanh.pop %v1326
        %v1839 = vtanh.pop %v1327
        %v1840 = vtanh.pop %v1328
        %v1841 = vtanh.pop %v1329
        %v1842 = vtanh.pop %v1330
        %v1843 = vtanh.pop %v1331
        %v1844 = vtanh.pop %v1332
        %v1845 = vtanh.pop %v1333
        %v1846 = vtanh.pop %v1334
        %v1847 = vtanh.pop %v1335
        %v1848 = vtanh.pop %v1336
        %v1849 = vtanh.pop %v1337
        %v1850 = vtanh.pop %v1338
        %v1851 = vtanh.pop %v1339
        %v1852 = vtanh.pop %v1340
        %v1853 = vtanh.pop %v1341
        %v1854 = vtanh.pop %v1342
        %v1855 = vtanh.pop %v1343
        %v1856 = vtanh.pop %v1344
        %v1857 = vtanh.pop %v1345
        %v1858 = vtanh.pop %v1346
        %v1859 = vtanh.pop %v1347
        %v1860 = vtanh.pop %v1348
        %v1861 = vtanh.pop %v1349
        %v1862 = vtanh.pop %v1350
        %v1863 = vtanh.pop %v1351
        %v1864 = vtanh.pop %v1352
        %v1865 = vtanh.pop %v1353
        %v1866 = vtanh.pop %v1354
        %v1867 = vtanh.pop %v1355
        %v1868 = vtanh.pop %v1356
        %v1869 = vtanh.pop %v1357
        %v1870 = vtanh.pop %v1358
        %v1871 = vtanh.pop %v1359
        %v1872 = vtanh.pop %v1360
        %v1873 = vtanh.pop %v1361
        %v1874 = vtanh.pop %v1362
        %v1875 = vtanh.pop %v1363
        %v1876 = vtanh.pop %v1364
        %v1877 = vtanh.pop %v1365
        %v1878 = vtanh.pop %v1366
        %v1879 = vtanh.pop %v1367
        %v1880 = vtanh.pop %v1368
        %v1881 = vtanh.pop %v1369
        %v1882 = vtanh.pop %v1370
        %v1883 = vtanh.pop %v1371
        %v1884 = vtanh.pop %v1372
        %v1885 = vtanh.pop %v1373
        %v1886 = vtanh.pop %v1374
        %v1887 = vtanh.pop %v1375
        %v1888 = vtanh.pop %v1376
        %v1889 = vtanh.pop %v1377
        %v1890 = vtanh.pop %v1378
        %v1891 = vtanh.pop %v1379
        %v1892 = vtanh.pop %v1380
        %v1893 = vtanh.pop %v1381
        %v1894 = vtanh.pop %v1382
        %v1895 = vtanh.pop %v1383
        %v1896 = vtanh.pop %v1384
        %v1897 = vtanh.pop %v1385
        %v1898 = vtanh.pop %v1386
        %v1899 = vtanh.pop %v1387
        %v1900 = vtanh.pop %v1388
        %v1901 = vtanh.pop %v1389
        %v1902 = vtanh.pop %v1390
        %v1903 = vtanh.pop %v1391
        %v1904 = vtanh.pop %v1392
        %v1905 = vtanh.pop %v1393
        %v1906 = vtanh.pop %v1394
        %v1907 = vtanh.pop %v1395
        %v1908 = vtanh.pop %v1396
        %v1909 = vtanh.pop %v1397
        %v1910 = vtanh.pop %v1398
        %v1911 = vtanh.pop %v1399
        %v1912 = vtanh.pop %v1400
        %v1913 = vtanh.pop %v1401
        %v1914 = vtanh.pop %v1402
        %v1915 = vtanh.pop %v1403
        %v1916 = vtanh.pop %v1404
        %v1917 = vtanh.pop %v1405
        %v1918 = vtanh.pop %v1406
        %v1919 = vtanh.pop %v1407
        %v1920 = vtanh.pop %v1408
        %v1921 = vtanh.pop %v1409
        %v1922 = vtanh.pop %v1410
        %v1923 = vtanh.pop %v1411
        %v1924 = vtanh.pop %v1412
        %v1925 = vtanh.pop %v1413
        %v1926 = vtanh.pop %v1414
        %v1927 = vtanh.pop %v1415
        %v1928 = vtanh.pop %v1416
        %v1929 = vtanh.pop %v1417
        %v1930 = vtanh.pop %v1418
        %v1931 = vtanh.pop %v1419
        %v1932 = vtanh.pop %v1420
        %v1933 = vtanh.pop %v1421
        %v1934 = vtanh.pop %v1422
        %v1935 = vtanh.pop %v1423
        %v1936 = vtanh.pop %v1424
        %v1937 = vtanh.pop %v1425
        %v1938 = vtanh.pop %v1426
        %v1939 = vtanh.pop %v1427
        %v1940 = vtanh.pop %v1428
        %v1941 = vtanh.pop %v1429
        %v1942 = vtanh.pop %v1430
        %v1943 = vtanh.pop %v1431
        %v1944 = vtanh.pop %v1432
        %v1945 = vtanh.pop %v1433
        %v1946 = vtanh.pop %v1434
        %v1947 = vtanh.pop %v1435
        %v1948 = vtanh.pop %v1436
        %v1949 = vtanh.pop %v1437
        %v1950 = vtanh.pop %v1438
        %v1951 = vtanh.pop %v1439
        %v1952 = vtanh.pop %v1440
        %v1953 = vtanh.pop %v1441
        %v1954 = vtanh.pop %v1442
        %v1955 = vtanh.pop %v1443
        %v1956 = vtanh.pop %v1444
        %v1957 = vtanh.pop %v1445
        %v1958 = vtanh.pop %v1446
        %v1959 = vtanh.pop %v1447
        %v1960 = vtanh.pop %v1448
        %v1961 = vtanh.pop %v1449
        %v1962 = vtanh.pop %v1450
        %v1963 = vtanh.pop %v1451
        %v1964 = vtanh.pop %v1452
        %v1965 = vtanh.pop %v1453
        %v1966 = vtanh.pop %v1454
        %v1967 = vtanh.pop %v1455
        %v1968 = vtanh.pop %v1456
        %v1969 = vtanh.pop %v1457
        %v1970 = vtanh.pop %v1458
        %v1971 = vtanh.pop %v1459
        %v1972 = vtanh.pop %v1460
        %v1973 = vtanh.pop %v1461
        %v1974 = vtanh.pop %v1462
        %v1975 = vtanh.pop %v1463
        %v1976 = vtanh.pop %v1464
        %v1977 = vtanh.pop %v1465
        %v1978 = vtanh.pop %v1466
        %v1979 = vtanh.pop %v1467
        %v1980 = vtanh.pop %v1468
        %v1981 = vtanh.pop %v1469
        %v1982 = vtanh.pop %v1470
        %v1983 = vtanh.pop %v1471
        %v1984 = vtanh.pop %v1472
        %v1985 = vtanh.pop %v1473
        %v1986 = vtanh.pop %v1474
        %v1987 = vtanh.pop %v1475
        %v1988 = vtanh.pop %v1476
        %v1989 = vtanh.pop %v1477
        %v1990 = vtanh.pop %v1478
        %v1991 = vtanh.pop %v1479
        %v1992 = vtanh.pop %v1480
        %v1993 = vtanh.pop %v1481
        %v1994 = vtanh.pop %v1482
        %v1995 = vtanh.pop %v1483
        %v1996 = vtanh.pop %v1484
        %v1997 = vtanh.pop %v1485
        %v1998 = vtanh.pop %v1486
        %v1999 = vtanh.pop %v1487
        %v2000 = vtanh.pop %v1488
        %v2001 = vtanh.pop %v1489
        %v2002 = vtanh.pop %v1490
        %v2003 = vtanh.pop %v1491
        %v2004 = vtanh.pop %v1492
        %v2005 = vtanh.pop %v1493
        %v2006 = vtanh.pop %v1494
        %v2007 = vtanh.pop %v1495
        %v2008 = vtanh.pop %v1496
        %v2009 = vtanh.pop %v1497
        %v2010 = vtanh.pop %v1498
        %v2011 = vtanh.pop %v1499
        %v2012 = vtanh.pop %v1500
        %v2013 = vtanh.pop %v1501
        %v2014 = vtanh.pop %v1502
        %v2015 = vtanh.pop %v1503
        %v2016 = vtanh.pop %v1504
        %v2017 = vtanh.pop %v1505
        %v2018 = vtanh.pop %v1506
        %v2019 = vtanh.pop %v1507
        %v2020 = vtanh.pop %v1508
        %v2021 = vtanh.pop %v1509
        %v2022 = vtanh.pop %v1510
        %v2023 = vtanh.pop %v1511
        %v2024 = vtanh.pop %v1512
        %v2025 = vtanh.pop %v1513
        %v2026 = vtanh.pop %v1514
        %v2027 = vtanh.pop %v1515
        %v2028 = vtanh.pop %v1516
        %v2029 = vtanh.pop %v1517
        %v2030 = vtanh.pop %v1518
        %v2031 = vtanh.pop %v1519
        %v2032 = vtanh.pop %v1520
        %v2033 = vtanh.pop %v1521
        %v2034 = vtanh.pop %v1522
        %v2035 = vtanh.pop %v1523
        %v2036 = vtanh.pop %v1524
        %v2037 = vtanh.pop %v1525
        %v2038 = vtanh.pop %v1526
        %v2039 = vtanh.pop %v1527
        %v2040 = vtanh.pop %v1528
        %v2041 = vtanh.pop %v1529
        %v2042 = vtanh.pop %v1530
        %v2043 = vtanh.pop %v1531
        %v2044 = vtanh.pop %v1532
        %v2045 = vtanh.pop %v1533
        %v2046 = vtanh.pop %v1534
        %v2047 = vtanh.pop %v1535
        %v2048 = vtanh.pop %v1536
        %v2049 = vtanh.pop %v1537
        %v2050 = vtanh.pop %v1538
        %v2051 = vtanh.pop %v1539
        %v2052 = vtanh.pop %v1540
        %v2053 = vtanh.pop %v1541
        %v2054 = vtanh.pop %v1542
        %v2055 = vtanh.pop %v1543
        %v2056 = vtanh.pop %v1544
        %v2057 = vtanh.pop %v1545
        %v2058 = vtanh.pop %v1546
        %v2059 = vtanh.pop %v1547
        %v2060 = vtanh.pop %v1548
        %v2061 = vtanh.pop %v1549
        %v2062 = vtanh.pop %v1550
        %v2063 = vtanh.pop %v1551
        %v2064 = vtanh.pop %v1552
        %v2065 = vtanh.pop %v1553
        %v2066 = vtanh.pop %v1554
        %v2067 = vtanh.pop %v1555
        %v2068 = vtanh.pop %v1556
        %v2069 = vtanh.pop %v1557
        %v2070 = vtanh.pop %v1558
        %v2071 = vtanh.pop %v1559
        %v2072 = vtanh.pop %v1560
        %v2073 = vtanh.pop %v1561
        %v2074 = vtanh.pop %v1562
        %v2075 = vtanh.pop %v1563
        %v2076 = vtanh.pop %v1564
        %v2077 = vtanh.pop %v1565
        %v2078 = vtanh.pop %v1566
        %v2079 = vtanh.pop %v1567
        %v2080 = vtanh.pop %v1568
        %v2081 = vtanh.pop %v1569
        %v2082 = vtanh.pop %v1570
        %v2083 = vtanh.pop %v1571
        %v2084 = vtanh.pop %v1572
        %v2085 = vtanh.pop %v1573
        %v2086 = vtanh.pop %v1574
        %v2087 = vtanh.pop %v1575
        %v2088 = vtanh.pop %v1576
        %v2089 = vtanh.pop %v1577
        %v2090 = vtanh.pop %v1578
        %v2091 = vtanh.pop %v1579
        %v2092 = vtanh.pop %v1580
        %v2093 = vtanh.pop %v1581
        %v2094 = vtanh.pop %v1582
        %v2095 = vtanh.pop %v1583
        %v2096 = vtanh.pop %v1584
        %v2097 = vtanh.pop %v1585
        %v2098 = vtanh.pop %v1586
        %v2099 = vtanh.pop %v1587
        %v2100 = vtanh.pop %v1588
        %v2101 = vtanh.pop %v1589
        %v2102 = vtanh.pop %v1590
        %v2103 = vtanh.pop %v1591
        %v2104 = vtanh.pop %v1592
        %v2105 = vtanh.pop %v1593
        %v2106 = vtanh.pop %v1594
        %v2107 = vtanh.pop %v1595
        %v2108 = vtanh.pop %v1596
        %v2109 = vtanh.pop %v1597
        %v2110 = vtanh.pop %v1598
        %v2111 = vtanh.pop %v1599
        %v2112 = vtanh.pop %v1600
        %v2113 = vtanh.pop %v1601
        %v2114 = vtanh.pop %v1602
        %v2115 = vtanh.pop %v1603
        %v2116 = vtanh.pop %v1604
        %v2117 = vtanh.pop %v1605
        %v2118 = vtanh.pop %v1606
        %v2119 = vtanh.pop %v1607
        %v2120 = vtanh.pop %v1608
        %v2121 = vtanh.pop %v1609
        %v2122 = vtanh.pop %v1610
        %v2123 = vtanh.pop %v1611
        %v2124 = vtanh.pop %v1612
        %v2125 = vtanh.pop %v1613
        %v2126 = vtanh.pop %v1614
        %v2127 = vtanh.pop %v1615
        %v2128 = vtanh.pop %v1616
        %v2129 = vtanh.pop %v1617
        %v2130 = vtanh.pop %v1618
        %v2131 = vtanh.pop %v1619
        %v2132 = vtanh.pop %v1620
        %v2133 = vtanh.pop %v1621
        %v2134 = vtanh.pop %v1622
        %v2135 = vtanh.pop %v1623
        %v2136 = vtanh.pop %v1624
        %v2137 = vtanh.pop %v1625
        %v2138 = vtanh.pop %v1626
        %v2139 = vtanh.pop %v1627
        %v2140 = vtanh.pop %v1628
        %v2141 = vtanh.pop %v1629
        %v2142 = vtanh.pop %v1630
        %v2143 = vtanh.pop %v1631
        %v2144 = vtanh.pop %v1632
        %v2145 = vtanh.pop %v1633
        %v2146 = vtanh.pop %v1634
        %v2147 = vtanh.pop %v1635
        %v2148 = vtanh.pop %v1636
        %v2149 = vtanh.pop %v1637
        %v2150 = vtanh.pop %v1638
        %v2151 = vtanh.pop %v1639
        %v2152 = vtanh.pop %v1640
        %v2153 = vtanh.pop %v1641
        %v2154 = vtanh.pop %v1642
        %v2155 = vtanh.pop %v1643
        %v2156 = vtanh.pop %v1644
        %v2157 = vtanh.pop %v1645
        %v2158 = vtanh.pop %v1646
        %v2159 = vtanh.pop %v1647
        %v2160 = vtanh.pop %v1648
        %v2161 = vtanh.pop %v1649
        %v2162 = vtanh.pop %v1650
        %v2163 = vtanh.pop %v1651
        %v2164 = vtanh.pop %v1652
        %v2165 = vtanh.pop %v1653
        %v2166 = vtanh.pop %v1654
        %v2167 = vtanh.pop %v1655
        %v2168 = vtanh.pop %v1656
        %v2169 = vtanh.pop %v1657
        %v2170 = vtanh.pop %v1658
        %v2171 = vtanh.pop %v1659
        %v2172 = vtanh.pop %v1660
        %v2173 = vtanh.pop %v1661
        %v2174 = vtanh.pop %v1662
        %v2175 = vtanh.pop %v1663
        %v2176 = vtanh.pop %v1664
        %v2177 = vtanh.pop %v1665
        %v2178 = vtanh.pop %v1666
        %v2179 = vtanh.pop %v1667
        %v2180 = vtanh.pop %v1668
        %v2181 = vtanh.pop %v1669
        %v2182 = vtanh.pop %v1670
        %v2183 = vtanh.pop %v1671
        %v2184 = vtanh.pop %v1672
        %v2185 = vtanh.pop %v1673
        %v2186 = vtanh.pop %v1674
        %v2187 = vtanh.pop %v1675
        %v2188 = vtanh.pop %v1676
        %v2189 = vtanh.pop %v1677
        %v2190 = vtanh.pop %v1678
        %v2191 = vtanh.pop %v1679
        %v2192 = vtanh.pop %v1680
        %v2193 = vtanh.pop %v1681
        %v2194 = vtanh.pop %v1682
        %v2195 = vtanh.pop %v1683
        %v2196 = vtanh.pop %v1684
        %v2197 = vtanh.pop %v1685
        %v2198 = vtanh.pop %v1686
        %v2199 = vtanh.pop %v1687
        %v2200 = vtanh.pop %v1688
        %v2201 = vtanh.pop %v1689
        %v2202 = vtanh.pop %v1690
        %v2203 = vtanh.pop %v1691
        %v2204 = vtanh.pop %v1692
        %v2205 = vtanh.pop %v1693
        %v2206 = vtanh.pop %v1694
        %v2207 = vtanh.pop %v1695
        %v2208 = vtanh.pop %v1696
        %v2209 = vtanh.pop %v1697
        %v2210 = vtanh.pop %v1698
        %v2211 = vtanh.pop %v1699
        %v2212 = vtanh.pop %v1700
        %v2213 = vtanh.pop %v1701
        %v2214 = vtanh.pop %v1702
        %v2215 = vtanh.pop %v1703
        %v2216 = vtanh.pop %v1704
        %v2217 = vtanh.pop %v1705
        %v2218 = vtanh.pop %v1706
        %v2219 = vtanh.pop %v1707
        %v2220 = vtanh.pop %v1708
        %v2221 = vtanh.pop %v1709
        %v2222 = vtanh.pop %v1710
        %v2223 = vtanh.pop %v1711
        %v2224 = vtanh.pop %v1712
        %v2225 = vtanh.pop %v1713
        %v2226 = vtanh.pop %v1714
        %v2227 = vtanh.pop %v1715
        %v2228 = vtanh.pop %v1716
        %v2229 = vtanh.pop %v1717
        %v2230 = vtanh.pop %v1718
        %v2231 = vtanh.pop %v1719
        %v2232 = vtanh.pop %v1720
        %v2233 = vtanh.pop %v1721
        %v2234 = vtanh.pop %v1722
        %v2235 = vtanh.pop %v1723
        %v2236 = vtanh.pop %v1724
        %v2237 = vtanh.pop %v1725
        %v2238 = vtanh.pop %v1726
        %v2239 = vtanh.pop %v1727
        %v2240 = vtanh.pop %v1728
        %v2241 = vtanh.pop %v1729
        %v2242 = vtanh.pop %v1730
        %v2243 = vtanh.pop %v1731
        %v2244 = vtanh.pop %v1732
        %v2245 = vtanh.pop %v1733
        %v2246 = vstv %s196
        %v2247 = vadd.f32 %v709, %v2246
        %v2248 = vadd.f32 %v710, %v2246
        %v2249 = vadd.f32 %v711, %v2246
        %v2250 = vadd.f32 %v712, %v2246
        %v2251 = vadd.f32 %v713, %v2246
        %v2252 = vadd.f32 %v714, %v2246
        %v2253 = vadd.f32 %v715, %v2246
        %v2254 = vadd.f32 %v716, %v2246
        %v2255 = vadd.f32 %v717, %v2246
        %v2256 = vadd.f32 %v718, %v2246
        %v2257 = vadd.f32 %v719, %v2246
        %v2258 = vadd.f32 %v720, %v2246
        %v2259 = vadd.f32 %v721, %v2246
        %v2260 = vadd.f32 %v722, %v2246
        %v2261 = vadd.f32 %v723, %v2246
        %v2262 = vadd.f32 %v724, %v2246
        %v2263 = vadd.f32 %v725, %v2246
        %v2264 = vadd.f32 %v726, %v2246
        %v2265 = vadd.f32 %v727, %v2246
        %v2266 = vadd.f32 %v728, %v2246
        %v2267 = vadd.f32 %v729, %v2246
        %v2268 = vadd.f32 %v730, %v2246
        %v2269 = vadd.f32 %v731, %v2246
        %v2270 = vadd.f32 %v732, %v2246
        %v2271 = vadd.f32 %v733, %v2246
        %v2272 = vadd.f32 %v734, %v2246
        %v2273 = vadd.f32 %v735, %v2246
        %v2274 = vadd.f32 %v736, %v2246
        %v2275 = vadd.f32 %v737, %v2246
        %v2276 = vadd.f32 %v738, %v2246
        %v2277 = vadd.f32 %v739, %v2246
        %v2278 = vadd.f32 %v740, %v2246
        %v2279 = vadd.f32 %v741, %v2246
        %v2280 = vadd.f32 %v742, %v2246
        %v2281 = vadd.f32 %v743, %v2246
        %v2282 = vadd.f32 %v744, %v2246
        %v2283 = vadd.f32 %v745, %v2246
        %v2284 = vadd.f32 %v746, %v2246
        %v2285 = vadd.f32 %v747, %v2246
        %v2286 = vadd.f32 %v748, %v2246
        %v2287 = vadd.f32 %v749, %v2246
        %v2288 = vadd.f32 %v750, %v2246
        %v2289 = vadd.f32 %v751, %v2246
        %v2290 = vadd.f32 %v752, %v2246
        %v2291 = vadd.f32 %v753, %v2246
        %v2292 = vadd.f32 %v754, %v2246
        %v2293 = vadd.f32 %v755, %v2246
        %v2294 = vadd.f32 %v756, %v2246
        %v2295 = vadd.f32 %v757, %v2246
        %v2296 = vadd.f32 %v758, %v2246
        %v2297 = vadd.f32 %v759, %v2246
        %v2298 = vadd.f32 %v760, %v2246
        %v2299 = vadd.f32 %v761, %v2246
        %v2300 = vadd.f32 %v762, %v2246
        %v2301 = vadd.f32 %v763, %v2246
        %v2302 = vadd.f32 %v764, %v2246
        %v2303 = vadd.f32 %v765, %v2246
        %v2304 = vadd.f32 %v766, %v2246
        %v2305 = vadd.f32 %v767, %v2246
        %v2306 = vadd.f32 %v768, %v2246
        %v2307 = vadd.f32 %v769, %v2246
        %v2308 = vadd.f32 %v770, %v2246
        %v2309 = vadd.f32 %v771, %v2246
        %v2310 = vadd.f32 %v772, %v2246
        %v2311 = vadd.f32 %v773, %v2246
        %v2312 = vadd.f32 %v774, %v2246
        %v2313 = vadd.f32 %v775, %v2246
        %v2314 = vadd.f32 %v776, %v2246
        %v2315 = vadd.f32 %v777, %v2246
        %v2316 = vadd.f32 %v778, %v2246
        %v2317 = vadd.f32 %v779, %v2246
        %v2318 = vadd.f32 %v780, %v2246
        %v2319 = vadd.f32 %v781, %v2246
        %v2320 = vadd.f32 %v782, %v2246
        %v2321 = vadd.f32 %v783, %v2246
        %v2322 = vadd.f32 %v784, %v2246
        %v2323 = vadd.f32 %v785, %v2246
        %v2324 = vadd.f32 %v786, %v2246
        %v2325 = vadd.f32 %v787, %v2246
        %v2326 = vadd.f32 %v788, %v2246
        %v2327 = vadd.f32 %v789, %v2246
        %v2328 = vadd.f32 %v790, %v2246
        %v2329 = vadd.f32 %v791, %v2246
        %v2330 = vadd.f32 %v792, %v2246
        %v2331 = vadd.f32 %v793, %v2246
        %v2332 = vadd.f32 %v794, %v2246
        %v2333 = vadd.f32 %v795, %v2246
        %v2334 = vadd.f32 %v796, %v2246
        %v2335 = vadd.f32 %v797, %v2246
        %v2336 = vadd.f32 %v798, %v2246
        %v2337 = vadd.f32 %v799, %v2246
        %v2338 = vadd.f32 %v800, %v2246
        %v2339 = vadd.f32 %v801, %v2246
        %v2340 = vadd.f32 %v802, %v2246
        %v2341 = vadd.f32 %v803, %v2246
        %v2342 = vadd.f32 %v804, %v2246
        %v2343 = vadd.f32 %v805, %v2246
        %v2344 = vadd.f32 %v806, %v2246
        %v2345 = vadd.f32 %v807, %v2246
        %v2346 = vadd.f32 %v808, %v2246
        %v2347 = vadd.f32 %v809, %v2246
        %v2348 = vadd.f32 %v810, %v2246
        %v2349 = vadd.f32 %v811, %v2246
        %v2350 = vadd.f32 %v812, %v2246
        %v2351 = vadd.f32 %v813, %v2246
        %v2352 = vadd.f32 %v814, %v2246
        %v2353 = vadd.f32 %v815, %v2246
        %v2354 = vadd.f32 %v816, %v2246
        %v2355 = vadd.f32 %v817, %v2246
        %v2356 = vadd.f32 %v818, %v2246
        %v2357 = vadd.f32 %v819, %v2246
        %v2358 = vadd.f32 %v820, %v2246
        %v2359 = vadd.f32 %v821, %v2246
        %v2360 = vadd.f32 %v822, %v2246
        %v2361 = vadd.f32 %v823, %v2246
        %v2362 = vadd.f32 %v824, %v2246
        %v2363 = vadd.f32 %v825, %v2246
        %v2364 = vadd.f32 %v826, %v2246
        %v2365 = vadd.f32 %v827, %v2246
        %v2366 = vadd.f32 %v828, %v2246
        %v2367 = vadd.f32 %v829, %v2246
        %v2368 = vadd.f32 %v830, %v2246
        %v2369 = vadd.f32 %v831, %v2246
        %v2370 = vadd.f32 %v832, %v2246
        %v2371 = vadd.f32 %v833, %v2246
        %v2372 = vadd.f32 %v834, %v2246
        %v2373 = vadd.f32 %v835, %v2246
        %v2374 = vadd.f32 %v836, %v2246
        %v2375 = vadd.f32 %v837, %v2246
        %v2376 = vadd.f32 %v838, %v2246
        %v2377 = vadd.f32 %v839, %v2246
        %v2378 = vadd.f32 %v840, %v2246
        %v2379 = vadd.f32 %v841, %v2246
        %v2380 = vadd.f32 %v842, %v2246
        %v2381 = vadd.f32 %v843, %v2246
        %v2382 = vadd.f32 %v844, %v2246
        %v2383 = vadd.f32 %v845, %v2246
        %v2384 = vadd.f32 %v846, %v2246
        %v2385 = vadd.f32 %v847, %v2246
        %v2386 = vadd.f32 %v848, %v2246
        %v2387 = vadd.f32 %v849, %v2246
        %v2388 = vadd.f32 %v850, %v2246
        %v2389 = vadd.f32 %v851, %v2246
        %v2390 = vadd.f32 %v852, %v2246
        %v2391 = vadd.f32 %v853, %v2246
        %v2392 = vadd.f32 %v854, %v2246
        %v2393 = vadd.f32 %v855, %v2246
        %v2394 = vadd.f32 %v856, %v2246
        %v2395 = vadd.f32 %v857, %v2246
        %v2396 = vadd.f32 %v858, %v2246
        %v2397 = vadd.f32 %v859, %v2246
        %v2398 = vadd.f32 %v860, %v2246
        %v2399 = vadd.f32 %v861, %v2246
        %v2400 = vadd.f32 %v862, %v2246
        %v2401 = vadd.f32 %v863, %v2246
        %v2402 = vadd.f32 %v864, %v2246
        %v2403 = vadd.f32 %v865, %v2246
        %v2404 = vadd.f32 %v866, %v2246
        %v2405 = vadd.f32 %v867, %v2246
        %v2406 = vadd.f32 %v868, %v2246
        %v2407 = vadd.f32 %v869, %v2246
        %v2408 = vadd.f32 %v870, %v2246
        %v2409 = vadd.f32 %v871, %v2246
        %v2410 = vadd.f32 %v872, %v2246
        %v2411 = vadd.f32 %v873, %v2246
        %v2412 = vadd.f32 %v874, %v2246
        %v2413 = vadd.f32 %v875, %v2246
        %v2414 = vadd.f32 %v876, %v2246
        %v2415 = vadd.f32 %v877, %v2246
        %v2416 = vadd.f32 %v878, %v2246
        %v2417 = vadd.f32 %v879, %v2246
        %v2418 = vadd.f32 %v880, %v2246
        %v2419 = vadd.f32 %v881, %v2246
        %v2420 = vadd.f32 %v882, %v2246
        %v2421 = vadd.f32 %v883, %v2246
        %v2422 = vadd.f32 %v884, %v2246
        %v2423 = vadd.f32 %v885, %v2246
        %v2424 = vadd.f32 %v886, %v2246
        %v2425 = vadd.f32 %v887, %v2246
        %v2426 = vadd.f32 %v888, %v2246
        %v2427 = vadd.f32 %v889, %v2246
        %v2428 = vadd.f32 %v890, %v2246
        %v2429 = vadd.f32 %v891, %v2246
        %v2430 = vadd.f32 %v892, %v2246
        %v2431 = vadd.f32 %v893, %v2246
        %v2432 = vadd.f32 %v894, %v2246
        %v2433 = vadd.f32 %v895, %v2246
        %v2434 = vadd.f32 %v896, %v2246
        %v2435 = vadd.f32 %v897, %v2246
        %v2436 = vadd.f32 %v898, %v2246
        %v2437 = vadd.f32 %v899, %v2246
        %v2438 = vadd.f32 %v900, %v2246
        %v2439 = vadd.f32 %v901, %v2246
        %v2440 = vadd.f32 %v902, %v2246
        %v2441 = vadd.f32 %v903, %v2246
        %v2442 = vadd.f32 %v904, %v2246
        %v2443 = vadd.f32 %v905, %v2246
        %v2444 = vadd.f32 %v906, %v2246
        %v2445 = vadd.f32 %v907, %v2246
        %v2446 = vadd.f32 %v908, %v2246
        %v2447 = vadd.f32 %v909, %v2246
        %v2448 = vadd.f32 %v910, %v2246
        %v2449 = vadd.f32 %v911, %v2246
        %v2450 = vadd.f32 %v912, %v2246
        %v2451 = vadd.f32 %v913, %v2246
        %v2452 = vadd.f32 %v914, %v2246
        %v2453 = vadd.f32 %v915, %v2246
        %v2454 = vadd.f32 %v916, %v2246
        %v2455 = vadd.f32 %v917, %v2246
        %v2456 = vadd.f32 %v918, %v2246
        %v2457 = vadd.f32 %v919, %v2246
        %v2458 = vadd.f32 %v920, %v2246
        %v2459 = vadd.f32 %v921, %v2246
        %v2460 = vadd.f32 %v922, %v2246
        %v2461 = vadd.f32 %v923, %v2246
        %v2462 = vadd.f32 %v924, %v2246
        %v2463 = vadd.f32 %v925, %v2246
        %v2464 = vadd.f32 %v926, %v2246
        %v2465 = vadd.f32 %v927, %v2246
        %v2466 = vadd.f32 %v928, %v2246
        %v2467 = vadd.f32 %v929, %v2246
        %v2468 = vadd.f32 %v930, %v2246
        %v2469 = vadd.f32 %v931, %v2246
        %v2470 = vadd.f32 %v932, %v2246
        %v2471 = vadd.f32 %v933, %v2246
        %v2472 = vadd.f32 %v934, %v2246
        %v2473 = vadd.f32 %v935, %v2246
        %v2474 = vadd.f32 %v936, %v2246
        %v2475 = vadd.f32 %v937, %v2246
        %v2476 = vadd.f32 %v938, %v2246
        %v2477 = vadd.f32 %v939, %v2246
        %v2478 = vadd.f32 %v940, %v2246
        %v2479 = vadd.f32 %v941, %v2246
        %v2480 = vadd.f32 %v942, %v2246
        %v2481 = vadd.f32 %v943, %v2246
        %v2482 = vadd.f32 %v944, %v2246
        %v2483 = vadd.f32 %v945, %v2246
        %v2484 = vadd.f32 %v946, %v2246
        %v2485 = vadd.f32 %v947, %v2246
        %v2486 = vadd.f32 %v948, %v2246
        %v2487 = vadd.f32 %v949, %v2246
        %v2488 = vadd.f32 %v950, %v2246
        %v2489 = vadd.f32 %v951, %v2246
        %v2490 = vadd.f32 %v952, %v2246
        %v2491 = vadd.f32 %v953, %v2246
        %v2492 = vadd.f32 %v954, %v2246
        %v2493 = vadd.f32 %v955, %v2246
        %v2494 = vadd.f32 %v956, %v2246
        %v2495 = vadd.f32 %v957, %v2246
        %v2496 = vadd.f32 %v958, %v2246
        %v2497 = vadd.f32 %v959, %v2246
        %v2498 = vadd.f32 %v960, %v2246
        %v2499 = vadd.f32 %v961, %v2246
        %v2500 = vadd.f32 %v962, %v2246
        %v2501 = vadd.f32 %v963, %v2246
        %v2502 = vadd.f32 %v964, %v2246
        %v2503 = vadd.f32 %v965, %v2246
        %v2504 = vadd.f32 %v966, %v2246
        %v2505 = vadd.f32 %v967, %v2246
        %v2506 = vadd.f32 %v968, %v2246
        %v2507 = vadd.f32 %v969, %v2246
        %v2508 = vadd.f32 %v970, %v2246
        %v2509 = vadd.f32 %v971, %v2246
        %v2510 = vadd.f32 %v972, %v2246
        %v2511 = vadd.f32 %v973, %v2246
        %v2512 = vadd.f32 %v974, %v2246
        %v2513 = vadd.f32 %v975, %v2246
        %v2514 = vadd.f32 %v976, %v2246
        %v2515 = vadd.f32 %v977, %v2246
        %v2516 = vadd.f32 %v978, %v2246
        %v2517 = vadd.f32 %v979, %v2246
        %v2518 = vadd.f32 %v980, %v2246
        %v2519 = vadd.f32 %v981, %v2246
        %v2520 = vadd.f32 %v982, %v2246
        %v2521 = vadd.f32 %v983, %v2246
        %v2522 = vadd.f32 %v984, %v2246
        %v2523 = vadd.f32 %v985, %v2246
        %v2524 = vadd.f32 %v986, %v2246
        %v2525 = vadd.f32 %v987, %v2246
        %v2526 = vadd.f32 %v988, %v2246
        %v2527 = vadd.f32 %v989, %v2246
        %v2528 = vadd.f32 %v990, %v2246
        %v2529 = vadd.f32 %v991, %v2246
        %v2530 = vadd.f32 %v992, %v2246
        %v2531 = vadd.f32 %v993, %v2246
        %v2532 = vadd.f32 %v994, %v2246
        %v2533 = vadd.f32 %v995, %v2246
        %v2534 = vadd.f32 %v996, %v2246
        %v2535 = vadd.f32 %v997, %v2246
        %v2536 = vadd.f32 %v998, %v2246
        %v2537 = vadd.f32 %v999, %v2246
        %v2538 = vadd.f32 %v1000, %v2246
        %v2539 = vadd.f32 %v1001, %v2246
        %v2540 = vadd.f32 %v1002, %v2246
        %v2541 = vadd.f32 %v1003, %v2246
        %v2542 = vadd.f32 %v1004, %v2246
        %v2543 = vadd.f32 %v1005, %v2246
        %v2544 = vadd.f32 %v1006, %v2246
        %v2545 = vadd.f32 %v1007, %v2246
        %v2546 = vadd.f32 %v1008, %v2246
        %v2547 = vadd.f32 %v1009, %v2246
        %v2548 = vadd.f32 %v1010, %v2246
        %v2549 = vadd.f32 %v1011, %v2246
        %v2550 = vadd.f32 %v1012, %v2246
        %v2551 = vadd.f32 %v1013, %v2246
        %v2552 = vadd.f32 %v1014, %v2246
        %v2553 = vadd.f32 %v1015, %v2246
        %v2554 = vadd.f32 %v1016, %v2246
        %v2555 = vadd.f32 %v1017, %v2246
        %v2556 = vadd.f32 %v1018, %v2246
        %v2557 = vadd.f32 %v1019, %v2246
        %v2558 = vadd.f32 %v1020, %v2246
        %v2559 = vadd.f32 %v1021, %v2246
        %v2560 = vadd.f32 %v1022, %v2246
        %v2561 = vadd.f32 %v1023, %v2246
        %v2562 = vadd.f32 %v1024, %v2246
        %v2563 = vadd.f32 %v1025, %v2246
        %v2564 = vadd.f32 %v1026, %v2246
        %v2565 = vadd.f32 %v1027, %v2246
        %v2566 = vadd.f32 %v1028, %v2246
        %v2567 = vadd.f32 %v1029, %v2246
        %v2568 = vadd.f32 %v1030, %v2246
        %v2569 = vadd.f32 %v1031, %v2246
        %v2570 = vadd.f32 %v1032, %v2246
        %v2571 = vadd.f32 %v1033, %v2246
        %v2572 = vadd.f32 %v1034, %v2246
        %v2573 = vadd.f32 %v1035, %v2246
        %v2574 = vadd.f32 %v1036, %v2246
        %v2575 = vadd.f32 %v1037, %v2246
        %v2576 = vadd.f32 %v1038, %v2246
        %v2577 = vadd.f32 %v1039, %v2246
        %v2578 = vadd.f32 %v1040, %v2246
        %v2579 = vadd.f32 %v1041, %v2246
        %v2580 = vadd.f32 %v1042, %v2246
        %v2581 = vadd.f32 %v1043, %v2246
        %v2582 = vadd.f32 %v1044, %v2246
        %v2583 = vadd.f32 %v1045, %v2246
        %v2584 = vadd.f32 %v1046, %v2246
        %v2585 = vadd.f32 %v1047, %v2246
        %v2586 = vadd.f32 %v1048, %v2246
        %v2587 = vadd.f32 %v1049, %v2246
        %v2588 = vadd.f32 %v1050, %v2246
        %v2589 = vadd.f32 %v1051, %v2246
        %v2590 = vadd.f32 %v1052, %v2246
        %v2591 = vadd.f32 %v1053, %v2246
        %v2592 = vadd.f32 %v1054, %v2246
        %v2593 = vadd.f32 %v1055, %v2246
        %v2594 = vadd.f32 %v1056, %v2246
        %v2595 = vadd.f32 %v1057, %v2246
        %v2596 = vadd.f32 %v1058, %v2246
        %v2597 = vadd.f32 %v1059, %v2246
        %v2598 = vadd.f32 %v1060, %v2246
        %v2599 = vadd.f32 %v1061, %v2246
        %v2600 = vadd.f32 %v1062, %v2246
        %v2601 = vadd.f32 %v1063, %v2246
        %v2602 = vadd.f32 %v1064, %v2246
        %v2603 = vadd.f32 %v1065, %v2246
        %v2604 = vadd.f32 %v1066, %v2246
        %v2605 = vadd.f32 %v1067, %v2246
        %v2606 = vadd.f32 %v1068, %v2246
        %v2607 = vadd.f32 %v1069, %v2246
        %v2608 = vadd.f32 %v1070, %v2246
        %v2609 = vadd.f32 %v1071, %v2246
        %v2610 = vadd.f32 %v1072, %v2246
        %v2611 = vadd.f32 %v1073, %v2246
        %v2612 = vadd.f32 %v1074, %v2246
        %v2613 = vadd.f32 %v1075, %v2246
        %v2614 = vadd.f32 %v1076, %v2246
        %v2615 = vadd.f32 %v1077, %v2246
        %v2616 = vadd.f32 %v1078, %v2246
        %v2617 = vadd.f32 %v1079, %v2246
        %v2618 = vadd.f32 %v1080, %v2246
        %v2619 = vadd.f32 %v1081, %v2246
        %v2620 = vadd.f32 %v1082, %v2246
        %v2621 = vadd.f32 %v1083, %v2246
        %v2622 = vadd.f32 %v1084, %v2246
        %v2623 = vadd.f32 %v1085, %v2246
        %v2624 = vadd.f32 %v1086, %v2246
        %v2625 = vadd.f32 %v1087, %v2246
        %v2626 = vadd.f32 %v1088, %v2246
        %v2627 = vadd.f32 %v1089, %v2246
        %v2628 = vadd.f32 %v1090, %v2246
        %v2629 = vadd.f32 %v1091, %v2246
        %v2630 = vadd.f32 %v1092, %v2246
        %v2631 = vadd.f32 %v1093, %v2246
        %v2632 = vadd.f32 %v1094, %v2246
        %v2633 = vadd.f32 %v1095, %v2246
        %v2634 = vadd.f32 %v1096, %v2246
        %v2635 = vadd.f32 %v1097, %v2246
        %v2636 = vadd.f32 %v1098, %v2246
        %v2637 = vadd.f32 %v1099, %v2246
        %v2638 = vadd.f32 %v1100, %v2246
        %v2639 = vadd.f32 %v1101, %v2246
        %v2640 = vadd.f32 %v1102, %v2246
        %v2641 = vadd.f32 %v1103, %v2246
        %v2642 = vadd.f32 %v1104, %v2246
        %v2643 = vadd.f32 %v1105, %v2246
        %v2644 = vadd.f32 %v1106, %v2246
        %v2645 = vadd.f32 %v1107, %v2246
        %v2646 = vadd.f32 %v1108, %v2246
        %v2647 = vadd.f32 %v1109, %v2246
        %v2648 = vadd.f32 %v1110, %v2246
        %v2649 = vadd.f32 %v1111, %v2246
        %v2650 = vadd.f32 %v1112, %v2246
        %v2651 = vadd.f32 %v1113, %v2246
        %v2652 = vadd.f32 %v1114, %v2246
        %v2653 = vadd.f32 %v1115, %v2246
        %v2654 = vadd.f32 %v1116, %v2246
        %v2655 = vadd.f32 %v1117, %v2246
        %v2656 = vadd.f32 %v1118, %v2246
        %v2657 = vadd.f32 %v1119, %v2246
        %v2658 = vadd.f32 %v1120, %v2246
        %v2659 = vadd.f32 %v1121, %v2246
        %v2660 = vadd.f32 %v1122, %v2246
        %v2661 = vadd.f32 %v1123, %v2246
        %v2662 = vadd.f32 %v1124, %v2246
        %v2663 = vadd.f32 %v1125, %v2246
        %v2664 = vadd.f32 %v1126, %v2246
        %v2665 = vadd.f32 %v1127, %v2246
        %v2666 = vadd.f32 %v1128, %v2246
        %v2667 = vadd.f32 %v1129, %v2246
        %v2668 = vadd.f32 %v1130, %v2246
        %v2669 = vadd.f32 %v1131, %v2246
        %v2670 = vadd.f32 %v1132, %v2246
        %v2671 = vadd.f32 %v1133, %v2246
        %v2672 = vadd.f32 %v1134, %v2246
        %v2673 = vadd.f32 %v1135, %v2246
        %v2674 = vadd.f32 %v1136, %v2246
        %v2675 = vadd.f32 %v1137, %v2246
        %v2676 = vadd.f32 %v1138, %v2246
        %v2677 = vadd.f32 %v1139, %v2246
        %v2678 = vadd.f32 %v1140, %v2246
        %v2679 = vadd.f32 %v1141, %v2246
        %v2680 = vadd.f32 %v1142, %v2246
        %v2681 = vadd.f32 %v1143, %v2246
        %v2682 = vadd.f32 %v1144, %v2246
        %v2683 = vadd.f32 %v1145, %v2246
        %v2684 = vadd.f32 %v1146, %v2246
        %v2685 = vadd.f32 %v1147, %v2246
        %v2686 = vadd.f32 %v1148, %v2246
        %v2687 = vadd.f32 %v1149, %v2246
        %v2688 = vadd.f32 %v1150, %v2246
        %v2689 = vadd.f32 %v1151, %v2246
        %v2690 = vadd.f32 %v1152, %v2246
        %v2691 = vadd.f32 %v1153, %v2246
        %v2692 = vadd.f32 %v1154, %v2246
        %v2693 = vadd.f32 %v1155, %v2246
        %v2694 = vadd.f32 %v1156, %v2246
        %v2695 = vadd.f32 %v1157, %v2246
        %v2696 = vadd.f32 %v1158, %v2246
        %v2697 = vadd.f32 %v1159, %v2246
        %v2698 = vadd.f32 %v1160, %v2246
        %v2699 = vadd.f32 %v1161, %v2246
        %v2700 = vadd.f32 %v1162, %v2246
        %v2701 = vadd.f32 %v1163, %v2246
        %v2702 = vadd.f32 %v1164, %v2246
        %v2703 = vadd.f32 %v1165, %v2246
        %v2704 = vadd.f32 %v1166, %v2246
        %v2705 = vadd.f32 %v1167, %v2246
        %v2706 = vadd.f32 %v1168, %v2246
        %v2707 = vadd.f32 %v1169, %v2246
        %v2708 = vadd.f32 %v1170, %v2246
        %v2709 = vadd.f32 %v1171, %v2246
        %v2710 = vadd.f32 %v1172, %v2246
        %v2711 = vadd.f32 %v1173, %v2246
        %v2712 = vadd.f32 %v1174, %v2246
        %v2713 = vadd.f32 %v1175, %v2246
        %v2714 = vadd.f32 %v1176, %v2246
        %v2715 = vadd.f32 %v1177, %v2246
        %v2716 = vadd.f32 %v1178, %v2246
        %v2717 = vadd.f32 %v1179, %v2246
        %v2718 = vadd.f32 %v1180, %v2246
        %v2719 = vadd.f32 %v1181, %v2246
        %v2720 = vadd.f32 %v1182, %v2246
        %v2721 = vadd.f32 %v1183, %v2246
        %v2722 = vadd.f32 %v1184, %v2246
        %v2723 = vadd.f32 %v1185, %v2246
        %v2724 = vadd.f32 %v1186, %v2246
        %v2725 = vadd.f32 %v1187, %v2246
        %v2726 = vadd.f32 %v1188, %v2246
        %v2727 = vadd.f32 %v1189, %v2246
        %v2728 = vadd.f32 %v1190, %v2246
        %v2729 = vadd.f32 %v1191, %v2246
        %v2730 = vadd.f32 %v1192, %v2246
        %v2731 = vadd.f32 %v1193, %v2246
        %v2732 = vadd.f32 %v1194, %v2246
        %v2733 = vadd.f32 %v1195, %v2246
        %v2734 = vadd.f32 %v1196, %v2246
        %v2735 = vadd.f32 %v1197, %v2246
        %v2736 = vadd.f32 %v1198, %v2246
        %v2737 = vadd.f32 %v1199, %v2246
        %v2738 = vadd.f32 %v1200, %v2246
        %v2739 = vadd.f32 %v1201, %v2246
        %v2740 = vadd.f32 %v1202, %v2246
        %v2741 = vadd.f32 %v1203, %v2246
        %v2742 = vadd.f32 %v1204, %v2246
        %v2743 = vadd.f32 %v1205, %v2246
        %v2744 = vadd.f32 %v1206, %v2246
        %v2745 = vadd.f32 %v1207, %v2246
        %v2746 = vadd.f32 %v1208, %v2246
        %v2747 = vadd.f32 %v1209, %v2246
        %v2748 = vadd.f32 %v1210, %v2246
        %v2749 = vadd.f32 %v1211, %v2246
        %v2750 = vadd.f32 %v1212, %v2246
        %v2751 = vadd.f32 %v1213, %v2246
        %v2752 = vadd.f32 %v1214, %v2246
        %v2753 = vadd.f32 %v1215, %v2246
        %v2754 = vadd.f32 %v1216, %v2246
        %v2755 = vadd.f32 %v1217, %v2246
        %v2756 = vadd.f32 %v1218, %v2246
        %v2757 = vadd.f32 %v1219, %v2246
        %v2758 = vadd.f32 %v1220, %v2246
        %v2759 = vtanh.pop %v2247
        %v2760 = vtanh.pop %v2248
        %v2761 = vtanh.pop %v2249
        %v2762 = vtanh.pop %v2250
        %v2763 = vtanh.pop %v2251
        %v2764 = vtanh.pop %v2252
        %v2765 = vtanh.pop %v2253
        %v2766 = vtanh.pop %v2254
        %v2767 = vtanh.pop %v2255
        %v2768 = vtanh.pop %v2256
        %v2769 = vtanh.pop %v2257
        %v2770 = vtanh.pop %v2258
        %v2771 = vtanh.pop %v2259
        %v2772 = vtanh.pop %v2260
        %v2773 = vtanh.pop %v2261
        %v2774 = vtanh.pop %v2262
        %v2775 = vtanh.pop %v2263
        %v2776 = vtanh.pop %v2264
        %v2777 = vtanh.pop %v2265
        %v2778 = vtanh.pop %v2266
        %v2779 = vtanh.pop %v2267
        %v2780 = vtanh.pop %v2268
        %v2781 = vtanh.pop %v2269
        %v2782 = vtanh.pop %v2270
        %v2783 = vtanh.pop %v2271
        %v2784 = vtanh.pop %v2272
        %v2785 = vtanh.pop %v2273
        %v2786 = vtanh.pop %v2274
        %v2787 = vtanh.pop %v2275
        %v2788 = vtanh.pop %v2276
        %v2789 = vtanh.pop %v2277
        %v2790 = vtanh.pop %v2278
        %v2791 = vtanh.pop %v2279
        %v2792 = vtanh.pop %v2280
        %v2793 = vtanh.pop %v2281
        %v2794 = vtanh.pop %v2282
        %v2795 = vtanh.pop %v2283
        %v2796 = vtanh.pop %v2284
        %v2797 = vtanh.pop %v2285
        %v2798 = vtanh.pop %v2286
        %v2799 = vtanh.pop %v2287
        %v2800 = vtanh.pop %v2288
        %v2801 = vtanh.pop %v2289
        %v2802 = vtanh.pop %v2290
        %v2803 = vtanh.pop %v2291
        %v2804 = vtanh.pop %v2292
        %v2805 = vtanh.pop %v2293
        %v2806 = vtanh.pop %v2294
        %v2807 = vtanh.pop %v2295
        %v2808 = vtanh.pop %v2296
        %v2809 = vtanh.pop %v2297
        %v2810 = vtanh.pop %v2298
        %v2811 = vtanh.pop %v2299
        %v2812 = vtanh.pop %v2300
        %v2813 = vtanh.pop %v2301
        %v2814 = vtanh.pop %v2302
        %v2815 = vtanh.pop %v2303
        %v2816 = vtanh.pop %v2304
        %v2817 = vtanh.pop %v2305
        %v2818 = vtanh.pop %v2306
        %v2819 = vtanh.pop %v2307
        %v2820 = vtanh.pop %v2308
        %v2821 = vtanh.pop %v2309
        %v2822 = vtanh.pop %v2310
        %v2823 = vtanh.pop %v2311
        %v2824 = vtanh.pop %v2312
        %v2825 = vtanh.pop %v2313
        %v2826 = vtanh.pop %v2314
        %v2827 = vtanh.pop %v2315
        %v2828 = vtanh.pop %v2316
        %v2829 = vtanh.pop %v2317
        %v2830 = vtanh.pop %v2318
        %v2831 = vtanh.pop %v2319
        %v2832 = vtanh.pop %v2320
        %v2833 = vtanh.pop %v2321
        %v2834 = vtanh.pop %v2322
        %v2835 = vtanh.pop %v2323
        %v2836 = vtanh.pop %v2324
        %v2837 = vtanh.pop %v2325
        %v2838 = vtanh.pop %v2326
        %v2839 = vtanh.pop %v2327
        %v2840 = vtanh.pop %v2328
        %v2841 = vtanh.pop %v2329
        %v2842 = vtanh.pop %v2330
        %v2843 = vtanh.pop %v2331
        %v2844 = vtanh.pop %v2332
        %v2845 = vtanh.pop %v2333
        %v2846 = vtanh.pop %v2334
        %v2847 = vtanh.pop %v2335
        %v2848 = vtanh.pop %v2336
        %v2849 = vtanh.pop %v2337
        %v2850 = vtanh.pop %v2338
        %v2851 = vtanh.pop %v2339
        %v2852 = vtanh.pop %v2340
        %v2853 = vtanh.pop %v2341
        %v2854 = vtanh.pop %v2342
        %v2855 = vtanh.pop %v2343
        %v2856 = vtanh.pop %v2344
        %v2857 = vtanh.pop %v2345
        %v2858 = vtanh.pop %v2346
        %v2859 = vtanh.pop %v2347
        %v2860 = vtanh.pop %v2348
        %v2861 = vtanh.pop %v2349
        %v2862 = vtanh.pop %v2350
        %v2863 = vtanh.pop %v2351
        %v2864 = vtanh.pop %v2352
        %v2865 = vtanh.pop %v2353
        %v2866 = vtanh.pop %v2354
        %v2867 = vtanh.pop %v2355
        %v2868 = vtanh.pop %v2356
        %v2869 = vtanh.pop %v2357
        %v2870 = vtanh.pop %v2358
        %v2871 = vtanh.pop %v2359
        %v2872 = vtanh.pop %v2360
        %v2873 = vtanh.pop %v2361
        %v2874 = vtanh.pop %v2362
        %v2875 = vtanh.pop %v2363
        %v2876 = vtanh.pop %v2364
        %v2877 = vtanh.pop %v2365
        %v2878 = vtanh.pop %v2366
        %v2879 = vtanh.pop %v2367
        %v2880 = vtanh.pop %v2368
        %v2881 = vtanh.pop %v2369
        %v2882 = vtanh.pop %v2370
        %v2883 = vtanh.pop %v2371
        %v2884 = vtanh.pop %v2372
        %v2885 = vtanh.pop %v2373
        %v2886 = vtanh.pop %v2374
        %v2887 = vtanh.pop %v2375
        %v2888 = vtanh.pop %v2376
        %v2889 = vtanh.pop %v2377
        %v2890 = vtanh.pop %v2378
        %v2891 = vtanh.pop %v2379
        %v2892 = vtanh.pop %v2380
        %v2893 = vtanh.pop %v2381
        %v2894 = vtanh.pop %v2382
        %v2895 = vtanh.pop %v2383
        %v2896 = vtanh.pop %v2384
        %v2897 = vtanh.pop %v2385
        %v2898 = vtanh.pop %v2386
        %v2899 = vtanh.pop %v2387
        %v2900 = vtanh.pop %v2388
        %v2901 = vtanh.pop %v2389
        %v2902 = vtanh.pop %v2390
        %v2903 = vtanh.pop %v2391
        %v2904 = vtanh.pop %v2392
        %v2905 = vtanh.pop %v2393
        %v2906 = vtanh.pop %v2394
        %v2907 = vtanh.pop %v2395
        %v2908 = vtanh.pop %v2396
        %v2909 = vtanh.pop %v2397
        %v2910 = vtanh.pop %v2398
        %v2911 = vtanh.pop %v2399
        %v2912 = vtanh.pop %v2400
        %v2913 = vtanh.pop %v2401
        %v2914 = vtanh.pop %v2402
        %v2915 = vtanh.pop %v2403
        %v2916 = vtanh.pop %v2404
        %v2917 = vtanh.pop %v2405
        %v2918 = vtanh.pop %v2406
        %v2919 = vtanh.pop %v2407
        %v2920 = vtanh.pop %v2408
        %v2921 = vtanh.pop %v2409
        %v2922 = vtanh.pop %v2410
        %v2923 = vtanh.pop %v2411
        %v2924 = vtanh.pop %v2412
        %v2925 = vtanh.pop %v2413
        %v2926 = vtanh.pop %v2414
        %v2927 = vtanh.pop %v2415
        %v2928 = vtanh.pop %v2416
        %v2929 = vtanh.pop %v2417
        %v2930 = vtanh.pop %v2418
        %v2931 = vtanh.pop %v2419
        %v2932 = vtanh.pop %v2420
        %v2933 = vtanh.pop %v2421
        %v2934 = vtanh.pop %v2422
        %v2935 = vtanh.pop %v2423
        %v2936 = vtanh.pop %v2424
        %v2937 = vtanh.pop %v2425
        %v2938 = vtanh.pop %v2426
        %v2939 = vtanh.pop %v2427
        %v2940 = vtanh.pop %v2428
        %v2941 = vtanh.pop %v2429
        %v2942 = vtanh.pop %v2430
        %v2943 = vtanh.pop %v2431
        %v2944 = vtanh.pop %v2432
        %v2945 = vtanh.pop %v2433
        %v2946 = vtanh.pop %v2434
        %v2947 = vtanh.pop %v2435
        %v2948 = vtanh.pop %v2436
        %v2949 = vtanh.pop %v2437
        %v2950 = vtanh.pop %v2438
        %v2951 = vtanh.pop %v2439
        %v2952 = vtanh.pop %v2440
        %v2953 = vtanh.pop %v2441
        %v2954 = vtanh.pop %v2442
        %v2955 = vtanh.pop %v2443
        %v2956 = vtanh.pop %v2444
        %v2957 = vtanh.pop %v2445
        %v2958 = vtanh.pop %v2446
        %v2959 = vtanh.pop %v2447
        %v2960 = vtanh.pop %v2448
        %v2961 = vtanh.pop %v2449
        %v2962 = vtanh.pop %v2450
        %v2963 = vtanh.pop %v2451
        %v2964 = vtanh.pop %v2452
        %v2965 = vtanh.pop %v2453
        %v2966 = vtanh.pop %v2454
        %v2967 = vtanh.pop %v2455
        %v2968 = vtanh.pop %v2456
        %v2969 = vtanh.pop %v2457
        %v2970 = vtanh.pop %v2458
        %v2971 = vtanh.pop %v2459
        %v2972 = vtanh.pop %v2460
        %v2973 = vtanh.pop %v2461
        %v2974 = vtanh.pop %v2462
        %v2975 = vtanh.pop %v2463
        %v2976 = vtanh.pop %v2464
        %v2977 = vtanh.pop %v2465
        %v2978 = vtanh.pop %v2466
        %v2979 = vtanh.pop %v2467
        %v2980 = vtanh.pop %v2468
        %v2981 = vtanh.pop %v2469
        %v2982 = vtanh.pop %v2470
        %v2983 = vtanh.pop %v2471
        %v2984 = vtanh.pop %v2472
        %v2985 = vtanh.pop %v2473
        %v2986 = vtanh.pop %v2474
        %v2987 = vtanh.pop %v2475
        %v2988 = vtanh.pop %v2476
        %v2989 = vtanh.pop %v2477
        %v2990 = vtanh.pop %v2478
        %v2991 = vtanh.pop %v2479
        %v2992 = vtanh.pop %v2480
        %v2993 = vtanh.pop %v2481
        %v2994 = vtanh.pop %v2482
        %v2995 = vtanh.pop %v2483
        %v2996 = vtanh.pop %v2484
        %v2997 = vtanh.pop %v2485
        %v2998 = vtanh.pop %v2486
        %v2999 = vtanh.pop %v2487
        %v3000 = vtanh.pop %v2488
        %v3001 = vtanh.pop %v2489
        %v3002 = vtanh.pop %v2490
        %v3003 = vtanh.pop %v2491
        %v3004 = vtanh.pop %v2492
        %v3005 = vtanh.pop %v2493
        %v3006 = vtanh.pop %v2494
        %v3007 = vtanh.pop %v2495
        %v3008 = vtanh.pop %v2496
        %v3009 = vtanh.pop %v2497
        %v3010 = vtanh.pop %v2498
        %v3011 = vtanh.pop %v2499
        %v3012 = vtanh.pop %v2500
        %v3013 = vtanh.pop %v2501
        %v3014 = vtanh.pop %v2502
        %v3015 = vtanh.pop %v2503
        %v3016 = vtanh.pop %v2504
        %v3017 = vtanh.pop %v2505
        %v3018 = vtanh.pop %v2506
        %v3019 = vtanh.pop %v2507
        %v3020 = vtanh.pop %v2508
        %v3021 = vtanh.pop %v2509
        %v3022 = vtanh.pop %v2510
        %v3023 = vtanh.pop %v2511
        %v3024 = vtanh.pop %v2512
        %v3025 = vtanh.pop %v2513
        %v3026 = vtanh.pop %v2514
        %v3027 = vtanh.pop %v2515
        %v3028 = vtanh.pop %v2516
        %v3029 = vtanh.pop %v2517
        %v3030 = vtanh.pop %v2518
        %v3031 = vtanh.pop %v2519
        %v3032 = vtanh.pop %v2520
        %v3033 = vtanh.pop %v2521
        %v3034 = vtanh.pop %v2522
        %v3035 = vtanh.pop %v2523
        %v3036 = vtanh.pop %v2524
        %v3037 = vtanh.pop %v2525
        %v3038 = vtanh.pop %v2526
        %v3039 = vtanh.pop %v2527
        %v3040 = vtanh.pop %v2528
        %v3041 = vtanh.pop %v2529
        %v3042 = vtanh.pop %v2530
        %v3043 = vtanh.pop %v2531
        %v3044 = vtanh.pop %v2532
        %v3045 = vtanh.pop %v2533
        %v3046 = vtanh.pop %v2534
        %v3047 = vtanh.pop %v2535
        %v3048 = vtanh.pop %v2536
        %v3049 = vtanh.pop %v2537
        %v3050 = vtanh.pop %v2538
        %v3051 = vtanh.pop %v2539
        %v3052 = vtanh.pop %v2540
        %v3053 = vtanh.pop %v2541
        %v3054 = vtanh.pop %v2542
        %v3055 = vtanh.pop %v2543
        %v3056 = vtanh.pop %v2544
        %v3057 = vtanh.pop %v2545
        %v3058 = vtanh.pop %v2546
        %v3059 = vtanh.pop %v2547
        %v3060 = vtanh.pop %v2548
        %v3061 = vtanh.pop %v2549
        %v3062 = vtanh.pop %v2550
        %v3063 = vtanh.pop %v2551
        %v3064 = vtanh.pop %v2552
        %v3065 = vtanh.pop %v2553
        %v3066 = vtanh.pop %v2554
        %v3067 = vtanh.pop %v2555
        %v3068 = vtanh.pop %v2556
        %v3069 = vtanh.pop %v2557
        %v3070 = vtanh.pop %v2558
        %v3071 = vtanh.pop %v2559
        %v3072 = vtanh.pop %v2560
        %v3073 = vtanh.pop %v2561
        %v3074 = vtanh.pop %v2562
        %v3075 = vtanh.pop %v2563
        %v3076 = vtanh.pop %v2564
        %v3077 = vtanh.pop %v2565
        %v3078 = vtanh.pop %v2566
        %v3079 = vtanh.pop %v2567
        %v3080 = vtanh.pop %v2568
        %v3081 = vtanh.pop %v2569
        %v3082 = vtanh.pop %v2570
        %v3083 = vtanh.pop %v2571
        %v3084 = vtanh.pop %v2572
        %v3085 = vtanh.pop %v2573
        %v3086 = vtanh.pop %v2574
        %v3087 = vtanh.pop %v2575
        %v3088 = vtanh.pop %v2576
        %v3089 = vtanh.pop %v2577
        %v3090 = vtanh.pop %v2578
        %v3091 = vtanh.pop %v2579
        %v3092 = vtanh.pop %v2580
        %v3093 = vtanh.pop %v2581
        %v3094 = vtanh.pop %v2582
        %v3095 = vtanh.pop %v2583
        %v3096 = vtanh.pop %v2584
        %v3097 = vtanh.pop %v2585
        %v3098 = vtanh.pop %v2586
        %v3099 = vtanh.pop %v2587
        %v3100 = vtanh.pop %v2588
        %v3101 = vtanh.pop %v2589
        %v3102 = vtanh.pop %v2590
        %v3103 = vtanh.pop %v2591
        %v3104 = vtanh.pop %v2592
        %v3105 = vtanh.pop %v2593
        %v3106 = vtanh.pop %v2594
        %v3107 = vtanh.pop %v2595
        %v3108 = vtanh.pop %v2596
        %v3109 = vtanh.pop %v2597
        %v3110 = vtanh.pop %v2598
        %v3111 = vtanh.pop %v2599
        %v3112 = vtanh.pop %v2600
        %v3113 = vtanh.pop %v2601
        %v3114 = vtanh.pop %v2602
        %v3115 = vtanh.pop %v2603
        %v3116 = vtanh.pop %v2604
        %v3117 = vtanh.pop %v2605
        %v3118 = vtanh.pop %v2606
        %v3119 = vtanh.pop %v2607
        %v3120 = vtanh.pop %v2608
        %v3121 = vtanh.pop %v2609
        %v3122 = vtanh.pop %v2610
        %v3123 = vtanh.pop %v2611
        %v3124 = vtanh.pop %v2612
        %v3125 = vtanh.pop %v2613
        %v3126 = vtanh.pop %v2614
        %v3127 = vtanh.pop %v2615
        %v3128 = vtanh.pop %v2616
        %v3129 = vtanh.pop %v2617
        %v3130 = vtanh.pop %v2618
        %v3131 = vtanh.pop %v2619
        %v3132 = vtanh.pop %v2620
        %v3133 = vtanh.pop %v2621
        %v3134 = vtanh.pop %v2622
        %v3135 = vtanh.pop %v2623
        %v3136 = vtanh.pop %v2624
        %v3137 = vtanh.pop %v2625
        %v3138 = vtanh.pop %v2626
        %v3139 = vtanh.pop %v2627
        %v3140 = vtanh.pop %v2628
        %v3141 = vtanh.pop %v2629
        %v3142 = vtanh.pop %v2630
        %v3143 = vtanh.pop %v2631
        %v3144 = vtanh.pop %v2632
        %v3145 = vtanh.pop %v2633
        %v3146 = vtanh.pop %v2634
        %v3147 = vtanh.pop %v2635
        %v3148 = vtanh.pop %v2636
        %v3149 = vtanh.pop %v2637
        %v3150 = vtanh.pop %v2638
        %v3151 = vtanh.pop %v2639
        %v3152 = vtanh.pop %v2640
        %v3153 = vtanh.pop %v2641
        %v3154 = vtanh.pop %v2642
        %v3155 = vtanh.pop %v2643
        %v3156 = vtanh.pop %v2644
        %v3157 = vtanh.pop %v2645
        %v3158 = vtanh.pop %v2646
        %v3159 = vtanh.pop %v2647
        %v3160 = vtanh.pop %v2648
        %v3161 = vtanh.pop %v2649
        %v3162 = vtanh.pop %v2650
        %v3163 = vtanh.pop %v2651
        %v3164 = vtanh.pop %v2652
        %v3165 = vtanh.pop %v2653
        %v3166 = vtanh.pop %v2654
        %v3167 = vtanh.pop %v2655
        %v3168 = vtanh.pop %v2656
        %v3169 = vtanh.pop %v2657
        %v3170 = vtanh.pop %v2658
        %v3171 = vtanh.pop %v2659
        %v3172 = vtanh.pop %v2660
        %v3173 = vtanh.pop %v2661
        %v3174 = vtanh.pop %v2662
        %v3175 = vtanh.pop %v2663
        %v3176 = vtanh.pop %v2664
        %v3177 = vtanh.pop %v2665
        %v3178 = vtanh.pop %v2666
        %v3179 = vtanh.pop %v2667
        %v3180 = vtanh.pop %v2668
        %v3181 = vtanh.pop %v2669
        %v3182 = vtanh.pop %v2670
        %v3183 = vtanh.pop %v2671
        %v3184 = vtanh.pop %v2672
        %v3185 = vtanh.pop %v2673
        %v3186 = vtanh.pop %v2674
        %v3187 = vtanh.pop %v2675
        %v3188 = vtanh.pop %v2676
        %v3189 = vtanh.pop %v2677
        %v3190 = vtanh.pop %v2678
        %v3191 = vtanh.pop %v2679
        %v3192 = vtanh.pop %v2680
        %v3193 = vtanh.pop %v2681
        %v3194 = vtanh.pop %v2682
        %v3195 = vtanh.pop %v2683
        %v3196 = vtanh.pop %v2684
        %v3197 = vtanh.pop %v2685
        %v3198 = vtanh.pop %v2686
        %v3199 = vtanh.pop %v2687
        %v3200 = vtanh.pop %v2688
        %v3201 = vtanh.pop %v2689
        %v3202 = vtanh.pop %v2690
        %v3203 = vtanh.pop %v2691
        %v3204 = vtanh.pop %v2692
        %v3205 = vtanh.pop %v2693
        %v3206 = vtanh.pop %v2694
        %v3207 = vtanh.pop %v2695
        %v3208 = vtanh.pop %v2696
        %v3209 = vtanh.pop %v2697
        %v3210 = vtanh.pop %v2698
        %v3211 = vtanh.pop %v2699
        %v3212 = vtanh.pop %v2700
        %v3213 = vtanh.pop %v2701
        %v3214 = vtanh.pop %v2702
        %v3215 = vtanh.pop %v2703
        %v3216 = vtanh.pop %v2704
        %v3217 = vtanh.pop %v2705
        %v3218 = vtanh.pop %v2706
        %v3219 = vtanh.pop %v2707
        %v3220 = vtanh.pop %v2708
        %v3221 = vtanh.pop %v2709
        %v3222 = vtanh.pop %v2710
        %v3223 = vtanh.pop %v2711
        %v3224 = vtanh.pop %v2712
        %v3225 = vtanh.pop %v2713
        %v3226 = vtanh.pop %v2714
        %v3227 = vtanh.pop %v2715
        %v3228 = vtanh.pop %v2716
        %v3229 = vtanh.pop %v2717
        %v3230 = vtanh.pop %v2718
        %v3231 = vtanh.pop %v2719
        %v3232 = vtanh.pop %v2720
        %v3233 = vtanh.pop %v2721
        %v3234 = vtanh.pop %v2722
        %v3235 = vtanh.pop %v2723
        %v3236 = vtanh.pop %v2724
        %v3237 = vtanh.pop %v2725
        %v3238 = vtanh.pop %v2726
        %v3239 = vtanh.pop %v2727
        %v3240 = vtanh.pop %v2728
        %v3241 = vtanh.pop %v2729
        %v3242 = vtanh.pop %v2730
        %v3243 = vtanh.pop %v2731
        %v3244 = vtanh.pop %v2732
        %v3245 = vtanh.pop %v2733
        %v3246 = vtanh.pop %v2734
        %v3247 = vtanh.pop %v2735
        %v3248 = vtanh.pop %v2736
        %v3249 = vtanh.pop %v2737
        %v3250 = vtanh.pop %v2738
        %v3251 = vtanh.pop %v2739
        %v3252 = vtanh.pop %v2740
        %v3253 = vtanh.pop %v2741
        %v3254 = vtanh.pop %v2742
        %v3255 = vtanh.pop %v2743
        %v3256 = vtanh.pop %v2744
        %v3257 = vtanh.pop %v2745
        %v3258 = vtanh.pop %v2746
        %v3259 = vtanh.pop %v2747
        %v3260 = vtanh.pop %v2748
        %v3261 = vtanh.pop %v2749
        %v3262 = vtanh.pop %v2750
        %v3263 = vtanh.pop %v2751
        %v3264 = vtanh.pop %v2752
        %v3265 = vtanh.pop %v2753
        %v3266 = vtanh.pop %v2754
        %v3267 = vtanh.pop %v2755
        %v3268 = vtanh.pop %v2756
        %v3269 = vtanh.pop %v2757
        %v3270 = vtanh.pop %v2758
        %v3271 = vsub.f32 %v1734, %v2759
        %v3272 = vsub.f32 %v1735, %v2760
        %v3273 = vsub.f32 %v1736, %v2761
        %v3274 = vsub.f32 %v1737, %v2762
        %v3275 = vsub.f32 %v1738, %v2763
        %v3276 = vsub.f32 %v1739, %v2764
        %v3277 = vsub.f32 %v1740, %v2765
        %v3278 = vsub.f32 %v1741, %v2766
        %v3279 = vsub.f32 %v1742, %v2767
        %v3280 = vsub.f32 %v1743, %v2768
        %v3281 = vsub.f32 %v1744, %v2769
        %v3282 = vsub.f32 %v1745, %v2770
        %v3283 = vsub.f32 %v1746, %v2771
        %v3284 = vsub.f32 %v1747, %v2772
        %v3285 = vsub.f32 %v1748, %v2773
        %v3286 = vsub.f32 %v1749, %v2774
        %v3287 = vsub.f32 %v1750, %v2775
        %v3288 = vsub.f32 %v1751, %v2776
        %v3289 = vsub.f32 %v1752, %v2777
        %v3290 = vsub.f32 %v1753, %v2778
        %v3291 = vsub.f32 %v1754, %v2779
        %v3292 = vsub.f32 %v1755, %v2780
        %v3293 = vsub.f32 %v1756, %v2781
        %v3294 = vsub.f32 %v1757, %v2782
        %v3295 = vsub.f32 %v1758, %v2783
        %v3296 = vsub.f32 %v1759, %v2784
        %v3297 = vsub.f32 %v1760, %v2785
        %v3298 = vsub.f32 %v1761, %v2786
        %v3299 = vsub.f32 %v1762, %v2787
        %v3300 = vsub.f32 %v1763, %v2788
        %v3301 = vsub.f32 %v1764, %v2789
        %v3302 = vsub.f32 %v1765, %v2790
        %v3303 = vsub.f32 %v1766, %v2791
        %v3304 = vsub.f32 %v1767, %v2792
        %v3305 = vsub.f32 %v1768, %v2793
        %v3306 = vsub.f32 %v1769, %v2794
        %v3307 = vsub.f32 %v1770, %v2795
        %v3308 = vsub.f32 %v1771, %v2796
        %v3309 = vsub.f32 %v1772, %v2797
        %v3310 = vsub.f32 %v1773, %v2798
        %v3311 = vsub.f32 %v1774, %v2799
        %v3312 = vsub.f32 %v1775, %v2800
        %v3313 = vsub.f32 %v1776, %v2801
        %v3314 = vsub.f32 %v1777, %v2802
        %v3315 = vsub.f32 %v1778, %v2803
        %v3316 = vsub.f32 %v1779, %v2804
        %v3317 = vsub.f32 %v1780, %v2805
        %v3318 = vsub.f32 %v1781, %v2806
        %v3319 = vsub.f32 %v1782, %v2807
        %v3320 = vsub.f32 %v1783, %v2808
        %v3321 = vsub.f32 %v1784, %v2809
        %v3322 = vsub.f32 %v1785, %v2810
        %v3323 = vsub.f32 %v1786, %v2811
        %v3324 = vsub.f32 %v1787, %v2812
        %v3325 = vsub.f32 %v1788, %v2813
        %v3326 = vsub.f32 %v1789, %v2814
        %v3327 = vsub.f32 %v1790, %v2815
        %v3328 = vsub.f32 %v1791, %v2816
        %v3329 = vsub.f32 %v1792, %v2817
        %v3330 = vsub.f32 %v1793, %v2818
        %v3331 = vsub.f32 %v1794, %v2819
        %v3332 = vsub.f32 %v1795, %v2820
        %v3333 = vsub.f32 %v1796, %v2821
        %v3334 = vsub.f32 %v1797, %v2822
        %v3335 = vsub.f32 %v1798, %v2823
        %v3336 = vsub.f32 %v1799, %v2824
        %v3337 = vsub.f32 %v1800, %v2825
        %v3338 = vsub.f32 %v1801, %v2826
        %v3339 = vsub.f32 %v1802, %v2827
        %v3340 = vsub.f32 %v1803, %v2828
        %v3341 = vsub.f32 %v1804, %v2829
        %v3342 = vsub.f32 %v1805, %v2830
        %v3343 = vsub.f32 %v1806, %v2831
        %v3344 = vsub.f32 %v1807, %v2832
        %v3345 = vsub.f32 %v1808, %v2833
        %v3346 = vsub.f32 %v1809, %v2834
        %v3347 = vsub.f32 %v1810, %v2835
        %v3348 = vsub.f32 %v1811, %v2836
        %v3349 = vsub.f32 %v1812, %v2837
        %v3350 = vsub.f32 %v1813, %v2838
        %v3351 = vsub.f32 %v1814, %v2839
        %v3352 = vsub.f32 %v1815, %v2840
        %v3353 = vsub.f32 %v1816, %v2841
        %v3354 = vsub.f32 %v1817, %v2842
        %v3355 = vsub.f32 %v1818, %v2843
        %v3356 = vsub.f32 %v1819, %v2844
        %v3357 = vsub.f32 %v1820, %v2845
        %v3358 = vsub.f32 %v1821, %v2846
        %v3359 = vsub.f32 %v1822, %v2847
        %v3360 = vsub.f32 %v1823, %v2848
        %v3361 = vsub.f32 %v1824, %v2849
        %v3362 = vsub.f32 %v1825, %v2850
        %v3363 = vsub.f32 %v1826, %v2851
        %v3364 = vsub.f32 %v1827, %v2852
        %v3365 = vsub.f32 %v1828, %v2853
        %v3366 = vsub.f32 %v1829, %v2854
        %v3367 = vsub.f32 %v1830, %v2855
        %v3368 = vsub.f32 %v1831, %v2856
        %v3369 = vsub.f32 %v1832, %v2857
        %v3370 = vsub.f32 %v1833, %v2858
        %v3371 = vsub.f32 %v1834, %v2859
        %v3372 = vsub.f32 %v1835, %v2860
        %v3373 = vsub.f32 %v1836, %v2861
        %v3374 = vsub.f32 %v1837, %v2862
        %v3375 = vsub.f32 %v1838, %v2863
        %v3376 = vsub.f32 %v1839, %v2864
        %v3377 = vsub.f32 %v1840, %v2865
        %v3378 = vsub.f32 %v1841, %v2866
        %v3379 = vsub.f32 %v1842, %v2867
        %v3380 = vsub.f32 %v1843, %v2868
        %v3381 = vsub.f32 %v1844, %v2869
        %v3382 = vsub.f32 %v1845, %v2870
        %v3383 = vsub.f32 %v1846, %v2871
        %v3384 = vsub.f32 %v1847, %v2872
        %v3385 = vsub.f32 %v1848, %v2873
        %v3386 = vsub.f32 %v1849, %v2874
        %v3387 = vsub.f32 %v1850, %v2875
        %v3388 = vsub.f32 %v1851, %v2876
        %v3389 = vsub.f32 %v1852, %v2877
        %v3390 = vsub.f32 %v1853, %v2878
        %v3391 = vsub.f32 %v1854, %v2879
        %v3392 = vsub.f32 %v1855, %v2880
        %v3393 = vsub.f32 %v1856, %v2881
        %v3394 = vsub.f32 %v1857, %v2882
        %v3395 = vsub.f32 %v1858, %v2883
        %v3396 = vsub.f32 %v1859, %v2884
        %v3397 = vsub.f32 %v1860, %v2885
        %v3398 = vsub.f32 %v1861, %v2886
        %v3399 = vsub.f32 %v1862, %v2887
        %v3400 = vsub.f32 %v1863, %v2888
        %v3401 = vsub.f32 %v1864, %v2889
        %v3402 = vsub.f32 %v1865, %v2890
        %v3403 = vsub.f32 %v1866, %v2891
        %v3404 = vsub.f32 %v1867, %v2892
        %v3405 = vsub.f32 %v1868, %v2893
        %v3406 = vsub.f32 %v1869, %v2894
        %v3407 = vsub.f32 %v1870, %v2895
        %v3408 = vsub.f32 %v1871, %v2896
        %v3409 = vsub.f32 %v1872, %v2897
        %v3410 = vsub.f32 %v1873, %v2898
        %v3411 = vsub.f32 %v1874, %v2899
        %v3412 = vsub.f32 %v1875, %v2900
        %v3413 = vsub.f32 %v1876, %v2901
        %v3414 = vsub.f32 %v1877, %v2902
        %v3415 = vsub.f32 %v1878, %v2903
        %v3416 = vsub.f32 %v1879, %v2904
        %v3417 = vsub.f32 %v1880, %v2905
        %v3418 = vsub.f32 %v1881, %v2906
        %v3419 = vsub.f32 %v1882, %v2907
        %v3420 = vsub.f32 %v1883, %v2908
        %v3421 = vsub.f32 %v1884, %v2909
        %v3422 = vsub.f32 %v1885, %v2910
        %v3423 = vsub.f32 %v1886, %v2911
        %v3424 = vsub.f32 %v1887, %v2912
        %v3425 = vsub.f32 %v1888, %v2913
        %v3426 = vsub.f32 %v1889, %v2914
        %v3427 = vsub.f32 %v1890, %v2915
        %v3428 = vsub.f32 %v1891, %v2916
        %v3429 = vsub.f32 %v1892, %v2917
        %v3430 = vsub.f32 %v1893, %v2918
        %v3431 = vsub.f32 %v1894, %v2919
        %v3432 = vsub.f32 %v1895, %v2920
        %v3433 = vsub.f32 %v1896, %v2921
        %v3434 = vsub.f32 %v1897, %v2922
        %v3435 = vsub.f32 %v1898, %v2923
        %v3436 = vsub.f32 %v1899, %v2924
        %v3437 = vsub.f32 %v1900, %v2925
        %v3438 = vsub.f32 %v1901, %v2926
        %v3439 = vsub.f32 %v1902, %v2927
        %v3440 = vsub.f32 %v1903, %v2928
        %v3441 = vsub.f32 %v1904, %v2929
        %v3442 = vsub.f32 %v1905, %v2930
        %v3443 = vsub.f32 %v1906, %v2931
        %v3444 = vsub.f32 %v1907, %v2932
        %v3445 = vsub.f32 %v1908, %v2933
        %v3446 = vsub.f32 %v1909, %v2934
        %v3447 = vsub.f32 %v1910, %v2935
        %v3448 = vsub.f32 %v1911, %v2936
        %v3449 = vsub.f32 %v1912, %v2937
        %v3450 = vsub.f32 %v1913, %v2938
        %v3451 = vsub.f32 %v1914, %v2939
        %v3452 = vsub.f32 %v1915, %v2940
        %v3453 = vsub.f32 %v1916, %v2941
        %v3454 = vsub.f32 %v1917, %v2942
        %v3455 = vsub.f32 %v1918, %v2943
        %v3456 = vsub.f32 %v1919, %v2944
        %v3457 = vsub.f32 %v1920, %v2945
        %v3458 = vsub.f32 %v1921, %v2946
        %v3459 = vsub.f32 %v1922, %v2947
        %v3460 = vsub.f32 %v1923, %v2948
        %v3461 = vsub.f32 %v1924, %v2949
        %v3462 = vsub.f32 %v1925, %v2950
        %v3463 = vsub.f32 %v1926, %v2951
        %v3464 = vsub.f32 %v1927, %v2952
        %v3465 = vsub.f32 %v1928, %v2953
        %v3466 = vsub.f32 %v1929, %v2954
        %v3467 = vsub.f32 %v1930, %v2955
        %v3468 = vsub.f32 %v1931, %v2956
        %v3469 = vsub.f32 %v1932, %v2957
        %v3470 = vsub.f32 %v1933, %v2958
        %v3471 = vsub.f32 %v1934, %v2959
        %v3472 = vsub.f32 %v1935, %v2960
        %v3473 = vsub.f32 %v1936, %v2961
        %v3474 = vsub.f32 %v1937, %v2962
        %v3475 = vsub.f32 %v1938, %v2963
        %v3476 = vsub.f32 %v1939, %v2964
        %v3477 = vsub.f32 %v1940, %v2965
        %v3478 = vsub.f32 %v1941, %v2966
        %v3479 = vsub.f32 %v1942, %v2967
        %v3480 = vsub.f32 %v1943, %v2968
        %v3481 = vsub.f32 %v1944, %v2969
        %v3482 = vsub.f32 %v1945, %v2970
        %v3483 = vsub.f32 %v1946, %v2971
        %v3484 = vsub.f32 %v1947, %v2972
        %v3485 = vsub.f32 %v1948, %v2973
        %v3486 = vsub.f32 %v1949, %v2974
        %v3487 = vsub.f32 %v1950, %v2975
        %v3488 = vsub.f32 %v1951, %v2976
        %v3489 = vsub.f32 %v1952, %v2977
        %v3490 = vsub.f32 %v1953, %v2978
        %v3491 = vsub.f32 %v1954, %v2979
        %v3492 = vsub.f32 %v1955, %v2980
        %v3493 = vsub.f32 %v1956, %v2981
        %v3494 = vsub.f32 %v1957, %v2982
        %v3495 = vsub.f32 %v1958, %v2983
        %v3496 = vsub.f32 %v1959, %v2984
        %v3497 = vsub.f32 %v1960, %v2985
        %v3498 = vsub.f32 %v1961, %v2986
        %v3499 = vsub.f32 %v1962, %v2987
        %v3500 = vsub.f32 %v1963, %v2988
        %v3501 = vsub.f32 %v1964, %v2989
        %v3502 = vsub.f32 %v1965, %v2990
        %v3503 = vsub.f32 %v1966, %v2991
        %v3504 = vsub.f32 %v1967, %v2992
        %v3505 = vsub.f32 %v1968, %v2993
        %v3506 = vsub.f32 %v1969, %v2994
        %v3507 = vsub.f32 %v1970, %v2995
        %v3508 = vsub.f32 %v1971, %v2996
        %v3509 = vsub.f32 %v1972, %v2997
        %v3510 = vsub.f32 %v1973, %v2998
        %v3511 = vsub.f32 %v1974, %v2999
        %v3512 = vsub.f32 %v1975, %v3000
        %v3513 = vsub.f32 %v1976, %v3001
        %v3514 = vsub.f32 %v1977, %v3002
        %v3515 = vsub.f32 %v1978, %v3003
        %v3516 = vsub.f32 %v1979, %v3004
        %v3517 = vsub.f32 %v1980, %v3005
        %v3518 = vsub.f32 %v1981, %v3006
        %v3519 = vsub.f32 %v1982, %v3007
        %v3520 = vsub.f32 %v1983, %v3008
        %v3521 = vsub.f32 %v1984, %v3009
        %v3522 = vsub.f32 %v1985, %v3010
        %v3523 = vsub.f32 %v1986, %v3011
        %v3524 = vsub.f32 %v1987, %v3012
        %v3525 = vsub.f32 %v1988, %v3013
        %v3526 = vsub.f32 %v1989, %v3014
        %v3527 = vsub.f32 %v1990, %v3015
        %v3528 = vsub.f32 %v1991, %v3016
        %v3529 = vsub.f32 %v1992, %v3017
        %v3530 = vsub.f32 %v1993, %v3018
        %v3531 = vsub.f32 %v1994, %v3019
        %v3532 = vsub.f32 %v1995, %v3020
        %v3533 = vsub.f32 %v1996, %v3021
        %v3534 = vsub.f32 %v1997, %v3022
        %v3535 = vsub.f32 %v1998, %v3023
        %v3536 = vsub.f32 %v1999, %v3024
        %v3537 = vsub.f32 %v2000, %v3025
        %v3538 = vsub.f32 %v2001, %v3026
        %v3539 = vsub.f32 %v2002, %v3027
        %v3540 = vsub.f32 %v2003, %v3028
        %v3541 = vsub.f32 %v2004, %v3029
        %v3542 = vsub.f32 %v2005, %v3030
        %v3543 = vsub.f32 %v2006, %v3031
        %v3544 = vsub.f32 %v2007, %v3032
        %v3545 = vsub.f32 %v2008, %v3033
        %v3546 = vsub.f32 %v2009, %v3034
        %v3547 = vsub.f32 %v2010, %v3035
        %v3548 = vsub.f32 %v2011, %v3036
        %v3549 = vsub.f32 %v2012, %v3037
        %v3550 = vsub.f32 %v2013, %v3038
        %v3551 = vsub.f32 %v2014, %v3039
        %v3552 = vsub.f32 %v2015, %v3040
        %v3553 = vsub.f32 %v2016, %v3041
        %v3554 = vsub.f32 %v2017, %v3042
        %v3555 = vsub.f32 %v2018, %v3043
        %v3556 = vsub.f32 %v2019, %v3044
        %v3557 = vsub.f32 %v2020, %v3045
        %v3558 = vsub.f32 %v2021, %v3046
        %v3559 = vsub.f32 %v2022, %v3047
        %v3560 = vsub.f32 %v2023, %v3048
        %v3561 = vsub.f32 %v2024, %v3049
        %v3562 = vsub.f32 %v2025, %v3050
        %v3563 = vsub.f32 %v2026, %v3051
        %v3564 = vsub.f32 %v2027, %v3052
        %v3565 = vsub.f32 %v2028, %v3053
        %v3566 = vsub.f32 %v2029, %v3054
        %v3567 = vsub.f32 %v2030, %v3055
        %v3568 = vsub.f32 %v2031, %v3056
        %v3569 = vsub.f32 %v2032, %v3057
        %v3570 = vsub.f32 %v2033, %v3058
        %v3571 = vsub.f32 %v2034, %v3059
        %v3572 = vsub.f32 %v2035, %v3060
        %v3573 = vsub.f32 %v2036, %v3061
        %v3574 = vsub.f32 %v2037, %v3062
        %v3575 = vsub.f32 %v2038, %v3063
        %v3576 = vsub.f32 %v2039, %v3064
        %v3577 = vsub.f32 %v2040, %v3065
        %v3578 = vsub.f32 %v2041, %v3066
        %v3579 = vsub.f32 %v2042, %v3067
        %v3580 = vsub.f32 %v2043, %v3068
        %v3581 = vsub.f32 %v2044, %v3069
        %v3582 = vsub.f32 %v2045, %v3070
        %v3583 = vsub.f32 %v2046, %v3071
        %v3584 = vsub.f32 %v2047, %v3072
        %v3585 = vsub.f32 %v2048, %v3073
        %v3586 = vsub.f32 %v2049, %v3074
        %v3587 = vsub.f32 %v2050, %v3075
        %v3588 = vsub.f32 %v2051, %v3076
        %v3589 = vsub.f32 %v2052, %v3077
        %v3590 = vsub.f32 %v2053, %v3078
        %v3591 = vsub.f32 %v2054, %v3079
        %v3592 = vsub.f32 %v2055, %v3080
        %v3593 = vsub.f32 %v2056, %v3081
        %v3594 = vsub.f32 %v2057, %v3082
        %v3595 = vsub.f32 %v2058, %v3083
        %v3596 = vsub.f32 %v2059, %v3084
        %v3597 = vsub.f32 %v2060, %v3085
        %v3598 = vsub.f32 %v2061, %v3086
        %v3599 = vsub.f32 %v2062, %v3087
        %v3600 = vsub.f32 %v2063, %v3088
        %v3601 = vsub.f32 %v2064, %v3089
        %v3602 = vsub.f32 %v2065, %v3090
        %v3603 = vsub.f32 %v2066, %v3091
        %v3604 = vsub.f32 %v2067, %v3092
        %v3605 = vsub.f32 %v2068, %v3093
        %v3606 = vsub.f32 %v2069, %v3094
        %v3607 = vsub.f32 %v2070, %v3095
        %v3608 = vsub.f32 %v2071, %v3096
        %v3609 = vsub.f32 %v2072, %v3097
        %v3610 = vsub.f32 %v2073, %v3098
        %v3611 = vsub.f32 %v2074, %v3099
        %v3612 = vsub.f32 %v2075, %v3100
        %v3613 = vsub.f32 %v2076, %v3101
        %v3614 = vsub.f32 %v2077, %v3102
        %v3615 = vsub.f32 %v2078, %v3103
        %v3616 = vsub.f32 %v2079, %v3104
        %v3617 = vsub.f32 %v2080, %v3105
        %v3618 = vsub.f32 %v2081, %v3106
        %v3619 = vsub.f32 %v2082, %v3107
        %v3620 = vsub.f32 %v2083, %v3108
        %v3621 = vsub.f32 %v2084, %v3109
        %v3622 = vsub.f32 %v2085, %v3110
        %v3623 = vsub.f32 %v2086, %v3111
        %v3624 = vsub.f32 %v2087, %v3112
        %v3625 = vsub.f32 %v2088, %v3113
        %v3626 = vsub.f32 %v2089, %v3114
        %v3627 = vsub.f32 %v2090, %v3115
        %v3628 = vsub.f32 %v2091, %v3116
        %v3629 = vsub.f32 %v2092, %v3117
        %v3630 = vsub.f32 %v2093, %v3118
        %v3631 = vsub.f32 %v2094, %v3119
        %v3632 = vsub.f32 %v2095, %v3120
        %v3633 = vsub.f32 %v2096, %v3121
        %v3634 = vsub.f32 %v2097, %v3122
        %v3635 = vsub.f32 %v2098, %v3123
        %v3636 = vsub.f32 %v2099, %v3124
        %v3637 = vsub.f32 %v2100, %v3125
        %v3638 = vsub.f32 %v2101, %v3126
        %v3639 = vsub.f32 %v2102, %v3127
        %v3640 = vsub.f32 %v2103, %v3128
        %v3641 = vsub.f32 %v2104, %v3129
        %v3642 = vsub.f32 %v2105, %v3130
        %v3643 = vsub.f32 %v2106, %v3131
        %v3644 = vsub.f32 %v2107, %v3132
        %v3645 = vsub.f32 %v2108, %v3133
        %v3646 = vsub.f32 %v2109, %v3134
        %v3647 = vsub.f32 %v2110, %v3135
        %v3648 = vsub.f32 %v2111, %v3136
        %v3649 = vsub.f32 %v2112, %v3137
        %v3650 = vsub.f32 %v2113, %v3138
        %v3651 = vsub.f32 %v2114, %v3139
        %v3652 = vsub.f32 %v2115, %v3140
        %v3653 = vsub.f32 %v2116, %v3141
        %v3654 = vsub.f32 %v2117, %v3142
        %v3655 = vsub.f32 %v2118, %v3143
        %v3656 = vsub.f32 %v2119, %v3144
        %v3657 = vsub.f32 %v2120, %v3145
        %v3658 = vsub.f32 %v2121, %v3146
        %v3659 = vsub.f32 %v2122, %v3147
        %v3660 = vsub.f32 %v2123, %v3148
        %v3661 = vsub.f32 %v2124, %v3149
        %v3662 = vsub.f32 %v2125, %v3150
        %v3663 = vsub.f32 %v2126, %v3151
        %v3664 = vsub.f32 %v2127, %v3152
        %v3665 = vsub.f32 %v2128, %v3153
        %v3666 = vsub.f32 %v2129, %v3154
        %v3667 = vsub.f32 %v2130, %v3155
        %v3668 = vsub.f32 %v2131, %v3156
        %v3669 = vsub.f32 %v2132, %v3157
        %v3670 = vsub.f32 %v2133, %v3158
        %v3671 = vsub.f32 %v2134, %v3159
        %v3672 = vsub.f32 %v2135, %v3160
        %v3673 = vsub.f32 %v2136, %v3161
        %v3674 = vsub.f32 %v2137, %v3162
        %v3675 = vsub.f32 %v2138, %v3163
        %v3676 = vsub.f32 %v2139, %v3164
        %v3677 = vsub.f32 %v2140, %v3165
        %v3678 = vsub.f32 %v2141, %v3166
        %v3679 = vsub.f32 %v2142, %v3167
        %v3680 = vsub.f32 %v2143, %v3168
        %v3681 = vsub.f32 %v2144, %v3169
        %v3682 = vsub.f32 %v2145, %v3170
        %v3683 = vsub.f32 %v2146, %v3171
        %v3684 = vsub.f32 %v2147, %v3172
        %v3685 = vsub.f32 %v2148, %v3173
        %v3686 = vsub.f32 %v2149, %v3174
        %v3687 = vsub.f32 %v2150, %v3175
        %v3688 = vsub.f32 %v2151, %v3176
        %v3689 = vsub.f32 %v2152, %v3177
        %v3690 = vsub.f32 %v2153, %v3178
        %v3691 = vsub.f32 %v2154, %v3179
        %v3692 = vsub.f32 %v2155, %v3180
        %v3693 = vsub.f32 %v2156, %v3181
        %v3694 = vsub.f32 %v2157, %v3182
        %v3695 = vsub.f32 %v2158, %v3183
        %v3696 = vsub.f32 %v2159, %v3184
        %v3697 = vsub.f32 %v2160, %v3185
        %v3698 = vsub.f32 %v2161, %v3186
        %v3699 = vsub.f32 %v2162, %v3187
        %v3700 = vsub.f32 %v2163, %v3188
        %v3701 = vsub.f32 %v2164, %v3189
        %v3702 = vsub.f32 %v2165, %v3190
        %v3703 = vsub.f32 %v2166, %v3191
        %v3704 = vsub.f32 %v2167, %v3192
        %v3705 = vsub.f32 %v2168, %v3193
        %v3706 = vsub.f32 %v2169, %v3194
        %v3707 = vsub.f32 %v2170, %v3195
        %v3708 = vsub.f32 %v2171, %v3196
        %v3709 = vsub.f32 %v2172, %v3197
        %v3710 = vsub.f32 %v2173, %v3198
        %v3711 = vsub.f32 %v2174, %v3199
        %v3712 = vsub.f32 %v2175, %v3200
        %v3713 = vsub.f32 %v2176, %v3201
        %v3714 = vsub.f32 %v2177, %v3202
        %v3715 = vsub.f32 %v2178, %v3203
        %v3716 = vsub.f32 %v2179, %v3204
        %v3717 = vsub.f32 %v2180, %v3205
        %v3718 = vsub.f32 %v2181, %v3206
        %v3719 = vsub.f32 %v2182, %v3207
        %v3720 = vsub.f32 %v2183, %v3208
        %v3721 = vsub.f32 %v2184, %v3209
        %v3722 = vsub.f32 %v2185, %v3210
        %v3723 = vsub.f32 %v2186, %v3211
        %v3724 = vsub.f32 %v2187, %v3212
        %v3725 = vsub.f32 %v2188, %v3213
        %v3726 = vsub.f32 %v2189, %v3214
        %v3727 = vsub.f32 %v2190, %v3215
        %v3728 = vsub.f32 %v2191, %v3216
        %v3729 = vsub.f32 %v2192, %v3217
        %v3730 = vsub.f32 %v2193, %v3218
        %v3731 = vsub.f32 %v2194, %v3219
        %v3732 = vsub.f32 %v2195, %v3220
        %v3733 = vsub.f32 %v2196, %v3221
        %v3734 = vsub.f32 %v2197, %v3222
        %v3735 = vsub.f32 %v2198, %v3223
        %v3736 = vsub.f32 %v2199, %v3224
        %v3737 = vsub.f32 %v2200, %v3225
        %v3738 = vsub.f32 %v2201, %v3226
        %v3739 = vsub.f32 %v2202, %v3227
        %v3740 = vsub.f32 %v2203, %v3228
        %v3741 = vsub.f32 %v2204, %v3229
        %v3742 = vsub.f32 %v2205, %v3230
        %v3743 = vsub.f32 %v2206, %v3231
        %v3744 = vsub.f32 %v2207, %v3232
        %v3745 = vsub.f32 %v2208, %v3233
        %v3746 = vsub.f32 %v2209, %v3234
        %v3747 = vsub.f32 %v2210, %v3235
        %v3748 = vsub.f32 %v2211, %v3236
        %v3749 = vsub.f32 %v2212, %v3237
        %v3750 = vsub.f32 %v2213, %v3238
        %v3751 = vsub.f32 %v2214, %v3239
        %v3752 = vsub.f32 %v2215, %v3240
        %v3753 = vsub.f32 %v2216, %v3241
        %v3754 = vsub.f32 %v2217, %v3242
        %v3755 = vsub.f32 %v2218, %v3243
        %v3756 = vsub.f32 %v2219, %v3244
        %v3757 = vsub.f32 %v2220, %v3245
        %v3758 = vsub.f32 %v2221, %v3246
        %v3759 = vsub.f32 %v2222, %v3247
        %v3760 = vsub.f32 %v2223, %v3248
        %v3761 = vsub.f32 %v2224, %v3249
        %v3762 = vsub.f32 %v2225, %v3250
        %v3763 = vsub.f32 %v2226, %v3251
        %v3764 = vsub.f32 %v2227, %v3252
        %v3765 = vsub.f32 %v2228, %v3253
        %v3766 = vsub.f32 %v2229, %v3254
        %v3767 = vsub.f32 %v2230, %v3255
        %v3768 = vsub.f32 %v2231, %v3256
        %v3769 = vsub.f32 %v2232, %v3257
        %v3770 = vsub.f32 %v2233, %v3258
        %v3771 = vsub.f32 %v2234, %v3259
        %v3772 = vsub.f32 %v2235, %v3260
        %v3773 = vsub.f32 %v2236, %v3261
        %v3774 = vsub.f32 %v2237, %v3262
        %v3775 = vsub.f32 %v2238, %v3263
        %v3776 = vsub.f32 %v2239, %v3264
        %v3777 = vsub.f32 %v2240, %v3265
        %v3778 = vsub.f32 %v2241, %v3266
        %v3779 = vsub.f32 %v2242, %v3267
        %v3780 = vsub.f32 %v2243, %v3268
        %v3781 = vsub.f32 %v2244, %v3269
        %v3782 = vsub.f32 %v2245, %v3270
        %v3783 = vmul.f32 %v3271, 0.5
        %v3784 = vmul.f32 %v3272, 0.5
        %v3785 = vmul.f32 %v3273, 0.5
        %v3786 = vmul.f32 %v3274, 0.5
        %v3787 = vmul.f32 %v3275, 0.5
        %v3788 = vmul.f32 %v3276, 0.5
        %v3789 = vmul.f32 %v3277, 0.5
        %v3790 = vmul.f32 %v3278, 0.5
        %v3791 = vmul.f32 %v3279, 0.5
        %v3792 = vmul.f32 %v3280, 0.5
        %v3793 = vmul.f32 %v3281, 0.5
        %v3794 = vmul.f32 %v3282, 0.5
        %v3795 = vmul.f32 %v3283, 0.5
        %v3796 = vmul.f32 %v3284, 0.5
        %v3797 = vmul.f32 %v3285, 0.5
        %v3798 = vmul.f32 %v3286, 0.5
        %v3799 = vmul.f32 %v3287, 0.5
        %v3800 = vmul.f32 %v3288, 0.5
        %v3801 = vmul.f32 %v3289, 0.5
        %v3802 = vmul.f32 %v3290, 0.5
        %v3803 = vmul.f32 %v3291, 0.5
        %v3804 = vmul.f32 %v3292, 0.5
        %v3805 = vmul.f32 %v3293, 0.5
        %v3806 = vmul.f32 %v3294, 0.5
        %v3807 = vmul.f32 %v3295, 0.5
        %v3808 = vmul.f32 %v3296, 0.5
        %v3809 = vmul.f32 %v3297, 0.5
        %v3810 = vmul.f32 %v3298, 0.5
        %v3811 = vmul.f32 %v3299, 0.5
        %v3812 = vmul.f32 %v3300, 0.5
        %v3813 = vmul.f32 %v3301, 0.5
        %v3814 = vmul.f32 %v3302, 0.5
        %v3815 = vmul.f32 %v3303, 0.5
        %v3816 = vmul.f32 %v3304, 0.5
        %v3817 = vmul.f32 %v3305, 0.5
        %v3818 = vmul.f32 %v3306, 0.5
        %v3819 = vmul.f32 %v3307, 0.5
        %v3820 = vmul.f32 %v3308, 0.5
        %v3821 = vmul.f32 %v3309, 0.5
        %v3822 = vmul.f32 %v3310, 0.5
        %v3823 = vmul.f32 %v3311, 0.5
        %v3824 = vmul.f32 %v3312, 0.5
        %v3825 = vmul.f32 %v3313, 0.5
        %v3826 = vmul.f32 %v3314, 0.5
        %v3827 = vmul.f32 %v3315, 0.5
        %v3828 = vmul.f32 %v3316, 0.5
        %v3829 = vmul.f32 %v3317, 0.5
        %v3830 = vmul.f32 %v3318, 0.5
        %v3831 = vmul.f32 %v3319, 0.5
        %v3832 = vmul.f32 %v3320, 0.5
        %v3833 = vmul.f32 %v3321, 0.5
        %v3834 = vmul.f32 %v3322, 0.5
        %v3835 = vmul.f32 %v3323, 0.5
        %v3836 = vmul.f32 %v3324, 0.5
        %v3837 = vmul.f32 %v3325, 0.5
        %v3838 = vmul.f32 %v3326, 0.5
        %v3839 = vmul.f32 %v3327, 0.5
        %v3840 = vmul.f32 %v3328, 0.5
        %v3841 = vmul.f32 %v3329, 0.5
        %v3842 = vmul.f32 %v3330, 0.5
        %v3843 = vmul.f32 %v3331, 0.5
        %v3844 = vmul.f32 %v3332, 0.5
        %v3845 = vmul.f32 %v3333, 0.5
        %v3846 = vmul.f32 %v3334, 0.5
        %v3847 = vmul.f32 %v3335, 0.5
        %v3848 = vmul.f32 %v3336, 0.5
        %v3849 = vmul.f32 %v3337, 0.5
        %v3850 = vmul.f32 %v3338, 0.5
        %v3851 = vmul.f32 %v3339, 0.5
        %v3852 = vmul.f32 %v3340, 0.5
        %v3853 = vmul.f32 %v3341, 0.5
        %v3854 = vmul.f32 %v3342, 0.5
        %v3855 = vmul.f32 %v3343, 0.5
        %v3856 = vmul.f32 %v3344, 0.5
        %v3857 = vmul.f32 %v3345, 0.5
        %v3858 = vmul.f32 %v3346, 0.5
        %v3859 = vmul.f32 %v3347, 0.5
        %v3860 = vmul.f32 %v3348, 0.5
        %v3861 = vmul.f32 %v3349, 0.5
        %v3862 = vmul.f32 %v3350, 0.5
        %v3863 = vmul.f32 %v3351, 0.5
        %v3864 = vmul.f32 %v3352, 0.5
        %v3865 = vmul.f32 %v3353, 0.5
        %v3866 = vmul.f32 %v3354, 0.5
        %v3867 = vmul.f32 %v3355, 0.5
        %v3868 = vmul.f32 %v3356, 0.5
        %v3869 = vmul.f32 %v3357, 0.5
        %v3870 = vmul.f32 %v3358, 0.5
        %v3871 = vmul.f32 %v3359, 0.5
        %v3872 = vmul.f32 %v3360, 0.5
        %v3873 = vmul.f32 %v3361, 0.5
        %v3874 = vmul.f32 %v3362, 0.5
        %v3875 = vmul.f32 %v3363, 0.5
        %v3876 = vmul.f32 %v3364, 0.5
        %v3877 = vmul.f32 %v3365, 0.5
        %v3878 = vmul.f32 %v3366, 0.5
        %v3879 = vmul.f32 %v3367, 0.5
        %v3880 = vmul.f32 %v3368, 0.5
        %v3881 = vmul.f32 %v3369, 0.5
        %v3882 = vmul.f32 %v3370, 0.5
        %v3883 = vmul.f32 %v3371, 0.5
        %v3884 = vmul.f32 %v3372, 0.5
        %v3885 = vmul.f32 %v3373, 0.5
        %v3886 = vmul.f32 %v3374, 0.5
        %v3887 = vmul.f32 %v3375, 0.5
        %v3888 = vmul.f32 %v3376, 0.5
        %v3889 = vmul.f32 %v3377, 0.5
        %v3890 = vmul.f32 %v3378, 0.5
        %v3891 = vmul.f32 %v3379, 0.5
        %v3892 = vmul.f32 %v3380, 0.5
        %v3893 = vmul.f32 %v3381, 0.5
        %v3894 = vmul.f32 %v3382, 0.5
        %v3895 = vmul.f32 %v3383, 0.5
        %v3896 = vmul.f32 %v3384, 0.5
        %v3897 = vmul.f32 %v3385, 0.5
        %v3898 = vmul.f32 %v3386, 0.5
        %v3899 = vmul.f32 %v3387, 0.5
        %v3900 = vmul.f32 %v3388, 0.5
        %v3901 = vmul.f32 %v3389, 0.5
        %v3902 = vmul.f32 %v3390, 0.5
        %v3903 = vmul.f32 %v3391, 0.5
        %v3904 = vmul.f32 %v3392, 0.5
        %v3905 = vmul.f32 %v3393, 0.5
        %v3906 = vmul.f32 %v3394, 0.5
        %v3907 = vmul.f32 %v3395, 0.5
        %v3908 = vmul.f32 %v3396, 0.5
        %v3909 = vmul.f32 %v3397, 0.5
        %v3910 = vmul.f32 %v3398, 0.5
        %v3911 = vmul.f32 %v3399, 0.5
        %v3912 = vmul.f32 %v3400, 0.5
        %v3913 = vmul.f32 %v3401, 0.5
        %v3914 = vmul.f32 %v3402, 0.5
        %v3915 = vmul.f32 %v3403, 0.5
        %v3916 = vmul.f32 %v3404, 0.5
        %v3917 = vmul.f32 %v3405, 0.5
        %v3918 = vmul.f32 %v3406, 0.5
        %v3919 = vmul.f32 %v3407, 0.5
        %v3920 = vmul.f32 %v3408, 0.5
        %v3921 = vmul.f32 %v3409, 0.5
        %v3922 = vmul.f32 %v3410, 0.5
        %v3923 = vmul.f32 %v3411, 0.5
        %v3924 = vmul.f32 %v3412, 0.5
        %v3925 = vmul.f32 %v3413, 0.5
        %v3926 = vmul.f32 %v3414, 0.5
        %v3927 = vmul.f32 %v3415, 0.5
        %v3928 = vmul.f32 %v3416, 0.5
        %v3929 = vmul.f32 %v3417, 0.5
        %v3930 = vmul.f32 %v3418, 0.5
        %v3931 = vmul.f32 %v3419, 0.5
        %v3932 = vmul.f32 %v3420, 0.5
        %v3933 = vmul.f32 %v3421, 0.5
        %v3934 = vmul.f32 %v3422, 0.5
        %v3935 = vmul.f32 %v3423, 0.5
        %v3936 = vmul.f32 %v3424, 0.5
        %v3937 = vmul.f32 %v3425, 0.5
        %v3938 = vmul.f32 %v3426, 0.5
        %v3939 = vmul.f32 %v3427, 0.5
        %v3940 = vmul.f32 %v3428, 0.5
        %v3941 = vmul.f32 %v3429, 0.5
        %v3942 = vmul.f32 %v3430, 0.5
        %v3943 = vmul.f32 %v3431, 0.5
        %v3944 = vmul.f32 %v3432, 0.5
        %v3945 = vmul.f32 %v3433, 0.5
        %v3946 = vmul.f32 %v3434, 0.5
        %v3947 = vmul.f32 %v3435, 0.5
        %v3948 = vmul.f32 %v3436, 0.5
        %v3949 = vmul.f32 %v3437, 0.5
        %v3950 = vmul.f32 %v3438, 0.5
        %v3951 = vmul.f32 %v3439, 0.5
        %v3952 = vmul.f32 %v3440, 0.5
        %v3953 = vmul.f32 %v3441, 0.5
        %v3954 = vmul.f32 %v3442, 0.5
        %v3955 = vmul.f32 %v3443, 0.5
        %v3956 = vmul.f32 %v3444, 0.5
        %v3957 = vmul.f32 %v3445, 0.5
        %v3958 = vmul.f32 %v3446, 0.5
        %v3959 = vmul.f32 %v3447, 0.5
        %v3960 = vmul.f32 %v3448, 0.5
        %v3961 = vmul.f32 %v3449, 0.5
        %v3962 = vmul.f32 %v3450, 0.5
        %v3963 = vmul.f32 %v3451, 0.5
        %v3964 = vmul.f32 %v3452, 0.5
        %v3965 = vmul.f32 %v3453, 0.5
        %v3966 = vmul.f32 %v3454, 0.5
        %v3967 = vmul.f32 %v3455, 0.5
        %v3968 = vmul.f32 %v3456, 0.5
        %v3969 = vmul.f32 %v3457, 0.5
        %v3970 = vmul.f32 %v3458, 0.5
        %v3971 = vmul.f32 %v3459, 0.5
        %v3972 = vmul.f32 %v3460, 0.5
        %v3973 = vmul.f32 %v3461, 0.5
        %v3974 = vmul.f32 %v3462, 0.5
        %v3975 = vmul.f32 %v3463, 0.5
        %v3976 = vmul.f32 %v3464, 0.5
        %v3977 = vmul.f32 %v3465, 0.5
        %v3978 = vmul.f32 %v3466, 0.5
        %v3979 = vmul.f32 %v3467, 0.5
        %v3980 = vmul.f32 %v3468, 0.5
        %v3981 = vmul.f32 %v3469, 0.5
        %v3982 = vmul.f32 %v3470, 0.5
        %v3983 = vmul.f32 %v3471, 0.5
        %v3984 = vmul.f32 %v3472, 0.5
        %v3985 = vmul.f32 %v3473, 0.5
        %v3986 = vmul.f32 %v3474, 0.5
        %v3987 = vmul.f32 %v3475, 0.5
        %v3988 = vmul.f32 %v3476, 0.5
        %v3989 = vmul.f32 %v3477, 0.5
        %v3990 = vmul.f32 %v3478, 0.5
        %v3991 = vmul.f32 %v3479, 0.5
        %v3992 = vmul.f32 %v3480, 0.5
        %v3993 = vmul.f32 %v3481, 0.5
        %v3994 = vmul.f32 %v3482, 0.5
        %v3995 = vmul.f32 %v3483, 0.5
        %v3996 = vmul.f32 %v3484, 0.5
        %v3997 = vmul.f32 %v3485, 0.5
        %v3998 = vmul.f32 %v3486, 0.5
        %v3999 = vmul.f32 %v3487, 0.5
        %v4000 = vmul.f32 %v3488, 0.5
        %v4001 = vmul.f32 %v3489, 0.5
        %v4002 = vmul.f32 %v3490, 0.5
        %v4003 = vmul.f32 %v3491, 0.5
        %v4004 = vmul.f32 %v3492, 0.5
        %v4005 = vmul.f32 %v3493, 0.5
        %v4006 = vmul.f32 %v3494, 0.5
        %v4007 = vmul.f32 %v3495, 0.5
        %v4008 = vmul.f32 %v3496, 0.5
        %v4009 = vmul.f32 %v3497, 0.5
        %v4010 = vmul.f32 %v3498, 0.5
        %v4011 = vmul.f32 %v3499, 0.5
        %v4012 = vmul.f32 %v3500, 0.5
        %v4013 = vmul.f32 %v3501, 0.5
        %v4014 = vmul.f32 %v3502, 0.5
        %v4015 = vmul.f32 %v3503, 0.5
        %v4016 = vmul.f32 %v3504, 0.5
        %v4017 = vmul.f32 %v3505, 0.5
        %v4018 = vmul.f32 %v3506, 0.5
        %v4019 = vmul.f32 %v3507, 0.5
        %v4020 = vmul.f32 %v3508, 0.5
        %v4021 = vmul.f32 %v3509, 0.5
        %v4022 = vmul.f32 %v3510, 0.5
        %v4023 = vmul.f32 %v3511, 0.5
        %v4024 = vmul.f32 %v3512, 0.5
        %v4025 = vmul.f32 %v3513, 0.5
        %v4026 = vmul.f32 %v3514, 0.5
        %v4027 = vmul.f32 %v3515, 0.5
        %v4028 = vmul.f32 %v3516, 0.5
        %v4029 = vmul.f32 %v3517, 0.5
        %v4030 = vmul.f32 %v3518, 0.5
        %v4031 = vmul.f32 %v3519, 0.5
        %v4032 = vmul.f32 %v3520, 0.5
        %v4033 = vmul.f32 %v3521, 0.5
        %v4034 = vmul.f32 %v3522, 0.5
        %v4035 = vmul.f32 %v3523, 0.5
        %v4036 = vmul.f32 %v3524, 0.5
        %v4037 = vmul.f32 %v3525, 0.5
        %v4038 = vmul.f32 %v3526, 0.5
        %v4039 = vmul.f32 %v3527, 0.5
        %v4040 = vmul.f32 %v3528, 0.5
        %v4041 = vmul.f32 %v3529, 0.5
        %v4042 = vmul.f32 %v3530, 0.5
        %v4043 = vmul.f32 %v3531, 0.5
        %v4044 = vmul.f32 %v3532, 0.5
        %v4045 = vmul.f32 %v3533, 0.5
        %v4046 = vmul.f32 %v3534, 0.5
        %v4047 = vmul.f32 %v3535, 0.5
        %v4048 = vmul.f32 %v3536, 0.5
        %v4049 = vmul.f32 %v3537, 0.5
        %v4050 = vmul.f32 %v3538, 0.5
        %v4051 = vmul.f32 %v3539, 0.5
        %v4052 = vmul.f32 %v3540, 0.5
        %v4053 = vmul.f32 %v3541, 0.5
        %v4054 = vmul.f32 %v3542, 0.5
        %v4055 = vmul.f32 %v3543, 0.5
        %v4056 = vmul.f32 %v3544, 0.5
        %v4057 = vmul.f32 %v3545, 0.5
        %v4058 = vmul.f32 %v3546, 0.5
        %v4059 = vmul.f32 %v3547, 0.5
        %v4060 = vmul.f32 %v3548, 0.5
        %v4061 = vmul.f32 %v3549, 0.5
        %v4062 = vmul.f32 %v3550, 0.5
        %v4063 = vmul.f32 %v3551, 0.5
        %v4064 = vmul.f32 %v3552, 0.5
        %v4065 = vmul.f32 %v3553, 0.5
        %v4066 = vmul.f32 %v3554, 0.5
        %v4067 = vmul.f32 %v3555, 0.5
        %v4068 = vmul.f32 %v3556, 0.5
        %v4069 = vmul.f32 %v3557, 0.5
        %v4070 = vmul.f32 %v3558, 0.5
        %v4071 = vmul.f32 %v3559, 0.5
        %v4072 = vmul.f32 %v3560, 0.5
        %v4073 = vmul.f32 %v3561, 0.5
        %v4074 = vmul.f32 %v3562, 0.5
        %v4075 = vmul.f32 %v3563, 0.5
        %v4076 = vmul.f32 %v3564, 0.5
        %v4077 = vmul.f32 %v3565, 0.5
        %v4078 = vmul.f32 %v3566, 0.5
        %v4079 = vmul.f32 %v3567, 0.5
        %v4080 = vmul.f32 %v3568, 0.5
        %v4081 = vmul.f32 %v3569, 0.5
        %v4082 = vmul.f32 %v3570, 0.5
        %v4083 = vmul.f32 %v3571, 0.5
        %v4084 = vmul.f32 %v3572, 0.5
        %v4085 = vmul.f32 %v3573, 0.5
        %v4086 = vmul.f32 %v3574, 0.5
        %v4087 = vmul.f32 %v3575, 0.5
        %v4088 = vmul.f32 %v3576, 0.5
        %v4089 = vmul.f32 %v3577, 0.5
        %v4090 = vmul.f32 %v3578, 0.5
        %v4091 = vmul.f32 %v3579, 0.5
        %v4092 = vmul.f32 %v3580, 0.5
        %v4093 = vmul.f32 %v3581, 0.5
        %v4094 = vmul.f32 %v3582, 0.5
        %v4095 = vmul.f32 %v3583, 0.5
        %v4096 = vmul.f32 %v3584, 0.5
        %v4097 = vmul.f32 %v3585, 0.5
        %v4098 = vmul.f32 %v3586, 0.5
        %v4099 = vmul.f32 %v3587, 0.5
        %v4100 = vmul.f32 %v3588, 0.5
        %v4101 = vmul.f32 %v3589, 0.5
        %v4102 = vmul.f32 %v3590, 0.5
        %v4103 = vmul.f32 %v3591, 0.5
        %v4104 = vmul.f32 %v3592, 0.5
        %v4105 = vmul.f32 %v3593, 0.5
        %v4106 = vmul.f32 %v3594, 0.5
        %v4107 = vmul.f32 %v3595, 0.5
        %v4108 = vmul.f32 %v3596, 0.5
        %v4109 = vmul.f32 %v3597, 0.5
        %v4110 = vmul.f32 %v3598, 0.5
        %v4111 = vmul.f32 %v3599, 0.5
        %v4112 = vmul.f32 %v3600, 0.5
        %v4113 = vmul.f32 %v3601, 0.5
        %v4114 = vmul.f32 %v3602, 0.5
        %v4115 = vmul.f32 %v3603, 0.5
        %v4116 = vmul.f32 %v3604, 0.5
        %v4117 = vmul.f32 %v3605, 0.5
        %v4118 = vmul.f32 %v3606, 0.5
        %v4119 = vmul.f32 %v3607, 0.5
        %v4120 = vmul.f32 %v3608, 0.5
        %v4121 = vmul.f32 %v3609, 0.5
        %v4122 = vmul.f32 %v3610, 0.5
        %v4123 = vmul.f32 %v3611, 0.5
        %v4124 = vmul.f32 %v3612, 0.5
        %v4125 = vmul.f32 %v3613, 0.5
        %v4126 = vmul.f32 %v3614, 0.5
        %v4127 = vmul.f32 %v3615, 0.5
        %v4128 = vmul.f32 %v3616, 0.5
        %v4129 = vmul.f32 %v3617, 0.5
        %v4130 = vmul.f32 %v3618, 0.5
        %v4131 = vmul.f32 %v3619, 0.5
        %v4132 = vmul.f32 %v3620, 0.5
        %v4133 = vmul.f32 %v3621, 0.5
        %v4134 = vmul.f32 %v3622, 0.5
        %v4135 = vmul.f32 %v3623, 0.5
        %v4136 = vmul.f32 %v3624, 0.5
        %v4137 = vmul.f32 %v3625, 0.5
        %v4138 = vmul.f32 %v3626, 0.5
        %v4139 = vmul.f32 %v3627, 0.5
        %v4140 = vmul.f32 %v3628, 0.5
        %v4141 = vmul.f32 %v3629, 0.5
        %v4142 = vmul.f32 %v3630, 0.5
        %v4143 = vmul.f32 %v3631, 0.5
        %v4144 = vmul.f32 %v3632, 0.5
        %v4145 = vmul.f32 %v3633, 0.5
        %v4146 = vmul.f32 %v3634, 0.5
        %v4147 = vmul.f32 %v3635, 0.5
        %v4148 = vmul.f32 %v3636, 0.5
        %v4149 = vmul.f32 %v3637, 0.5
        %v4150 = vmul.f32 %v3638, 0.5
        %v4151 = vmul.f32 %v3639, 0.5
        %v4152 = vmul.f32 %v3640, 0.5
        %v4153 = vmul.f32 %v3641, 0.5
        %v4154 = vmul.f32 %v3642, 0.5
        %v4155 = vmul.f32 %v3643, 0.5
        %v4156 = vmul.f32 %v3644, 0.5
        %v4157 = vmul.f32 %v3645, 0.5
        %v4158 = vmul.f32 %v3646, 0.5
        %v4159 = vmul.f32 %v3647, 0.5
        %v4160 = vmul.f32 %v3648, 0.5
        %v4161 = vmul.f32 %v3649, 0.5
        %v4162 = vmul.f32 %v3650, 0.5
        %v4163 = vmul.f32 %v3651, 0.5
        %v4164 = vmul.f32 %v3652, 0.5
        %v4165 = vmul.f32 %v3653, 0.5
        %v4166 = vmul.f32 %v3654, 0.5
        %v4167 = vmul.f32 %v3655, 0.5
        %v4168 = vmul.f32 %v3656, 0.5
        %v4169 = vmul.f32 %v3657, 0.5
        %v4170 = vmul.f32 %v3658, 0.5
        %v4171 = vmul.f32 %v3659, 0.5
        %v4172 = vmul.f32 %v3660, 0.5
        %v4173 = vmul.f32 %v3661, 0.5
        %v4174 = vmul.f32 %v3662, 0.5
        %v4175 = vmul.f32 %v3663, 0.5
        %v4176 = vmul.f32 %v3664, 0.5
        %v4177 = vmul.f32 %v3665, 0.5
        %v4178 = vmul.f32 %v3666, 0.5
        %v4179 = vmul.f32 %v3667, 0.5
        %v4180 = vmul.f32 %v3668, 0.5
        %v4181 = vmul.f32 %v3669, 0.5
        %v4182 = vmul.f32 %v3670, 0.5
        %v4183 = vmul.f32 %v3671, 0.5
        %v4184 = vmul.f32 %v3672, 0.5
        %v4185 = vmul.f32 %v3673, 0.5
        %v4186 = vmul.f32 %v3674, 0.5
        %v4187 = vmul.f32 %v3675, 0.5
        %v4188 = vmul.f32 %v3676, 0.5
        %v4189 = vmul.f32 %v3677, 0.5
        %v4190 = vmul.f32 %v3678, 0.5
        %v4191 = vmul.f32 %v3679, 0.5
        %v4192 = vmul.f32 %v3680, 0.5
        %v4193 = vmul.f32 %v3681, 0.5
        %v4194 = vmul.f32 %v3682, 0.5
        %v4195 = vmul.f32 %v3683, 0.5
        %v4196 = vmul.f32 %v3684, 0.5
        %v4197 = vmul.f32 %v3685, 0.5
        %v4198 = vmul.f32 %v3686, 0.5
        %v4199 = vmul.f32 %v3687, 0.5
        %v4200 = vmul.f32 %v3688, 0.5
        %v4201 = vmul.f32 %v3689, 0.5
        %v4202 = vmul.f32 %v3690, 0.5
        %v4203 = vmul.f32 %v3691, 0.5
        %v4204 = vmul.f32 %v3692, 0.5
        %v4205 = vmul.f32 %v3693, 0.5
        %v4206 = vmul.f32 %v3694, 0.5
        %v4207 = vmul.f32 %v3695, 0.5
        %v4208 = vmul.f32 %v3696, 0.5
        %v4209 = vmul.f32 %v3697, 0.5
        %v4210 = vmul.f32 %v3698, 0.5
        %v4211 = vmul.f32 %v3699, 0.5
        %v4212 = vmul.f32 %v3700, 0.5
        %v4213 = vmul.f32 %v3701, 0.5
        %v4214 = vmul.f32 %v3702, 0.5
        %v4215 = vmul.f32 %v3703, 0.5
        %v4216 = vmul.f32 %v3704, 0.5
        %v4217 = vmul.f32 %v3705, 0.5
        %v4218 = vmul.f32 %v3706, 0.5
        %v4219 = vmul.f32 %v3707, 0.5
        %v4220 = vmul.f32 %v3708, 0.5
        %v4221 = vmul.f32 %v3709, 0.5
        %v4222 = vmul.f32 %v3710, 0.5
        %v4223 = vmul.f32 %v3711, 0.5
        %v4224 = vmul.f32 %v3712, 0.5
        %v4225 = vmul.f32 %v3713, 0.5
        %v4226 = vmul.f32 %v3714, 0.5
        %v4227 = vmul.f32 %v3715, 0.5
        %v4228 = vmul.f32 %v3716, 0.5
        %v4229 = vmul.f32 %v3717, 0.5
        %v4230 = vmul.f32 %v3718, 0.5
        %v4231 = vmul.f32 %v3719, 0.5
        %v4232 = vmul.f32 %v3720, 0.5
        %v4233 = vmul.f32 %v3721, 0.5
        %v4234 = vmul.f32 %v3722, 0.5
        %v4235 = vmul.f32 %v3723, 0.5
        %v4236 = vmul.f32 %v3724, 0.5
        %v4237 = vmul.f32 %v3725, 0.5
        %v4238 = vmul.f32 %v3726, 0.5
        %v4239 = vmul.f32 %v3727, 0.5
        %v4240 = vmul.f32 %v3728, 0.5
        %v4241 = vmul.f32 %v3729, 0.5
        %v4242 = vmul.f32 %v3730, 0.5
        %v4243 = vmul.f32 %v3731, 0.5
        %v4244 = vmul.f32 %v3732, 0.5
        %v4245 = vmul.f32 %v3733, 0.5
        %v4246 = vmul.f32 %v3734, 0.5
        %v4247 = vmul.f32 %v3735, 0.5
        %v4248 = vmul.f32 %v3736, 0.5
        %v4249 = vmul.f32 %v3737, 0.5
        %v4250 = vmul.f32 %v3738, 0.5
        %v4251 = vmul.f32 %v3739, 0.5
        %v4252 = vmul.f32 %v3740, 0.5
        %v4253 = vmul.f32 %v3741, 0.5
        %v4254 = vmul.f32 %v3742, 0.5
        %v4255 = vmul.f32 %v3743, 0.5
        %v4256 = vmul.f32 %v3744, 0.5
        %v4257 = vmul.f32 %v3745, 0.5
        %v4258 = vmul.f32 %v3746, 0.5
        %v4259 = vmul.f32 %v3747, 0.5
        %v4260 = vmul.f32 %v3748, 0.5
        %v4261 = vmul.f32 %v3749, 0.5
        %v4262 = vmul.f32 %v3750, 0.5
        %v4263 = vmul.f32 %v3751, 0.5
        %v4264 = vmul.f32 %v3752, 0.5
        %v4265 = vmul.f32 %v3753, 0.5
        %v4266 = vmul.f32 %v3754, 0.5
        %v4267 = vmul.f32 %v3755, 0.5
        %v4268 = vmul.f32 %v3756, 0.5
        %v4269 = vmul.f32 %v3757, 0.5
        %v4270 = vmul.f32 %v3758, 0.5
        %v4271 = vmul.f32 %v3759, 0.5
        %v4272 = vmul.f32 %v3760, 0.5
        %v4273 = vmul.f32 %v3761, 0.5
        %v4274 = vmul.f32 %v3762, 0.5
        %v4275 = vmul.f32 %v3763, 0.5
        %v4276 = vmul.f32 %v3764, 0.5
        %v4277 = vmul.f32 %v3765, 0.5
        %v4278 = vmul.f32 %v3766, 0.5
        %v4279 = vmul.f32 %v3767, 0.5
        %v4280 = vmul.f32 %v3768, 0.5
        %v4281 = vmul.f32 %v3769, 0.5
        %v4282 = vmul.f32 %v3770, 0.5
        %v4283 = vmul.f32 %v3771, 0.5
        %v4284 = vmul.f32 %v3772, 0.5
        %v4285 = vmul.f32 %v3773, 0.5
        %v4286 = vmul.f32 %v3774, 0.5
        %v4287 = vmul.f32 %v3775, 0.5
        %v4288 = vmul.f32 %v3776, 0.5
        %v4289 = vmul.f32 %v3777, 0.5
        %v4290 = vmul.f32 %v3778, 0.5
        %v4291 = vmul.f32 %v3779, 0.5
        %v4292 = vmul.f32 %v3780, 0.5
        %v4293 = vmul.f32 %v3781, 0.5
        %v4294 = vmul.f32 %v3782, 0.5
        %v4295 = vadd.f32 %v3783, 1.0
        %v4296 = vadd.f32 %v3784, 1.0
        %v4297 = vadd.f32 %v3785, 1.0
        %v4298 = vadd.f32 %v3786, 1.0
        %v4299 = vadd.f32 %v3787, 1.0
        %v4300 = vadd.f32 %v3788, 1.0
        %v4301 = vadd.f32 %v3789, 1.0
        %v4302 = vadd.f32 %v3790, 1.0
        %v4303 = vadd.f32 %v3791, 1.0
        %v4304 = vadd.f32 %v3792, 1.0
        %v4305 = vadd.f32 %v3793, 1.0
        %v4306 = vadd.f32 %v3794, 1.0
        %v4307 = vadd.f32 %v3795, 1.0
        %v4308 = vadd.f32 %v3796, 1.0
        %v4309 = vadd.f32 %v3797, 1.0
        %v4310 = vadd.f32 %v3798, 1.0
        %v4311 = vadd.f32 %v3799, 1.0
        %v4312 = vadd.f32 %v3800, 1.0
        %v4313 = vadd.f32 %v3801, 1.0
        %v4314 = vadd.f32 %v3802, 1.0
        %v4315 = vadd.f32 %v3803, 1.0
        %v4316 = vadd.f32 %v3804, 1.0
        %v4317 = vadd.f32 %v3805, 1.0
        %v4318 = vadd.f32 %v3806, 1.0
        %v4319 = vadd.f32 %v3807, 1.0
        %v4320 = vadd.f32 %v3808, 1.0
        %v4321 = vadd.f32 %v3809, 1.0
        %v4322 = vadd.f32 %v3810, 1.0
        %v4323 = vadd.f32 %v3811, 1.0
        %v4324 = vadd.f32 %v3812, 1.0
        %v4325 = vadd.f32 %v3813, 1.0
        %v4326 = vadd.f32 %v3814, 1.0
        %v4327 = vadd.f32 %v3815, 1.0
        %v4328 = vadd.f32 %v3816, 1.0
        %v4329 = vadd.f32 %v3817, 1.0
        %v4330 = vadd.f32 %v3818, 1.0
        %v4331 = vadd.f32 %v3819, 1.0
        %v4332 = vadd.f32 %v3820, 1.0
        %v4333 = vadd.f32 %v3821, 1.0
        %v4334 = vadd.f32 %v3822, 1.0
        %v4335 = vadd.f32 %v3823, 1.0
        %v4336 = vadd.f32 %v3824, 1.0
        %v4337 = vadd.f32 %v3825, 1.0
        %v4338 = vadd.f32 %v3826, 1.0
        %v4339 = vadd.f32 %v3827, 1.0
        %v4340 = vadd.f32 %v3828, 1.0
        %v4341 = vadd.f32 %v3829, 1.0
        %v4342 = vadd.f32 %v3830, 1.0
        %v4343 = vadd.f32 %v3831, 1.0
        %v4344 = vadd.f32 %v3832, 1.0
        %v4345 = vadd.f32 %v3833, 1.0
        %v4346 = vadd.f32 %v3834, 1.0
        %v4347 = vadd.f32 %v3835, 1.0
        %v4348 = vadd.f32 %v3836, 1.0
        %v4349 = vadd.f32 %v3837, 1.0
        %v4350 = vadd.f32 %v3838, 1.0
        %v4351 = vadd.f32 %v3839, 1.0
        %v4352 = vadd.f32 %v3840, 1.0
        %v4353 = vadd.f32 %v3841, 1.0
        %v4354 = vadd.f32 %v3842, 1.0
        %v4355 = vadd.f32 %v3843, 1.0
        %v4356 = vadd.f32 %v3844, 1.0
        %v4357 = vadd.f32 %v3845, 1.0
        %v4358 = vadd.f32 %v3846, 1.0
        %v4359 = vadd.f32 %v3847, 1.0
        %v4360 = vadd.f32 %v3848, 1.0
        %v4361 = vadd.f32 %v3849, 1.0
        %v4362 = vadd.f32 %v3850, 1.0
        %v4363 = vadd.f32 %v3851, 1.0
        %v4364 = vadd.f32 %v3852, 1.0
        %v4365 = vadd.f32 %v3853, 1.0
        %v4366 = vadd.f32 %v3854, 1.0
        %v4367 = vadd.f32 %v3855, 1.0
        %v4368 = vadd.f32 %v3856, 1.0
        %v4369 = vadd.f32 %v3857, 1.0
        %v4370 = vadd.f32 %v3858, 1.0
        %v4371 = vadd.f32 %v3859, 1.0
        %v4372 = vadd.f32 %v3860, 1.0
        %v4373 = vadd.f32 %v3861, 1.0
        %v4374 = vadd.f32 %v3862, 1.0
        %v4375 = vadd.f32 %v3863, 1.0
        %v4376 = vadd.f32 %v3864, 1.0
        %v4377 = vadd.f32 %v3865, 1.0
        %v4378 = vadd.f32 %v3866, 1.0
        %v4379 = vadd.f32 %v3867, 1.0
        %v4380 = vadd.f32 %v3868, 1.0
        %v4381 = vadd.f32 %v3869, 1.0
        %v4382 = vadd.f32 %v3870, 1.0
        %v4383 = vadd.f32 %v3871, 1.0
        %v4384 = vadd.f32 %v3872, 1.0
        %v4385 = vadd.f32 %v3873, 1.0
        %v4386 = vadd.f32 %v3874, 1.0
        %v4387 = vadd.f32 %v3875, 1.0
        %v4388 = vadd.f32 %v3876, 1.0
        %v4389 = vadd.f32 %v3877, 1.0
        %v4390 = vadd.f32 %v3878, 1.0
        %v4391 = vadd.f32 %v3879, 1.0
        %v4392 = vadd.f32 %v3880, 1.0
        %v4393 = vadd.f32 %v3881, 1.0
        %v4394 = vadd.f32 %v3882, 1.0
        %v4395 = vadd.f32 %v3883, 1.0
        %v4396 = vadd.f32 %v3884, 1.0
        %v4397 = vadd.f32 %v3885, 1.0
        %v4398 = vadd.f32 %v3886, 1.0
        %v4399 = vadd.f32 %v3887, 1.0
        %v4400 = vadd.f32 %v3888, 1.0
        %v4401 = vadd.f32 %v3889, 1.0
        %v4402 = vadd.f32 %v3890, 1.0
        %v4403 = vadd.f32 %v3891, 1.0
        %v4404 = vadd.f32 %v3892, 1.0
        %v4405 = vadd.f32 %v3893, 1.0
        %v4406 = vadd.f32 %v3894, 1.0
        %v4407 = vadd.f32 %v3895, 1.0
        %v4408 = vadd.f32 %v3896, 1.0
        %v4409 = vadd.f32 %v3897, 1.0
        %v4410 = vadd.f32 %v3898, 1.0
        %v4411 = vadd.f32 %v3899, 1.0
        %v4412 = vadd.f32 %v3900, 1.0
        %v4413 = vadd.f32 %v3901, 1.0
        %v4414 = vadd.f32 %v3902, 1.0
        %v4415 = vadd.f32 %v3903, 1.0
        %v4416 = vadd.f32 %v3904, 1.0
        %v4417 = vadd.f32 %v3905, 1.0
        %v4418 = vadd.f32 %v3906, 1.0
        %v4419 = vadd.f32 %v3907, 1.0
        %v4420 = vadd.f32 %v3908, 1.0
        %v4421 = vadd.f32 %v3909, 1.0
        %v4422 = vadd.f32 %v3910, 1.0
        %v4423 = vadd.f32 %v3911, 1.0
        %v4424 = vadd.f32 %v3912, 1.0
        %v4425 = vadd.f32 %v3913, 1.0
        %v4426 = vadd.f32 %v3914, 1.0
        %v4427 = vadd.f32 %v3915, 1.0
        %v4428 = vadd.f32 %v3916, 1.0
        %v4429 = vadd.f32 %v3917, 1.0
        %v4430 = vadd.f32 %v3918, 1.0
        %v4431 = vadd.f32 %v3919, 1.0
        %v4432 = vadd.f32 %v3920, 1.0
        %v4433 = vadd.f32 %v3921, 1.0
        %v4434 = vadd.f32 %v3922, 1.0
        %v4435 = vadd.f32 %v3923, 1.0
        %v4436 = vadd.f32 %v3924, 1.0
        %v4437 = vadd.f32 %v3925, 1.0
        %v4438 = vadd.f32 %v3926, 1.0
        %v4439 = vadd.f32 %v3927, 1.0
        %v4440 = vadd.f32 %v3928, 1.0
        %v4441 = vadd.f32 %v3929, 1.0
        %v4442 = vadd.f32 %v3930, 1.0
        %v4443 = vadd.f32 %v3931, 1.0
        %v4444 = vadd.f32 %v3932, 1.0
        %v4445 = vadd.f32 %v3933, 1.0
        %v4446 = vadd.f32 %v3934, 1.0
        %v4447 = vadd.f32 %v3935, 1.0
        %v4448 = vadd.f32 %v3936, 1.0
        %v4449 = vadd.f32 %v3937, 1.0
        %v4450 = vadd.f32 %v3938, 1.0
        %v4451 = vadd.f32 %v3939, 1.0
        %v4452 = vadd.f32 %v3940, 1.0
        %v4453 = vadd.f32 %v3941, 1.0
        %v4454 = vadd.f32 %v3942, 1.0
        %v4455 = vadd.f32 %v3943, 1.0
        %v4456 = vadd.f32 %v3944, 1.0
        %v4457 = vadd.f32 %v3945, 1.0
        %v4458 = vadd.f32 %v3946, 1.0
        %v4459 = vadd.f32 %v3947, 1.0
        %v4460 = vadd.f32 %v3948, 1.0
        %v4461 = vadd.f32 %v3949, 1.0
        %v4462 = vadd.f32 %v3950, 1.0
        %v4463 = vadd.f32 %v3951, 1.0
        %v4464 = vadd.f32 %v3952, 1.0
        %v4465 = vadd.f32 %v3953, 1.0
        %v4466 = vadd.f32 %v3954, 1.0
        %v4467 = vadd.f32 %v3955, 1.0
        %v4468 = vadd.f32 %v3956, 1.0
        %v4469 = vadd.f32 %v3957, 1.0
        %v4470 = vadd.f32 %v3958, 1.0
        %v4471 = vadd.f32 %v3959, 1.0
        %v4472 = vadd.f32 %v3960, 1.0
        %v4473 = vadd.f32 %v3961, 1.0
        %v4474 = vadd.f32 %v3962, 1.0
        %v4475 = vadd.f32 %v3963, 1.0
        %v4476 = vadd.f32 %v3964, 1.0
        %v4477 = vadd.f32 %v3965, 1.0
        %v4478 = vadd.f32 %v3966, 1.0
        %v4479 = vadd.f32 %v3967, 1.0
        %v4480 = vadd.f32 %v3968, 1.0
        %v4481 = vadd.f32 %v3969, 1.0
        %v4482 = vadd.f32 %v3970, 1.0
        %v4483 = vadd.f32 %v3971, 1.0
        %v4484 = vadd.f32 %v3972, 1.0
        %v4485 = vadd.f32 %v3973, 1.0
        %v4486 = vadd.f32 %v3974, 1.0
        %v4487 = vadd.f32 %v3975, 1.0
        %v4488 = vadd.f32 %v3976, 1.0
        %v4489 = vadd.f32 %v3977, 1.0
        %v4490 = vadd.f32 %v3978, 1.0
        %v4491 = vadd.f32 %v3979, 1.0
        %v4492 = vadd.f32 %v3980, 1.0
        %v4493 = vadd.f32 %v3981, 1.0
        %v4494 = vadd.f32 %v3982, 1.0
        %v4495 = vadd.f32 %v3983, 1.0
        %v4496 = vadd.f32 %v3984, 1.0
        %v4497 = vadd.f32 %v3985, 1.0
        %v4498 = vadd.f32 %v3986, 1.0
        %v4499 = vadd.f32 %v3987, 1.0
        %v4500 = vadd.f32 %v3988, 1.0
        %v4501 = vadd.f32 %v3989, 1.0
        %v4502 = vadd.f32 %v3990, 1.0
        %v4503 = vadd.f32 %v3991, 1.0
        %v4504 = vadd.f32 %v3992, 1.0
        %v4505 = vadd.f32 %v3993, 1.0
        %v4506 = vadd.f32 %v3994, 1.0
        %v4507 = vadd.f32 %v3995, 1.0
        %v4508 = vadd.f32 %v3996, 1.0
        %v4509 = vadd.f32 %v3997, 1.0
        %v4510 = vadd.f32 %v3998, 1.0
        %v4511 = vadd.f32 %v3999, 1.0
        %v4512 = vadd.f32 %v4000, 1.0
        %v4513 = vadd.f32 %v4001, 1.0
        %v4514 = vadd.f32 %v4002, 1.0
        %v4515 = vadd.f32 %v4003, 1.0
        %v4516 = vadd.f32 %v4004, 1.0
        %v4517 = vadd.f32 %v4005, 1.0
        %v4518 = vadd.f32 %v4006, 1.0
        %v4519 = vadd.f32 %v4007, 1.0
        %v4520 = vadd.f32 %v4008, 1.0
        %v4521 = vadd.f32 %v4009, 1.0
        %v4522 = vadd.f32 %v4010, 1.0
        %v4523 = vadd.f32 %v4011, 1.0
        %v4524 = vadd.f32 %v4012, 1.0
        %v4525 = vadd.f32 %v4013, 1.0
        %v4526 = vadd.f32 %v4014, 1.0
        %v4527 = vadd.f32 %v4015, 1.0
        %v4528 = vadd.f32 %v4016, 1.0
        %v4529 = vadd.f32 %v4017, 1.0
        %v4530 = vadd.f32 %v4018, 1.0
        %v4531 = vadd.f32 %v4019, 1.0
        %v4532 = vadd.f32 %v4020, 1.0
        %v4533 = vadd.f32 %v4021, 1.0
        %v4534 = vadd.f32 %v4022, 1.0
        %v4535 = vadd.f32 %v4023, 1.0
        %v4536 = vadd.f32 %v4024, 1.0
        %v4537 = vadd.f32 %v4025, 1.0
        %v4538 = vadd.f32 %v4026, 1.0
        %v4539 = vadd.f32 %v4027, 1.0
        %v4540 = vadd.f32 %v4028, 1.0
        %v4541 = vadd.f32 %v4029, 1.0
        %v4542 = vadd.f32 %v4030, 1.0
        %v4543 = vadd.f32 %v4031, 1.0
        %v4544 = vadd.f32 %v4032, 1.0
        %v4545 = vadd.f32 %v4033, 1.0
        %v4546 = vadd.f32 %v4034, 1.0
        %v4547 = vadd.f32 %v4035, 1.0
        %v4548 = vadd.f32 %v4036, 1.0
        %v4549 = vadd.f32 %v4037, 1.0
        %v4550 = vadd.f32 %v4038, 1.0
        %v4551 = vadd.f32 %v4039, 1.0
        %v4552 = vadd.f32 %v4040, 1.0
        %v4553 = vadd.f32 %v4041, 1.0
        %v4554 = vadd.f32 %v4042, 1.0
        %v4555 = vadd.f32 %v4043, 1.0
        %v4556 = vadd.f32 %v4044, 1.0
        %v4557 = vadd.f32 %v4045, 1.0
        %v4558 = vadd.f32 %v4046, 1.0
        %v4559 = vadd.f32 %v4047, 1.0
        %v4560 = vadd.f32 %v4048, 1.0
        %v4561 = vadd.f32 %v4049, 1.0
        %v4562 = vadd.f32 %v4050, 1.0
        %v4563 = vadd.f32 %v4051, 1.0
        %v4564 = vadd.f32 %v4052, 1.0
        %v4565 = vadd.f32 %v4053, 1.0
        %v4566 = vadd.f32 %v4054, 1.0
        %v4567 = vadd.f32 %v4055, 1.0
        %v4568 = vadd.f32 %v4056, 1.0
        %v4569 = vadd.f32 %v4057, 1.0
        %v4570 = vadd.f32 %v4058, 1.0
        %v4571 = vadd.f32 %v4059, 1.0
        %v4572 = vadd.f32 %v4060, 1.0
        %v4573 = vadd.f32 %v4061, 1.0
        %v4574 = vadd.f32 %v4062, 1.0
        %v4575 = vadd.f32 %v4063, 1.0
        %v4576 = vadd.f32 %v4064, 1.0
        %v4577 = vadd.f32 %v4065, 1.0
        %v4578 = vadd.f32 %v4066, 1.0
        %v4579 = vadd.f32 %v4067, 1.0
        %v4580 = vadd.f32 %v4068, 1.0
        %v4581 = vadd.f32 %v4069, 1.0
        %v4582 = vadd.f32 %v4070, 1.0
        %v4583 = vadd.f32 %v4071, 1.0
        %v4584 = vadd.f32 %v4072, 1.0
        %v4585 = vadd.f32 %v4073, 1.0
        %v4586 = vadd.f32 %v4074, 1.0
        %v4587 = vadd.f32 %v4075, 1.0
        %v4588 = vadd.f32 %v4076, 1.0
        %v4589 = vadd.f32 %v4077, 1.0
        %v4590 = vadd.f32 %v4078, 1.0
        %v4591 = vadd.f32 %v4079, 1.0
        %v4592 = vadd.f32 %v4080, 1.0
        %v4593 = vadd.f32 %v4081, 1.0
        %v4594 = vadd.f32 %v4082, 1.0
        %v4595 = vadd.f32 %v4083, 1.0
        %v4596 = vadd.f32 %v4084, 1.0
        %v4597 = vadd.f32 %v4085, 1.0
        %v4598 = vadd.f32 %v4086, 1.0
        %v4599 = vadd.f32 %v4087, 1.0
        %v4600 = vadd.f32 %v4088, 1.0
        %v4601 = vadd.f32 %v4089, 1.0
        %v4602 = vadd.f32 %v4090, 1.0
        %v4603 = vadd.f32 %v4091, 1.0
        %v4604 = vadd.f32 %v4092, 1.0
        %v4605 = vadd.f32 %v4093, 1.0
        %v4606 = vadd.f32 %v4094, 1.0
        %v4607 = vadd.f32 %v4095, 1.0
        %v4608 = vadd.f32 %v4096, 1.0
        %v4609 = vadd.f32 %v4097, 1.0
        %v4610 = vadd.f32 %v4098, 1.0
        %v4611 = vadd.f32 %v4099, 1.0
        %v4612 = vadd.f32 %v4100, 1.0
        %v4613 = vadd.f32 %v4101, 1.0
        %v4614 = vadd.f32 %v4102, 1.0
        %v4615 = vadd.f32 %v4103, 1.0
        %v4616 = vadd.f32 %v4104, 1.0
        %v4617 = vadd.f32 %v4105, 1.0
        %v4618 = vadd.f32 %v4106, 1.0
        %v4619 = vadd.f32 %v4107, 1.0
        %v4620 = vadd.f32 %v4108, 1.0
        %v4621 = vadd.f32 %v4109, 1.0
        %v4622 = vadd.f32 %v4110, 1.0
        %v4623 = vadd.f32 %v4111, 1.0
        %v4624 = vadd.f32 %v4112, 1.0
        %v4625 = vadd.f32 %v4113, 1.0
        %v4626 = vadd.f32 %v4114, 1.0
        %v4627 = vadd.f32 %v4115, 1.0
        %v4628 = vadd.f32 %v4116, 1.0
        %v4629 = vadd.f32 %v4117, 1.0
        %v4630 = vadd.f32 %v4118, 1.0
        %v4631 = vadd.f32 %v4119, 1.0
        %v4632 = vadd.f32 %v4120, 1.0
        %v4633 = vadd.f32 %v4121, 1.0
        %v4634 = vadd.f32 %v4122, 1.0
        %v4635 = vadd.f32 %v4123, 1.0
        %v4636 = vadd.f32 %v4124, 1.0
        %v4637 = vadd.f32 %v4125, 1.0
        %v4638 = vadd.f32 %v4126, 1.0
        %v4639 = vadd.f32 %v4127, 1.0
        %v4640 = vadd.f32 %v4128, 1.0
        %v4641 = vadd.f32 %v4129, 1.0
        %v4642 = vadd.f32 %v4130, 1.0
        %v4643 = vadd.f32 %v4131, 1.0
        %v4644 = vadd.f32 %v4132, 1.0
        %v4645 = vadd.f32 %v4133, 1.0
        %v4646 = vadd.f32 %v4134, 1.0
        %v4647 = vadd.f32 %v4135, 1.0
        %v4648 = vadd.f32 %v4136, 1.0
        %v4649 = vadd.f32 %v4137, 1.0
        %v4650 = vadd.f32 %v4138, 1.0
        %v4651 = vadd.f32 %v4139, 1.0
        %v4652 = vadd.f32 %v4140, 1.0
        %v4653 = vadd.f32 %v4141, 1.0
        %v4654 = vadd.f32 %v4142, 1.0
        %v4655 = vadd.f32 %v4143, 1.0
        %v4656 = vadd.f32 %v4144, 1.0
        %v4657 = vadd.f32 %v4145, 1.0
        %v4658 = vadd.f32 %v4146, 1.0
        %v4659 = vadd.f32 %v4147, 1.0
        %v4660 = vadd.f32 %v4148, 1.0
        %v4661 = vadd.f32 %v4149, 1.0
        %v4662 = vadd.f32 %v4150, 1.0
        %v4663 = vadd.f32 %v4151, 1.0
        %v4664 = vadd.f32 %v4152, 1.0
        %v4665 = vadd.f32 %v4153, 1.0
        %v4666 = vadd.f32 %v4154, 1.0
        %v4667 = vadd.f32 %v4155, 1.0
        %v4668 = vadd.f32 %v4156, 1.0
        %v4669 = vadd.f32 %v4157, 1.0
        %v4670 = vadd.f32 %v4158, 1.0
        %v4671 = vadd.f32 %v4159, 1.0
        %v4672 = vadd.f32 %v4160, 1.0
        %v4673 = vadd.f32 %v4161, 1.0
        %v4674 = vadd.f32 %v4162, 1.0
        %v4675 = vadd.f32 %v4163, 1.0
        %v4676 = vadd.f32 %v4164, 1.0
        %v4677 = vadd.f32 %v4165, 1.0
        %v4678 = vadd.f32 %v4166, 1.0
        %v4679 = vadd.f32 %v4167, 1.0
        %v4680 = vadd.f32 %v4168, 1.0
        %v4681 = vadd.f32 %v4169, 1.0
        %v4682 = vadd.f32 %v4170, 1.0
        %v4683 = vadd.f32 %v4171, 1.0
        %v4684 = vadd.f32 %v4172, 1.0
        %v4685 = vadd.f32 %v4173, 1.0
        %v4686 = vadd.f32 %v4174, 1.0
        %v4687 = vadd.f32 %v4175, 1.0
        %v4688 = vadd.f32 %v4176, 1.0
        %v4689 = vadd.f32 %v4177, 1.0
        %v4690 = vadd.f32 %v4178, 1.0
        %v4691 = vadd.f32 %v4179, 1.0
        %v4692 = vadd.f32 %v4180, 1.0
        %v4693 = vadd.f32 %v4181, 1.0
        %v4694 = vadd.f32 %v4182, 1.0
        %v4695 = vadd.f32 %v4183, 1.0
        %v4696 = vadd.f32 %v4184, 1.0
        %v4697 = vadd.f32 %v4185, 1.0
        %v4698 = vadd.f32 %v4186, 1.0
        %v4699 = vadd.f32 %v4187, 1.0
        %v4700 = vadd.f32 %v4188, 1.0
        %v4701 = vadd.f32 %v4189, 1.0
        %v4702 = vadd.f32 %v4190, 1.0
        %v4703 = vadd.f32 %v4191, 1.0
        %v4704 = vadd.f32 %v4192, 1.0
        %v4705 = vadd.f32 %v4193, 1.0
        %v4706 = vadd.f32 %v4194, 1.0
        %v4707 = vadd.f32 %v4195, 1.0
        %v4708 = vadd.f32 %v4196, 1.0
        %v4709 = vadd.f32 %v4197, 1.0
        %v4710 = vadd.f32 %v4198, 1.0
        %v4711 = vadd.f32 %v4199, 1.0
        %v4712 = vadd.f32 %v4200, 1.0
        %v4713 = vadd.f32 %v4201, 1.0
        %v4714 = vadd.f32 %v4202, 1.0
        %v4715 = vadd.f32 %v4203, 1.0
        %v4716 = vadd.f32 %v4204, 1.0
        %v4717 = vadd.f32 %v4205, 1.0
        %v4718 = vadd.f32 %v4206, 1.0
        %v4719 = vadd.f32 %v4207, 1.0
        %v4720 = vadd.f32 %v4208, 1.0
        %v4721 = vadd.f32 %v4209, 1.0
        %v4722 = vadd.f32 %v4210, 1.0
        %v4723 = vadd.f32 %v4211, 1.0
        %v4724 = vadd.f32 %v4212, 1.0
        %v4725 = vadd.f32 %v4213, 1.0
        %v4726 = vadd.f32 %v4214, 1.0
        %v4727 = vadd.f32 %v4215, 1.0
        %v4728 = vadd.f32 %v4216, 1.0
        %v4729 = vadd.f32 %v4217, 1.0
        %v4730 = vadd.f32 %v4218, 1.0
        %v4731 = vadd.f32 %v4219, 1.0
        %v4732 = vadd.f32 %v4220, 1.0
        %v4733 = vadd.f32 %v4221, 1.0
        %v4734 = vadd.f32 %v4222, 1.0
        %v4735 = vadd.f32 %v4223, 1.0
        %v4736 = vadd.f32 %v4224, 1.0
        %v4737 = vadd.f32 %v4225, 1.0
        %v4738 = vadd.f32 %v4226, 1.0
        %v4739 = vadd.f32 %v4227, 1.0
        %v4740 = vadd.f32 %v4228, 1.0
        %v4741 = vadd.f32 %v4229, 1.0
        %v4742 = vadd.f32 %v4230, 1.0
        %v4743 = vadd.f32 %v4231, 1.0
        %v4744 = vadd.f32 %v4232, 1.0
        %v4745 = vadd.f32 %v4233, 1.0
        %v4746 = vadd.f32 %v4234, 1.0
        %v4747 = vadd.f32 %v4235, 1.0
        %v4748 = vadd.f32 %v4236, 1.0
        %v4749 = vadd.f32 %v4237, 1.0
        %v4750 = vadd.f32 %v4238, 1.0
        %v4751 = vadd.f32 %v4239, 1.0
        %v4752 = vadd.f32 %v4240, 1.0
        %v4753 = vadd.f32 %v4241, 1.0
        %v4754 = vadd.f32 %v4242, 1.0
        %v4755 = vadd.f32 %v4243, 1.0
        %v4756 = vadd.f32 %v4244, 1.0
        %v4757 = vadd.f32 %v4245, 1.0
        %v4758 = vadd.f32 %v4246, 1.0
        %v4759 = vadd.f32 %v4247, 1.0
        %v4760 = vadd.f32 %v4248, 1.0
        %v4761 = vadd.f32 %v4249, 1.0
        %v4762 = vadd.f32 %v4250, 1.0
        %v4763 = vadd.f32 %v4251, 1.0
        %v4764 = vadd.f32 %v4252, 1.0
        %v4765 = vadd.f32 %v4253, 1.0
        %v4766 = vadd.f32 %v4254, 1.0
        %v4767 = vadd.f32 %v4255, 1.0
        %v4768 = vadd.f32 %v4256, 1.0
        %v4769 = vadd.f32 %v4257, 1.0
        %v4770 = vadd.f32 %v4258, 1.0
        %v4771 = vadd.f32 %v4259, 1.0
        %v4772 = vadd.f32 %v4260, 1.0
        %v4773 = vadd.f32 %v4261, 1.0
        %v4774 = vadd.f32 %v4262, 1.0
        %v4775 = vadd.f32 %v4263, 1.0
        %v4776 = vadd.f32 %v4264, 1.0
        %v4777 = vadd.f32 %v4265, 1.0
        %v4778 = vadd.f32 %v4266, 1.0
        %v4779 = vadd.f32 %v4267, 1.0
        %v4780 = vadd.f32 %v4268, 1.0
        %v4781 = vadd.f32 %v4269, 1.0
        %v4782 = vadd.f32 %v4270, 1.0
        %v4783 = vadd.f32 %v4271, 1.0
        %v4784 = vadd.f32 %v4272, 1.0
        %v4785 = vadd.f32 %v4273, 1.0
        %v4786 = vadd.f32 %v4274, 1.0
        %v4787 = vadd.f32 %v4275, 1.0
        %v4788 = vadd.f32 %v4276, 1.0
        %v4789 = vadd.f32 %v4277, 1.0
        %v4790 = vadd.f32 %v4278, 1.0
        %v4791 = vadd.f32 %v4279, 1.0
        %v4792 = vadd.f32 %v4280, 1.0
        %v4793 = vadd.f32 %v4281, 1.0
        %v4794 = vadd.f32 %v4282, 1.0
        %v4795 = vadd.f32 %v4283, 1.0
        %v4796 = vadd.f32 %v4284, 1.0
        %v4797 = vadd.f32 %v4285, 1.0
        %v4798 = vadd.f32 %v4286, 1.0
        %v4799 = vadd.f32 %v4287, 1.0
        %v4800 = vadd.f32 %v4288, 1.0
        %v4801 = vadd.f32 %v4289, 1.0
        %v4802 = vadd.f32 %v4290, 1.0
        %v4803 = vadd.f32 %v4291, 1.0
        %v4804 = vadd.f32 %v4292, 1.0
        %v4805 = vadd.f32 %v4293, 1.0
        %v4806 = vadd.f32 %v4294, 1.0
        %v4807 = vmul.f32 %v197, %v4295
        %v4808 = vmul.f32 %v198, %v4296
        %v4809 = vmul.f32 %v199, %v4297
        %v4810 = vmul.f32 %v200, %v4298
        %v4811 = vmul.f32 %v201, %v4299
        %v4812 = vmul.f32 %v202, %v4300
        %v4813 = vmul.f32 %v203, %v4301
        %v4814 = vmul.f32 %v204, %v4302
        %v4815 = vmul.f32 %v205, %v4303
        %v4816 = vmul.f32 %v206, %v4304
        %v4817 = vmul.f32 %v207, %v4305
        %v4818 = vmul.f32 %v208, %v4306
        %v4819 = vmul.f32 %v209, %v4307
        %v4820 = vmul.f32 %v210, %v4308
        %v4821 = vmul.f32 %v211, %v4309
        %v4822 = vmul.f32 %v212, %v4310
        %v4823 = vmul.f32 %v213, %v4311
        %v4824 = vmul.f32 %v214, %v4312
        %v4825 = vmul.f32 %v215, %v4313
        %v4826 = vmul.f32 %v216, %v4314
        %v4827 = vmul.f32 %v217, %v4315
        %v4828 = vmul.f32 %v218, %v4316
        %v4829 = vmul.f32 %v219, %v4317
        %v4830 = vmul.f32 %v220, %v4318
        %v4831 = vmul.f32 %v221, %v4319
        %v4832 = vmul.f32 %v222, %v4320
        %v4833 = vmul.f32 %v223, %v4321
        %v4834 = vmul.f32 %v224, %v4322
        %v4835 = vmul.f32 %v225, %v4323
        %v4836 = vmul.f32 %v226, %v4324
        %v4837 = vmul.f32 %v227, %v4325
        %v4838 = vmul.f32 %v228, %v4326
        %v4839 = vmul.f32 %v229, %v4327
        %v4840 = vmul.f32 %v230, %v4328
        %v4841 = vmul.f32 %v231, %v4329
        %v4842 = vmul.f32 %v232, %v4330
        %v4843 = vmul.f32 %v233, %v4331
        %v4844 = vmul.f32 %v234, %v4332
        %v4845 = vmul.f32 %v235, %v4333
        %v4846 = vmul.f32 %v236, %v4334
        %v4847 = vmul.f32 %v237, %v4335
        %v4848 = vmul.f32 %v238, %v4336
        %v4849 = vmul.f32 %v239, %v4337
        %v4850 = vmul.f32 %v240, %v4338
        %v4851 = vmul.f32 %v241, %v4339
        %v4852 = vmul.f32 %v242, %v4340
        %v4853 = vmul.f32 %v243, %v4341
        %v4854 = vmul.f32 %v244, %v4342
        %v4855 = vmul.f32 %v245, %v4343
        %v4856 = vmul.f32 %v246, %v4344
        %v4857 = vmul.f32 %v247, %v4345
        %v4858 = vmul.f32 %v248, %v4346
        %v4859 = vmul.f32 %v249, %v4347
        %v4860 = vmul.f32 %v250, %v4348
        %v4861 = vmul.f32 %v251, %v4349
        %v4862 = vmul.f32 %v252, %v4350
        %v4863 = vmul.f32 %v253, %v4351
        %v4864 = vmul.f32 %v254, %v4352
        %v4865 = vmul.f32 %v255, %v4353
        %v4866 = vmul.f32 %v256, %v4354
        %v4867 = vmul.f32 %v257, %v4355
        %v4868 = vmul.f32 %v258, %v4356
        %v4869 = vmul.f32 %v259, %v4357
        %v4870 = vmul.f32 %v260, %v4358
        %v4871 = vmul.f32 %v261, %v4359
        %v4872 = vmul.f32 %v262, %v4360
        %v4873 = vmul.f32 %v263, %v4361
        %v4874 = vmul.f32 %v264, %v4362
        %v4875 = vmul.f32 %v265, %v4363
        %v4876 = vmul.f32 %v266, %v4364
        %v4877 = vmul.f32 %v267, %v4365
        %v4878 = vmul.f32 %v268, %v4366
        %v4879 = vmul.f32 %v269, %v4367
        %v4880 = vmul.f32 %v270, %v4368
        %v4881 = vmul.f32 %v271, %v4369
        %v4882 = vmul.f32 %v272, %v4370
        %v4883 = vmul.f32 %v273, %v4371
        %v4884 = vmul.f32 %v274, %v4372
        %v4885 = vmul.f32 %v275, %v4373
        %v4886 = vmul.f32 %v276, %v4374
        %v4887 = vmul.f32 %v277, %v4375
        %v4888 = vmul.f32 %v278, %v4376
        %v4889 = vmul.f32 %v279, %v4377
        %v4890 = vmul.f32 %v280, %v4378
        %v4891 = vmul.f32 %v281, %v4379
        %v4892 = vmul.f32 %v282, %v4380
        %v4893 = vmul.f32 %v283, %v4381
        %v4894 = vmul.f32 %v284, %v4382
        %v4895 = vmul.f32 %v285, %v4383
        %v4896 = vmul.f32 %v286, %v4384
        %v4897 = vmul.f32 %v287, %v4385
        %v4898 = vmul.f32 %v288, %v4386
        %v4899 = vmul.f32 %v289, %v4387
        %v4900 = vmul.f32 %v290, %v4388
        %v4901 = vmul.f32 %v291, %v4389
        %v4902 = vmul.f32 %v292, %v4390
        %v4903 = vmul.f32 %v293, %v4391
        %v4904 = vmul.f32 %v294, %v4392
        %v4905 = vmul.f32 %v295, %v4393
        %v4906 = vmul.f32 %v296, %v4394
        %v4907 = vmul.f32 %v297, %v4395
        %v4908 = vmul.f32 %v298, %v4396
        %v4909 = vmul.f32 %v299, %v4397
        %v4910 = vmul.f32 %v300, %v4398
        %v4911 = vmul.f32 %v301, %v4399
        %v4912 = vmul.f32 %v302, %v4400
        %v4913 = vmul.f32 %v303, %v4401
        %v4914 = vmul.f32 %v304, %v4402
        %v4915 = vmul.f32 %v305, %v4403
        %v4916 = vmul.f32 %v306, %v4404
        %v4917 = vmul.f32 %v307, %v4405
        %v4918 = vmul.f32 %v308, %v4406
        %v4919 = vmul.f32 %v309, %v4407
        %v4920 = vmul.f32 %v310, %v4408
        %v4921 = vmul.f32 %v311, %v4409
        %v4922 = vmul.f32 %v312, %v4410
        %v4923 = vmul.f32 %v313, %v4411
        %v4924 = vmul.f32 %v314, %v4412
        %v4925 = vmul.f32 %v315, %v4413
        %v4926 = vmul.f32 %v316, %v4414
        %v4927 = vmul.f32 %v317, %v4415
        %v4928 = vmul.f32 %v318, %v4416
        %v4929 = vmul.f32 %v319, %v4417
        %v4930 = vmul.f32 %v320, %v4418
        %v4931 = vmul.f32 %v321, %v4419
        %v4932 = vmul.f32 %v322, %v4420
        %v4933 = vmul.f32 %v323, %v4421
        %v4934 = vmul.f32 %v324, %v4422
        %v4935 = vmul.f32 %v325, %v4423
        %v4936 = vmul.f32 %v326, %v4424
        %v4937 = vmul.f32 %v327, %v4425
        %v4938 = vmul.f32 %v328, %v4426
        %v4939 = vmul.f32 %v329, %v4427
        %v4940 = vmul.f32 %v330, %v4428
        %v4941 = vmul.f32 %v331, %v4429
        %v4942 = vmul.f32 %v332, %v4430
        %v4943 = vmul.f32 %v333, %v4431
        %v4944 = vmul.f32 %v334, %v4432
        %v4945 = vmul.f32 %v335, %v4433
        %v4946 = vmul.f32 %v336, %v4434
        %v4947 = vmul.f32 %v337, %v4435
        %v4948 = vmul.f32 %v338, %v4436
        %v4949 = vmul.f32 %v339, %v4437
        %v4950 = vmul.f32 %v340, %v4438
        %v4951 = vmul.f32 %v341, %v4439
        %v4952 = vmul.f32 %v342, %v4440
        %v4953 = vmul.f32 %v343, %v4441
        %v4954 = vmul.f32 %v344, %v4442
        %v4955 = vmul.f32 %v345, %v4443
        %v4956 = vmul.f32 %v346, %v4444
        %v4957 = vmul.f32 %v347, %v4445
        %v4958 = vmul.f32 %v348, %v4446
        %v4959 = vmul.f32 %v349, %v4447
        %v4960 = vmul.f32 %v350, %v4448
        %v4961 = vmul.f32 %v351, %v4449
        %v4962 = vmul.f32 %v352, %v4450
        %v4963 = vmul.f32 %v353, %v4451
        %v4964 = vmul.f32 %v354, %v4452
        %v4965 = vmul.f32 %v355, %v4453
        %v4966 = vmul.f32 %v356, %v4454
        %v4967 = vmul.f32 %v357, %v4455
        %v4968 = vmul.f32 %v358, %v4456
        %v4969 = vmul.f32 %v359, %v4457
        %v4970 = vmul.f32 %v360, %v4458
        %v4971 = vmul.f32 %v361, %v4459
        %v4972 = vmul.f32 %v362, %v4460
        %v4973 = vmul.f32 %v363, %v4461
        %v4974 = vmul.f32 %v364, %v4462
        %v4975 = vmul.f32 %v365, %v4463
        %v4976 = vmul.f32 %v366, %v4464
        %v4977 = vmul.f32 %v367, %v4465
        %v4978 = vmul.f32 %v368, %v4466
        %v4979 = vmul.f32 %v369, %v4467
        %v4980 = vmul.f32 %v370, %v4468
        %v4981 = vmul.f32 %v371, %v4469
        %v4982 = vmul.f32 %v372, %v4470
        %v4983 = vmul.f32 %v373, %v4471
        %v4984 = vmul.f32 %v374, %v4472
        %v4985 = vmul.f32 %v375, %v4473
        %v4986 = vmul.f32 %v376, %v4474
        %v4987 = vmul.f32 %v377, %v4475
        %v4988 = vmul.f32 %v378, %v4476
        %v4989 = vmul.f32 %v379, %v4477
        %v4990 = vmul.f32 %v380, %v4478
        %v4991 = vmul.f32 %v381, %v4479
        %v4992 = vmul.f32 %v382, %v4480
        %v4993 = vmul.f32 %v383, %v4481
        %v4994 = vmul.f32 %v384, %v4482
        %v4995 = vmul.f32 %v385, %v4483
        %v4996 = vmul.f32 %v386, %v4484
        %v4997 = vmul.f32 %v387, %v4485
        %v4998 = vmul.f32 %v388, %v4486
        %v4999 = vmul.f32 %v389, %v4487
        %v5000 = vmul.f32 %v390, %v4488
        %v5001 = vmul.f32 %v391, %v4489
        %v5002 = vmul.f32 %v392, %v4490
        %v5003 = vmul.f32 %v393, %v4491
        %v5004 = vmul.f32 %v394, %v4492
        %v5005 = vmul.f32 %v395, %v4493
        %v5006 = vmul.f32 %v396, %v4494
        %v5007 = vmul.f32 %v397, %v4495
        %v5008 = vmul.f32 %v398, %v4496
        %v5009 = vmul.f32 %v399, %v4497
        %v5010 = vmul.f32 %v400, %v4498
        %v5011 = vmul.f32 %v401, %v4499
        %v5012 = vmul.f32 %v402, %v4500
        %v5013 = vmul.f32 %v403, %v4501
        %v5014 = vmul.f32 %v404, %v4502
        %v5015 = vmul.f32 %v405, %v4503
        %v5016 = vmul.f32 %v406, %v4504
        %v5017 = vmul.f32 %v407, %v4505
        %v5018 = vmul.f32 %v408, %v4506
        %v5019 = vmul.f32 %v409, %v4507
        %v5020 = vmul.f32 %v410, %v4508
        %v5021 = vmul.f32 %v411, %v4509
        %v5022 = vmul.f32 %v412, %v4510
        %v5023 = vmul.f32 %v413, %v4511
        %v5024 = vmul.f32 %v414, %v4512
        %v5025 = vmul.f32 %v415, %v4513
        %v5026 = vmul.f32 %v416, %v4514
        %v5027 = vmul.f32 %v417, %v4515
        %v5028 = vmul.f32 %v418, %v4516
        %v5029 = vmul.f32 %v419, %v4517
        %v5030 = vmul.f32 %v420, %v4518
        %v5031 = vmul.f32 %v421, %v4519
        %v5032 = vmul.f32 %v422, %v4520
        %v5033 = vmul.f32 %v423, %v4521
        %v5034 = vmul.f32 %v424, %v4522
        %v5035 = vmul.f32 %v425, %v4523
        %v5036 = vmul.f32 %v426, %v4524
        %v5037 = vmul.f32 %v427, %v4525
        %v5038 = vmul.f32 %v428, %v4526
        %v5039 = vmul.f32 %v429, %v4527
        %v5040 = vmul.f32 %v430, %v4528
        %v5041 = vmul.f32 %v431, %v4529
        %v5042 = vmul.f32 %v432, %v4530
        %v5043 = vmul.f32 %v433, %v4531
        %v5044 = vmul.f32 %v434, %v4532
        %v5045 = vmul.f32 %v435, %v4533
        %v5046 = vmul.f32 %v436, %v4534
        %v5047 = vmul.f32 %v437, %v4535
        %v5048 = vmul.f32 %v438, %v4536
        %v5049 = vmul.f32 %v439, %v4537
        %v5050 = vmul.f32 %v440, %v4538
        %v5051 = vmul.f32 %v441, %v4539
        %v5052 = vmul.f32 %v442, %v4540
        %v5053 = vmul.f32 %v443, %v4541
        %v5054 = vmul.f32 %v444, %v4542
        %v5055 = vmul.f32 %v445, %v4543
        %v5056 = vmul.f32 %v446, %v4544
        %v5057 = vmul.f32 %v447, %v4545
        %v5058 = vmul.f32 %v448, %v4546
        %v5059 = vmul.f32 %v449, %v4547
        %v5060 = vmul.f32 %v450, %v4548
        %v5061 = vmul.f32 %v451, %v4549
        %v5062 = vmul.f32 %v452, %v4550
        %v5063 = vmul.f32 %v453, %v4551
        %v5064 = vmul.f32 %v454, %v4552
        %v5065 = vmul.f32 %v455, %v4553
        %v5066 = vmul.f32 %v456, %v4554
        %v5067 = vmul.f32 %v457, %v4555
        %v5068 = vmul.f32 %v458, %v4556
        %v5069 = vmul.f32 %v459, %v4557
        %v5070 = vmul.f32 %v460, %v4558
        %v5071 = vmul.f32 %v461, %v4559
        %v5072 = vmul.f32 %v462, %v4560
        %v5073 = vmul.f32 %v463, %v4561
        %v5074 = vmul.f32 %v464, %v4562
        %v5075 = vmul.f32 %v465, %v4563
        %v5076 = vmul.f32 %v466, %v4564
        %v5077 = vmul.f32 %v467, %v4565
        %v5078 = vmul.f32 %v468, %v4566
        %v5079 = vmul.f32 %v469, %v4567
        %v5080 = vmul.f32 %v470, %v4568
        %v5081 = vmul.f32 %v471, %v4569
        %v5082 = vmul.f32 %v472, %v4570
        %v5083 = vmul.f32 %v473, %v4571
        %v5084 = vmul.f32 %v474, %v4572
        %v5085 = vmul.f32 %v475, %v4573
        %v5086 = vmul.f32 %v476, %v4574
        %v5087 = vmul.f32 %v477, %v4575
        %v5088 = vmul.f32 %v478, %v4576
        %v5089 = vmul.f32 %v479, %v4577
        %v5090 = vmul.f32 %v480, %v4578
        %v5091 = vmul.f32 %v481, %v4579
        %v5092 = vmul.f32 %v482, %v4580
        %v5093 = vmul.f32 %v483, %v4581
        %v5094 = vmul.f32 %v484, %v4582
        %v5095 = vmul.f32 %v485, %v4583
        %v5096 = vmul.f32 %v486, %v4584
        %v5097 = vmul.f32 %v487, %v4585
        %v5098 = vmul.f32 %v488, %v4586
        %v5099 = vmul.f32 %v489, %v4587
        %v5100 = vmul.f32 %v490, %v4588
        %v5101 = vmul.f32 %v491, %v4589
        %v5102 = vmul.f32 %v492, %v4590
        %v5103 = vmul.f32 %v493, %v4591
        %v5104 = vmul.f32 %v494, %v4592
        %v5105 = vmul.f32 %v495, %v4593
        %v5106 = vmul.f32 %v496, %v4594
        %v5107 = vmul.f32 %v497, %v4595
        %v5108 = vmul.f32 %v498, %v4596
        %v5109 = vmul.f32 %v499, %v4597
        %v5110 = vmul.f32 %v500, %v4598
        %v5111 = vmul.f32 %v501, %v4599
        %v5112 = vmul.f32 %v502, %v4600
        %v5113 = vmul.f32 %v503, %v4601
        %v5114 = vmul.f32 %v504, %v4602
        %v5115 = vmul.f32 %v505, %v4603
        %v5116 = vmul.f32 %v506, %v4604
        %v5117 = vmul.f32 %v507, %v4605
        %v5118 = vmul.f32 %v508, %v4606
        %v5119 = vmul.f32 %v509, %v4607
        %v5120 = vmul.f32 %v510, %v4608
        %v5121 = vmul.f32 %v511, %v4609
        %v5122 = vmul.f32 %v512, %v4610
        %v5123 = vmul.f32 %v513, %v4611
        %v5124 = vmul.f32 %v514, %v4612
        %v5125 = vmul.f32 %v515, %v4613
        %v5126 = vmul.f32 %v516, %v4614
        %v5127 = vmul.f32 %v517, %v4615
        %v5128 = vmul.f32 %v518, %v4616
        %v5129 = vmul.f32 %v519, %v4617
        %v5130 = vmul.f32 %v520, %v4618
        %v5131 = vmul.f32 %v521, %v4619
        %v5132 = vmul.f32 %v522, %v4620
        %v5133 = vmul.f32 %v523, %v4621
        %v5134 = vmul.f32 %v524, %v4622
        %v5135 = vmul.f32 %v525, %v4623
        %v5136 = vmul.f32 %v526, %v4624
        %v5137 = vmul.f32 %v527, %v4625
        %v5138 = vmul.f32 %v528, %v4626
        %v5139 = vmul.f32 %v529, %v4627
        %v5140 = vmul.f32 %v530, %v4628
        %v5141 = vmul.f32 %v531, %v4629
        %v5142 = vmul.f32 %v532, %v4630
        %v5143 = vmul.f32 %v533, %v4631
        %v5144 = vmul.f32 %v534, %v4632
        %v5145 = vmul.f32 %v535, %v4633
        %v5146 = vmul.f32 %v536, %v4634
        %v5147 = vmul.f32 %v537, %v4635
        %v5148 = vmul.f32 %v538, %v4636
        %v5149 = vmul.f32 %v539, %v4637
        %v5150 = vmul.f32 %v540, %v4638
        %v5151 = vmul.f32 %v541, %v4639
        %v5152 = vmul.f32 %v542, %v4640
        %v5153 = vmul.f32 %v543, %v4641
        %v5154 = vmul.f32 %v544, %v4642
        %v5155 = vmul.f32 %v545, %v4643
        %v5156 = vmul.f32 %v546, %v4644
        %v5157 = vmul.f32 %v547, %v4645
        %v5158 = vmul.f32 %v548, %v4646
        %v5159 = vmul.f32 %v549, %v4647
        %v5160 = vmul.f32 %v550, %v4648
        %v5161 = vmul.f32 %v551, %v4649
        %v5162 = vmul.f32 %v552, %v4650
        %v5163 = vmul.f32 %v553, %v4651
        %v5164 = vmul.f32 %v554, %v4652
        %v5165 = vmul.f32 %v555, %v4653
        %v5166 = vmul.f32 %v556, %v4654
        %v5167 = vmul.f32 %v557, %v4655
        %v5168 = vmul.f32 %v558, %v4656
        %v5169 = vmul.f32 %v559, %v4657
        %v5170 = vmul.f32 %v560, %v4658
        %v5171 = vmul.f32 %v561, %v4659
        %v5172 = vmul.f32 %v562, %v4660
        %v5173 = vmul.f32 %v563, %v4661
        %v5174 = vmul.f32 %v564, %v4662
        %v5175 = vmul.f32 %v565, %v4663
        %v5176 = vmul.f32 %v566, %v4664
        %v5177 = vmul.f32 %v567, %v4665
        %v5178 = vmul.f32 %v568, %v4666
        %v5179 = vmul.f32 %v569, %v4667
        %v5180 = vmul.f32 %v570, %v4668
        %v5181 = vmul.f32 %v571, %v4669
        %v5182 = vmul.f32 %v572, %v4670
        %v5183 = vmul.f32 %v573, %v4671
        %v5184 = vmul.f32 %v574, %v4672
        %v5185 = vmul.f32 %v575, %v4673
        %v5186 = vmul.f32 %v576, %v4674
        %v5187 = vmul.f32 %v577, %v4675
        %v5188 = vmul.f32 %v578, %v4676
        %v5189 = vmul.f32 %v579, %v4677
        %v5190 = vmul.f32 %v580, %v4678
        %v5191 = vmul.f32 %v581, %v4679
        %v5192 = vmul.f32 %v582, %v4680
        %v5193 = vmul.f32 %v583, %v4681
        %v5194 = vmul.f32 %v584, %v4682
        %v5195 = vmul.f32 %v585, %v4683
        %v5196 = vmul.f32 %v586, %v4684
        %v5197 = vmul.f32 %v587, %v4685
        %v5198 = vmul.f32 %v588, %v4686
        %v5199 = vmul.f32 %v589, %v4687
        %v5200 = vmul.f32 %v590, %v4688
        %v5201 = vmul.f32 %v591, %v4689
        %v5202 = vmul.f32 %v592, %v4690
        %v5203 = vmul.f32 %v593, %v4691
        %v5204 = vmul.f32 %v594, %v4692
        %v5205 = vmul.f32 %v595, %v4693
        %v5206 = vmul.f32 %v596, %v4694
        %v5207 = vmul.f32 %v597, %v4695
        %v5208 = vmul.f32 %v598, %v4696
        %v5209 = vmul.f32 %v599, %v4697
        %v5210 = vmul.f32 %v600, %v4698
        %v5211 = vmul.f32 %v601, %v4699
        %v5212 = vmul.f32 %v602, %v4700
        %v5213 = vmul.f32 %v603, %v4701
        %v5214 = vmul.f32 %v604, %v4702
        %v5215 = vmul.f32 %v605, %v4703
        %v5216 = vmul.f32 %v606, %v4704
        %v5217 = vmul.f32 %v607, %v4705
        %v5218 = vmul.f32 %v608, %v4706
        %v5219 = vmul.f32 %v609, %v4707
        %v5220 = vmul.f32 %v610, %v4708
        %v5221 = vmul.f32 %v611, %v4709
        %v5222 = vmul.f32 %v612, %v4710
        %v5223 = vmul.f32 %v613, %v4711
        %v5224 = vmul.f32 %v614, %v4712
        %v5225 = vmul.f32 %v615, %v4713
        %v5226 = vmul.f32 %v616, %v4714
        %v5227 = vmul.f32 %v617, %v4715
        %v5228 = vmul.f32 %v618, %v4716
        %v5229 = vmul.f32 %v619, %v4717
        %v5230 = vmul.f32 %v620, %v4718
        %v5231 = vmul.f32 %v621, %v4719
        %v5232 = vmul.f32 %v622, %v4720
        %v5233 = vmul.f32 %v623, %v4721
        %v5234 = vmul.f32 %v624, %v4722
        %v5235 = vmul.f32 %v625, %v4723
        %v5236 = vmul.f32 %v626, %v4724
        %v5237 = vmul.f32 %v627, %v4725
        %v5238 = vmul.f32 %v628, %v4726
        %v5239 = vmul.f32 %v629, %v4727
        %v5240 = vmul.f32 %v630, %v4728
        %v5241 = vmul.f32 %v631, %v4729
        %v5242 = vmul.f32 %v632, %v4730
        %v5243 = vmul.f32 %v633, %v4731
        %v5244 = vmul.f32 %v634, %v4732
        %v5245 = vmul.f32 %v635, %v4733
        %v5246 = vmul.f32 %v636, %v4734
        %v5247 = vmul.f32 %v637, %v4735
        %v5248 = vmul.f32 %v638, %v4736
        %v5249 = vmul.f32 %v639, %v4737
        %v5250 = vmul.f32 %v640, %v4738
        %v5251 = vmul.f32 %v641, %v4739
        %v5252 = vmul.f32 %v642, %v4740
        %v5253 = vmul.f32 %v643, %v4741
        %v5254 = vmul.f32 %v644, %v4742
        %v5255 = vmul.f32 %v645, %v4743
        %v5256 = vmul.f32 %v646, %v4744
        %v5257 = vmul.f32 %v647, %v4745
        %v5258 = vmul.f32 %v648, %v4746
        %v5259 = vmul.f32 %v649, %v4747
        %v5260 = vmul.f32 %v650, %v4748
        %v5261 = vmul.f32 %v651, %v4749
        %v5262 = vmul.f32 %v652, %v4750
        %v5263 = vmul.f32 %v653, %v4751
        %v5264 = vmul.f32 %v654, %v4752
        %v5265 = vmul.f32 %v655, %v4753
        %v5266 = vmul.f32 %v656, %v4754
        %v5267 = vmul.f32 %v657, %v4755
        %v5268 = vmul.f32 %v658, %v4756
        %v5269 = vmul.f32 %v659, %v4757
        %v5270 = vmul.f32 %v660, %v4758
        %v5271 = vmul.f32 %v661, %v4759
        %v5272 = vmul.f32 %v662, %v4760
        %v5273 = vmul.f32 %v663, %v4761
        %v5274 = vmul.f32 %v664, %v4762
        %v5275 = vmul.f32 %v665, %v4763
        %v5276 = vmul.f32 %v666, %v4764
        %v5277 = vmul.f32 %v667, %v4765
        %v5278 = vmul.f32 %v668, %v4766
        %v5279 = vmul.f32 %v669, %v4767
        %v5280 = vmul.f32 %v670, %v4768
        %v5281 = vmul.f32 %v671, %v4769
        %v5282 = vmul.f32 %v672, %v4770
        %v5283 = vmul.f32 %v673, %v4771
        %v5284 = vmul.f32 %v674, %v4772
        %v5285 = vmul.f32 %v675, %v4773
        %v5286 = vmul.f32 %v676, %v4774
        %v5287 = vmul.f32 %v677, %v4775
        %v5288 = vmul.f32 %v678, %v4776
        %v5289 = vmul.f32 %v679, %v4777
        %v5290 = vmul.f32 %v680, %v4778
        %v5291 = vmul.f32 %v681, %v4779
        %v5292 = vmul.f32 %v682, %v4780
        %v5293 = vmul.f32 %v683, %v4781
        %v5294 = vmul.f32 %v684, %v4782
        %v5295 = vmul.f32 %v685, %v4783
        %v5296 = vmul.f32 %v686, %v4784
        %v5297 = vmul.f32 %v687, %v4785
        %v5298 = vmul.f32 %v688, %v4786
        %v5299 = vmul.f32 %v689, %v4787
        %v5300 = vmul.f32 %v690, %v4788
        %v5301 = vmul.f32 %v691, %v4789
        %v5302 = vmul.f32 %v692, %v4790
        %v5303 = vmul.f32 %v693, %v4791
        %v5304 = vmul.f32 %v694, %v4792
        %v5305 = vmul.f32 %v695, %v4793
        %v5306 = vmul.f32 %v696, %v4794
        %v5307 = vmul.f32 %v697, %v4795
        %v5308 = vmul.f32 %v698, %v4796
        %v5309 = vmul.f32 %v699, %v4797
        %v5310 = vmul.f32 %v700, %v4798
        %v5311 = vmul.f32 %v701, %v4799
        %v5312 = vmul.f32 %v702, %v4800
        %v5313 = vmul.f32 %v703, %v4801
        %v5314 = vmul.f32 %v704, %v4802
        %v5315 = vmul.f32 %v705, %v4803
        %v5316 = vmul.f32 %v706, %v4804
        %v5317 = vmul.f32 %v707, %v4805
        %v5318 = vmul.f32 %v708, %v4806
        %5319 = vst [vmem:[%s184] sm:$0xff] %v4807
        %5320 = vst [vmem:[%s184 + $0x8] sm:$0xff] %v4808
        %5321 = vst [vmem:[%s184 + $0x10] sm:$0xff] %v4809
        %5322 = vst [vmem:[%s184 + $0x18] sm:$0xff] %v4810
        %5323 = vst [vmem:[%s184 + $0x20] sm:$0xff] %v4811
        %5324 = vst [vmem:[%s184 + $0x28] sm:$0xff] %v4812
        %5325 = vst [vmem:[%s184 + $0x30] sm:$0xff] %v4813
        %5326 = vst [vmem:[%s184 + $0x38] sm:$0xff] %v4814
        %5327 = vst [vmem:[%s184 + $0x40] sm:$0xff] %v4815
        %5328 = vst [vmem:[%s184 + $0x48] sm:$0xff] %v4816
        %5329 = vst [vmem:[%s184 + $0x50] sm:$0xff] %v4817
        %5330 = vst [vmem:[%s184 + $0x58] sm:$0xff] %v4818
        %5331 = vst [vmem:[%s184 + $0x60] sm:$0xff] %v4819
        %5332 = vst [vmem:[%s184 + $0x68] sm:$0xff] %v4820
        %5333 = vst [vmem:[%s184 + $0x70] sm:$0xff] %v4821
        %5334 = vst [vmem:[%s184 + $0x78] sm:$0xff] %v4822
        %5335 = vst [vmem:[%s184 + $0x80] sm:$0xff] %v4823
        %5336 = vst [vmem:[%s184 + $0x88] sm:$0xff] %v4824
        %5337 = vst [vmem:[%s184 + $0x90] sm:$0xff] %v4825
        %5338 = vst [vmem:[%s184 + $0x98] sm:$0xff] %v4826
        %5339 = vst [vmem:[%s184 + $0xa0] sm:$0xff] %v4827
        %5340 = vst [vmem:[%s184 + $0xa8] sm:$0xff] %v4828
        %5341 = vst [vmem:[%s184 + $0xb0] sm:$0xff] %v4829
        %5342 = vst [vmem:[%s184 + $0xb8] sm:$0xff] %v4830
        %5343 = vst [vmem:[%s184 + $0xc0] sm:$0xff] %v4831
        %5344 = vst [vmem:[%s184 + $0xc8] sm:$0xff] %v4832
        %5345 = vst [vmem:[%s184 + $0xd0] sm:$0xff] %v4833
        %5346 = vst [vmem:[%s184 + $0xd8] sm:$0xff] %v4834
        %5347 = vst [vmem:[%s184 + $0xe0] sm:$0xff] %v4835
        %5348 = vst [vmem:[%s184 + $0xe8] sm:$0xff] %v4836
        %5349 = vst [vmem:[%s184 + $0xf0] sm:$0xff] %v4837
        %5350 = vst [vmem:[%s184 + $0xf8] sm:$0xff] %v4838
        %5351 = vst [vmem:[%s184 + $0x100] sm:$0xff] %v4839
        %5352 = vst [vmem:[%s184 + $0x108] sm:$0xff] %v4840
        %5353 = vst [vmem:[%s184 + $0x110] sm:$0xff] %v4841
        %5354 = vst [vmem:[%s184 + $0x118] sm:$0xff] %v4842
        %5355 = vst [vmem:[%s184 + $0x120] sm:$0xff] %v4843
        %5356 = vst [vmem:[%s184 + $0x128] sm:$0xff] %v4844
        %5357 = vst [vmem:[%s184 + $0x130] sm:$0xff] %v4845
        %5358 = vst [vmem:[%s184 + $0x138] sm:$0xff] %v4846
        %5359 = vst [vmem:[%s184 + $0x140] sm:$0xff] %v4847
        %5360 = vst [vmem:[%s184 + $0x148] sm:$0xff] %v4848
        %5361 = vst [vmem:[%s184 + $0x150] sm:$0xff] %v4849
        %5362 = vst [vmem:[%s184 + $0x158] sm:$0xff] %v4850
        %5363 = vst [vmem:[%s184 + $0x160] sm:$0xff] %v4851
        %5364 = vst [vmem:[%s184 + $0x168] sm:$0xff] %v4852
        %5365 = vst [vmem:[%s184 + $0x170] sm:$0xff] %v4853
        %5366 = vst [vmem:[%s184 + $0x178] sm:$0xff] %v4854
        %5367 = vst [vmem:[%s184 + $0x180] sm:$0xff] %v4855
        %5368 = vst [vmem:[%s184 + $0x188] sm:$0xff] %v4856
        %5369 = vst [vmem:[%s184 + $0x190] sm:$0xff] %v4857
        %5370 = vst [vmem:[%s184 + $0x198] sm:$0xff] %v4858
        %5371 = vst [vmem:[%s184 + $0x1a0] sm:$0xff] %v4859
        %5372 = vst [vmem:[%s184 + $0x1a8] sm:$0xff] %v4860
        %5373 = vst [vmem:[%s184 + $0x1b0] sm:$0xff] %v4861
        %5374 = vst [vmem:[%s184 + $0x1b8] sm:$0xff] %v4862
        %5375 = vst [vmem:[%s184 + $0x1c0] sm:$0xff] %v4863
        %5376 = vst [vmem:[%s184 + $0x1c8] sm:$0xff] %v4864
        %5377 = vst [vmem:[%s184 + $0x1d0] sm:$0xff] %v4865
        %5378 = vst [vmem:[%s184 + $0x1d8] sm:$0xff] %v4866
        %5379 = vst [vmem:[%s184 + $0x1e0] sm:$0xff] %v4867
        %5380 = vst [vmem:[%s184 + $0x1e8] sm:$0xff] %v4868
        %5381 = vst [vmem:[%s184 + $0x1f0] sm:$0xff] %v4869
        %5382 = vst [vmem:[%s184 + $0x1f8] sm:$0xff] %v4870
        %5383 = vst [vmem:[%s184 + $0x200] sm:$0xff] %v4871
        %5384 = vst [vmem:[%s184 + $0x208] sm:$0xff] %v4872
        %5385 = vst [vmem:[%s184 + $0x210] sm:$0xff] %v4873
        %5386 = vst [vmem:[%s184 + $0x218] sm:$0xff] %v4874
        %5387 = vst [vmem:[%s184 + $0x220] sm:$0xff] %v4875
        %5388 = vst [vmem:[%s184 + $0x228] sm:$0xff] %v4876
        %5389 = vst [vmem:[%s184 + $0x230] sm:$0xff] %v4877
        %5390 = vst [vmem:[%s184 + $0x238] sm:$0xff] %v4878
        %5391 = vst [vmem:[%s184 + $0x240] sm:$0xff] %v4879
        %5392 = vst [vmem:[%s184 + $0x248] sm:$0xff] %v4880
        %5393 = vst [vmem:[%s184 + $0x250] sm:$0xff] %v4881
        %5394 = vst [vmem:[%s184 + $0x258] sm:$0xff] %v4882
        %5395 = vst [vmem:[%s184 + $0x260] sm:$0xff] %v4883
        %5396 = vst [vmem:[%s184 + $0x268] sm:$0xff] %v4884
        %5397 = vst [vmem:[%s184 + $0x270] sm:$0xff] %v4885
        %5398 = vst [vmem:[%s184 + $0x278] sm:$0xff] %v4886
        %5399 = vst [vmem:[%s184 + $0x280] sm:$0xff] %v4887
        %5400 = vst [vmem:[%s184 + $0x288] sm:$0xff] %v4888
        %5401 = vst [vmem:[%s184 + $0x290] sm:$0xff] %v4889
        %5402 = vst [vmem:[%s184 + $0x298] sm:$0xff] %v4890
        %5403 = vst [vmem:[%s184 + $0x2a0] sm:$0xff] %v4891
        %5404 = vst [vmem:[%s184 + $0x2a8] sm:$0xff] %v4892
        %5405 = vst [vmem:[%s184 + $0x2b0] sm:$0xff] %v4893
        %5406 = vst [vmem:[%s184 + $0x2b8] sm:$0xff] %v4894
        %5407 = vst [vmem:[%s184 + $0x2c0] sm:$0xff] %v4895
        %5408 = vst [vmem:[%s184 + $0x2c8] sm:$0xff] %v4896
        %5409 = vst [vmem:[%s184 + $0x2d0] sm:$0xff] %v4897
        %5410 = vst [vmem:[%s184 + $0x2d8] sm:$0xff] %v4898
        %5411 = vst [vmem:[%s184 + $0x2e0] sm:$0xff] %v4899
        %5412 = vst [vmem:[%s184 + $0x2e8] sm:$0xff] %v4900
        %5413 = vst [vmem:[%s184 + $0x2f0] sm:$0xff] %v4901
        %5414 = vst [vmem:[%s184 + $0x2f8] sm:$0xff] %v4902
        %5415 = vst [vmem:[%s184 + $0x300] sm:$0xff] %v4903
        %5416 = vst [vmem:[%s184 + $0x308] sm:$0xff] %v4904
        %5417 = vst [vmem:[%s184 + $0x310] sm:$0xff] %v4905
        %5418 = vst [vmem:[%s184 + $0x318] sm:$0xff] %v4906
        %5419 = vst [vmem:[%s184 + $0x320] sm:$0xff] %v4907
        %5420 = vst [vmem:[%s184 + $0x328] sm:$0xff] %v4908
        %5421 = vst [vmem:[%s184 + $0x330] sm:$0xff] %v4909
        %5422 = vst [vmem:[%s184 + $0x338] sm:$0xff] %v4910
        %5423 = vst [vmem:[%s184 + $0x340] sm:$0xff] %v4911
        %5424 = vst [vmem:[%s184 + $0x348] sm:$0xff] %v4912
        %5425 = vst [vmem:[%s184 + $0x350] sm:$0xff] %v4913
        %5426 = vst [vmem:[%s184 + $0x358] sm:$0xff] %v4914
        %5427 = vst [vmem:[%s184 + $0x360] sm:$0xff] %v4915
        %5428 = vst [vmem:[%s184 + $0x368] sm:$0xff] %v4916
        %5429 = vst [vmem:[%s184 + $0x370] sm:$0xff] %v4917
        %5430 = vst [vmem:[%s184 + $0x378] sm:$0xff] %v4918
        %5431 = vst [vmem:[%s184 + $0x380] sm:$0xff] %v4919
        %5432 = vst [vmem:[%s184 + $0x388] sm:$0xff] %v4920
        %5433 = vst [vmem:[%s184 + $0x390] sm:$0xff] %v4921
        %5434 = vst [vmem:[%s184 + $0x398] sm:$0xff] %v4922
        %5435 = vst [vmem:[%s184 + $0x3a0] sm:$0xff] %v4923
        %5436 = vst [vmem:[%s184 + $0x3a8] sm:$0xff] %v4924
        %5437 = vst [vmem:[%s184 + $0x3b0] sm:$0xff] %v4925
        %5438 = vst [vmem:[%s184 + $0x3b8] sm:$0xff] %v4926
        %5439 = vst [vmem:[%s184 + $0x3c0] sm:$0xff] %v4927
        %5440 = vst [vmem:[%s184 + $0x3c8] sm:$0xff] %v4928
        %5441 = vst [vmem:[%s184 + $0x3d0] sm:$0xff] %v4929
        %5442 = vst [vmem:[%s184 + $0x3d8] sm:$0xff] %v4930
        %5443 = vst [vmem:[%s184 + $0x3e0] sm:$0xff] %v4931
        %5444 = vst [vmem:[%s184 + $0x3e8] sm:$0xff] %v4932
        %5445 = vst [vmem:[%s184 + $0x3f0] sm:$0xff] %v4933
        %5446 = vst [vmem:[%s184 + $0x3f8] sm:$0xff] %v4934
        %5447 = vst [vmem:[%s184 + $0x400] sm:$0xff] %v4935
        %5448 = vst [vmem:[%s184 + $0x408] sm:$0xff] %v4936
        %5449 = vst [vmem:[%s184 + $0x410] sm:$0xff] %v4937
        %5450 = vst [vmem:[%s184 + $0x418] sm:$0xff] %v4938
        %5451 = vst [vmem:[%s184 + $0x420] sm:$0xff] %v4939
        %5452 = vst [vmem:[%s184 + $0x428] sm:$0xff] %v4940
        %5453 = vst [vmem:[%s184 + $0x430] sm:$0xff] %v4941
        %5454 = vst [vmem:[%s184 + $0x438] sm:$0xff] %v4942
        %5455 = vst [vmem:[%s184 + $0x440] sm:$0xff] %v4943
        %5456 = vst [vmem:[%s184 + $0x448] sm:$0xff] %v4944
        %5457 = vst [vmem:[%s184 + $0x450] sm:$0xff] %v4945
        %5458 = vst [vmem:[%s184 + $0x458] sm:$0xff] %v4946
        %5459 = vst [vmem:[%s184 + $0x460] sm:$0xff] %v4947
        %5460 = vst [vmem:[%s184 + $0x468] sm:$0xff] %v4948
        %5461 = vst [vmem:[%s184 + $0x470] sm:$0xff] %v4949
        %5462 = vst [vmem:[%s184 + $0x478] sm:$0xff] %v4950
        %5463 = vst [vmem:[%s184 + $0x480] sm:$0xff] %v4951
        %5464 = vst [vmem:[%s184 + $0x488] sm:$0xff] %v4952
        %5465 = vst [vmem:[%s184 + $0x490] sm:$0xff] %v4953
        %5466 = vst [vmem:[%s184 + $0x498] sm:$0xff] %v4954
        %5467 = vst [vmem:[%s184 + $0x4a0] sm:$0xff] %v4955
        %5468 = vst [vmem:[%s184 + $0x4a8] sm:$0xff] %v4956
        %5469 = vst [vmem:[%s184 + $0x4b0] sm:$0xff] %v4957
        %5470 = vst [vmem:[%s184 + $0x4b8] sm:$0xff] %v4958
        %5471 = vst [vmem:[%s184 + $0x4c0] sm:$0xff] %v4959
        %5472 = vst [vmem:[%s184 + $0x4c8] sm:$0xff] %v4960
        %5473 = vst [vmem:[%s184 + $0x4d0] sm:$0xff] %v4961
        %5474 = vst [vmem:[%s184 + $0x4d8] sm:$0xff] %v4962
        %5475 = vst [vmem:[%s184 + $0x4e0] sm:$0xff] %v4963
        %5476 = vst [vmem:[%s184 + $0x4e8] sm:$0xff] %v4964
        %5477 = vst [vmem:[%s184 + $0x4f0] sm:$0xff] %v4965
        %5478 = vst [vmem:[%s184 + $0x4f8] sm:$0xff] %v4966
        %5479 = vst [vmem:[%s184 + $0x500] sm:$0xff] %v4967
        %5480 = vst [vmem:[%s184 + $0x508] sm:$0xff] %v4968
        %5481 = vst [vmem:[%s184 + $0x510] sm:$0xff] %v4969
        %5482 = vst [vmem:[%s184 + $0x518] sm:$0xff] %v4970
        %5483 = vst [vmem:[%s184 + $0x520] sm:$0xff] %v4971
        %5484 = vst [vmem:[%s184 + $0x528] sm:$0xff] %v4972
        %5485 = vst [vmem:[%s184 + $0x530] sm:$0xff] %v4973
        %5486 = vst [vmem:[%s184 + $0x538] sm:$0xff] %v4974
        %5487 = vst [vmem:[%s184 + $0x540] sm:$0xff] %v4975
        %5488 = vst [vmem:[%s184 + $0x548] sm:$0xff] %v4976
        %5489 = vst [vmem:[%s184 + $0x550] sm:$0xff] %v4977
        %5490 = vst [vmem:[%s184 + $0x558] sm:$0xff] %v4978
        %5491 = vst [vmem:[%s184 + $0x560] sm:$0xff] %v4979
        %5492 = vst [vmem:[%s184 + $0x568] sm:$0xff] %v4980
        %5493 = vst [vmem:[%s184 + $0x570] sm:$0xff] %v4981
        %5494 = vst [vmem:[%s184 + $0x578] sm:$0xff] %v4982
        %5495 = vst [vmem:[%s184 + $0x580] sm:$0xff] %v4983
        %5496 = vst [vmem:[%s184 + $0x588] sm:$0xff] %v4984
        %5497 = vst [vmem:[%s184 + $0x590] sm:$0xff] %v4985
        %5498 = vst [vmem:[%s184 + $0x598] sm:$0xff] %v4986
        %5499 = vst [vmem:[%s184 + $0x5a0] sm:$0xff] %v4987
        %5500 = vst [vmem:[%s184 + $0x5a8] sm:$0xff] %v4988
        %5501 = vst [vmem:[%s184 + $0x5b0] sm:$0xff] %v4989
        %5502 = vst [vmem:[%s184 + $0x5b8] sm:$0xff] %v4990
        %5503 = vst [vmem:[%s184 + $0x5c0] sm:$0xff] %v4991
        %5504 = vst [vmem:[%s184 + $0x5c8] sm:$0xff] %v4992
        %5505 = vst [vmem:[%s184 + $0x5d0] sm:$0xff] %v4993
        %5506 = vst [vmem:[%s184 + $0x5d8] sm:$0xff] %v4994
        %5507 = vst [vmem:[%s184 + $0x5e0] sm:$0xff] %v4995
        %5508 = vst [vmem:[%s184 + $0x5e8] sm:$0xff] %v4996
        %5509 = vst [vmem:[%s184 + $0x5f0] sm:$0xff] %v4997
        %5510 = vst [vmem:[%s184 + $0x5f8] sm:$0xff] %v4998
        %5511 = vst [vmem:[%s184 + $0x600] sm:$0xff] %v4999
        %5512 = vst [vmem:[%s184 + $0x608] sm:$0xff] %v5000
        %5513 = vst [vmem:[%s184 + $0x610] sm:$0xff] %v5001
        %5514 = vst [vmem:[%s184 + $0x618] sm:$0xff] %v5002
        %5515 = vst [vmem:[%s184 + $0x620] sm:$0xff] %v5003
        %5516 = vst [vmem:[%s184 + $0x628] sm:$0xff] %v5004
        %5517 = vst [vmem:[%s184 + $0x630] sm:$0xff] %v5005
        %5518 = vst [vmem:[%s184 + $0x638] sm:$0xff] %v5006
        %5519 = vst [vmem:[%s184 + $0x640] sm:$0xff] %v5007
        %5520 = vst [vmem:[%s184 + $0x648] sm:$0xff] %v5008
        %5521 = vst [vmem:[%s184 + $0x650] sm:$0xff] %v5009
        %5522 = vst [vmem:[%s184 + $0x658] sm:$0xff] %v5010
        %5523 = vst [vmem:[%s184 + $0x660] sm:$0xff] %v5011
        %5524 = vst [vmem:[%s184 + $0x668] sm:$0xff] %v5012
        %5525 = vst [vmem:[%s184 + $0x670] sm:$0xff] %v5013
        %5526 = vst [vmem:[%s184 + $0x678] sm:$0xff] %v5014
        %5527 = vst [vmem:[%s184 + $0x680] sm:$0xff] %v5015
        %5528 = vst [vmem:[%s184 + $0x688] sm:$0xff] %v5016
        %5529 = vst [vmem:[%s184 + $0x690] sm:$0xff] %v5017
        %5530 = vst [vmem:[%s184 + $0x698] sm:$0xff] %v5018
        %5531 = vst [vmem:[%s184 + $0x6a0] sm:$0xff] %v5019
        %5532 = vst [vmem:[%s184 + $0x6a8] sm:$0xff] %v5020
        %5533 = vst [vmem:[%s184 + $0x6b0] sm:$0xff] %v5021
        %5534 = vst [vmem:[%s184 + $0x6b8] sm:$0xff] %v5022
        %5535 = vst [vmem:[%s184 + $0x6c0] sm:$0xff] %v5023
        %5536 = vst [vmem:[%s184 + $0x6c8] sm:$0xff] %v5024
        %5537 = vst [vmem:[%s184 + $0x6d0] sm:$0xff] %v5025
        %5538 = vst [vmem:[%s184 + $0x6d8] sm:$0xff] %v5026
        %5539 = vst [vmem:[%s184 + $0x6e0] sm:$0xff] %v5027
        %5540 = vst [vmem:[%s184 + $0x6e8] sm:$0xff] %v5028
        %5541 = vst [vmem:[%s184 + $0x6f0] sm:$0xff] %v5029
        %5542 = vst [vmem:[%s184 + $0x6f8] sm:$0xff] %v5030
        %5543 = vst [vmem:[%s184 + $0x700] sm:$0xff] %v5031
        %5544 = vst [vmem:[%s184 + $0x708] sm:$0xff] %v5032
        %5545 = vst [vmem:[%s184 + $0x710] sm:$0xff] %v5033
        %5546 = vst [vmem:[%s184 + $0x718] sm:$0xff] %v5034
        %5547 = vst [vmem:[%s184 + $0x720] sm:$0xff] %v5035
        %5548 = vst [vmem:[%s184 + $0x728] sm:$0xff] %v5036
        %5549 = vst [vmem:[%s184 + $0x730] sm:$0xff] %v5037
        %5550 = vst [vmem:[%s184 + $0x738] sm:$0xff] %v5038
        %5551 = vst [vmem:[%s184 + $0x740] sm:$0xff] %v5039
        %5552 = vst [vmem:[%s184 + $0x748] sm:$0xff] %v5040
        %5553 = vst [vmem:[%s184 + $0x750] sm:$0xff] %v5041
        %5554 = vst [vmem:[%s184 + $0x758] sm:$0xff] %v5042
        %5555 = vst [vmem:[%s184 + $0x760] sm:$0xff] %v5043
        %5556 = vst [vmem:[%s184 + $0x768] sm:$0xff] %v5044
        %5557 = vst [vmem:[%s184 + $0x770] sm:$0xff] %v5045
        %5558 = vst [vmem:[%s184 + $0x778] sm:$0xff] %v5046
        %5559 = vst [vmem:[%s184 + $0x780] sm:$0xff] %v5047
        %5560 = vst [vmem:[%s184 + $0x788] sm:$0xff] %v5048
        %5561 = vst [vmem:[%s184 + $0x790] sm:$0xff] %v5049
        %5562 = vst [vmem:[%s184 + $0x798] sm:$0xff] %v5050
        %5563 = vst [vmem:[%s184 + $0x7a0] sm:$0xff] %v5051
        %5564 = vst [vmem:[%s184 + $0x7a8] sm:$0xff] %v5052
        %5565 = vst [vmem:[%s184 + $0x7b0] sm:$0xff] %v5053
        %5566 = vst [vmem:[%s184 + $0x7b8] sm:$0xff] %v5054
        %5567 = vst [vmem:[%s184 + $0x7c0] sm:$0xff] %v5055
        %5568 = vst [vmem:[%s184 + $0x7c8] sm:$0xff] %v5056
        %5569 = vst [vmem:[%s184 + $0x7d0] sm:$0xff] %v5057
        %5570 = vst [vmem:[%s184 + $0x7d8] sm:$0xff] %v5058
        %5571 = vst [vmem:[%s184 + $0x7e0] sm:$0xff] %v5059
        %5572 = vst [vmem:[%s184 + $0x7e8] sm:$0xff] %v5060
        %5573 = vst [vmem:[%s184 + $0x7f0] sm:$0xff] %v5061
        %5574 = vst [vmem:[%s184 + $0x7f8] sm:$0xff] %v5062
        %5575 = vst [vmem:[%s184 + $0x800] sm:$0xff] %v5063
        %5576 = vst [vmem:[%s184 + $0x808] sm:$0xff] %v5064
        %5577 = vst [vmem:[%s184 + $0x810] sm:$0xff] %v5065
        %5578 = vst [vmem:[%s184 + $0x818] sm:$0xff] %v5066
        %5579 = vst [vmem:[%s184 + $0x820] sm:$0xff] %v5067
        %5580 = vst [vmem:[%s184 + $0x828] sm:$0xff] %v5068
        %5581 = vst [vmem:[%s184 + $0x830] sm:$0xff] %v5069
        %5582 = vst [vmem:[%s184 + $0x838] sm:$0xff] %v5070
        %5583 = vst [vmem:[%s184 + $0x840] sm:$0xff] %v5071
        %5584 = vst [vmem:[%s184 + $0x848] sm:$0xff] %v5072
        %5585 = vst [vmem:[%s184 + $0x850] sm:$0xff] %v5073
        %5586 = vst [vmem:[%s184 + $0x858] sm:$0xff] %v5074
        %5587 = vst [vmem:[%s184 + $0x860] sm:$0xff] %v5075
        %5588 = vst [vmem:[%s184 + $0x868] sm:$0xff] %v5076
        %5589 = vst [vmem:[%s184 + $0x870] sm:$0xff] %v5077
        %5590 = vst [vmem:[%s184 + $0x878] sm:$0xff] %v5078
        %5591 = vst [vmem:[%s184 + $0x880] sm:$0xff] %v5079
        %5592 = vst [vmem:[%s184 + $0x888] sm:$0xff] %v5080
        %5593 = vst [vmem:[%s184 + $0x890] sm:$0xff] %v5081
        %5594 = vst [vmem:[%s184 + $0x898] sm:$0xff] %v5082
        %5595 = vst [vmem:[%s184 + $0x8a0] sm:$0xff] %v5083
        %5596 = vst [vmem:[%s184 + $0x8a8] sm:$0xff] %v5084
        %5597 = vst [vmem:[%s184 + $0x8b0] sm:$0xff] %v5085
        %5598 = vst [vmem:[%s184 + $0x8b8] sm:$0xff] %v5086
        %5599 = vst [vmem:[%s184 + $0x8c0] sm:$0xff] %v5087
        %5600 = vst [vmem:[%s184 + $0x8c8] sm:$0xff] %v5088
        %5601 = vst [vmem:[%s184 + $0x8d0] sm:$0xff] %v5089
        %5602 = vst [vmem:[%s184 + $0x8d8] sm:$0xff] %v5090
        %5603 = vst [vmem:[%s184 + $0x8e0] sm:$0xff] %v5091
        %5604 = vst [vmem:[%s184 + $0x8e8] sm:$0xff] %v5092
        %5605 = vst [vmem:[%s184 + $0x8f0] sm:$0xff] %v5093
        %5606 = vst [vmem:[%s184 + $0x8f8] sm:$0xff] %v5094
        %5607 = vst [vmem:[%s184 + $0x900] sm:$0xff] %v5095
        %5608 = vst [vmem:[%s184 + $0x908] sm:$0xff] %v5096
        %5609 = vst [vmem:[%s184 + $0x910] sm:$0xff] %v5097
        %5610 = vst [vmem:[%s184 + $0x918] sm:$0xff] %v5098
        %5611 = vst [vmem:[%s184 + $0x920] sm:$0xff] %v5099
        %5612 = vst [vmem:[%s184 + $0x928] sm:$0xff] %v5100
        %5613 = vst [vmem:[%s184 + $0x930] sm:$0xff] %v5101
        %5614 = vst [vmem:[%s184 + $0x938] sm:$0xff] %v5102
        %5615 = vst [vmem:[%s184 + $0x940] sm:$0xff] %v5103
        %5616 = vst [vmem:[%s184 + $0x948] sm:$0xff] %v5104
        %5617 = vst [vmem:[%s184 + $0x950] sm:$0xff] %v5105
        %5618 = vst [vmem:[%s184 + $0x958] sm:$0xff] %v5106
        %5619 = vst [vmem:[%s184 + $0x960] sm:$0xff] %v5107
        %5620 = vst [vmem:[%s184 + $0x968] sm:$0xff] %v5108
        %5621 = vst [vmem:[%s184 + $0x970] sm:$0xff] %v5109
        %5622 = vst [vmem:[%s184 + $0x978] sm:$0xff] %v5110
        %5623 = vst [vmem:[%s184 + $0x980] sm:$0xff] %v5111
        %5624 = vst [vmem:[%s184 + $0x988] sm:$0xff] %v5112
        %5625 = vst [vmem:[%s184 + $0x990] sm:$0xff] %v5113
        %5626 = vst [vmem:[%s184 + $0x998] sm:$0xff] %v5114
        %5627 = vst [vmem:[%s184 + $0x9a0] sm:$0xff] %v5115
        %5628 = vst [vmem:[%s184 + $0x9a8] sm:$0xff] %v5116
        %5629 = vst [vmem:[%s184 + $0x9b0] sm:$0xff] %v5117
        %5630 = vst [vmem:[%s184 + $0x9b8] sm:$0xff] %v5118
        %5631 = vst [vmem:[%s184 + $0x9c0] sm:$0xff] %v5119
        %5632 = vst [vmem:[%s184 + $0x9c8] sm:$0xff] %v5120
        %5633 = vst [vmem:[%s184 + $0x9d0] sm:$0xff] %v5121
        %5634 = vst [vmem:[%s184 + $0x9d8] sm:$0xff] %v5122
        %5635 = vst [vmem:[%s184 + $0x9e0] sm:$0xff] %v5123
        %5636 = vst [vmem:[%s184 + $0x9e8] sm:$0xff] %v5124
        %5637 = vst [vmem:[%s184 + $0x9f0] sm:$0xff] %v5125
        %5638 = vst [vmem:[%s184 + $0x9f8] sm:$0xff] %v5126
        %5639 = vst [vmem:[%s184 + $0xa00] sm:$0xff] %v5127
        %5640 = vst [vmem:[%s184 + $0xa08] sm:$0xff] %v5128
        %5641 = vst [vmem:[%s184 + $0xa10] sm:$0xff] %v5129
        %5642 = vst [vmem:[%s184 + $0xa18] sm:$0xff] %v5130
        %5643 = vst [vmem:[%s184 + $0xa20] sm:$0xff] %v5131
        %5644 = vst [vmem:[%s184 + $0xa28] sm:$0xff] %v5132
        %5645 = vst [vmem:[%s184 + $0xa30] sm:$0xff] %v5133
        %5646 = vst [vmem:[%s184 + $0xa38] sm:$0xff] %v5134
        %5647 = vst [vmem:[%s184 + $0xa40] sm:$0xff] %v5135
        %5648 = vst [vmem:[%s184 + $0xa48] sm:$0xff] %v5136
        %5649 = vst [vmem:[%s184 + $0xa50] sm:$0xff] %v5137
        %5650 = vst [vmem:[%s184 + $0xa58] sm:$0xff] %v5138
        %5651 = vst [vmem:[%s184 + $0xa60] sm:$0xff] %v5139
        %5652 = vst [vmem:[%s184 + $0xa68] sm:$0xff] %v5140
        %5653 = vst [vmem:[%s184 + $0xa70] sm:$0xff] %v5141
        %5654 = vst [vmem:[%s184 + $0xa78] sm:$0xff] %v5142
        %5655 = vst [vmem:[%s184 + $0xa80] sm:$0xff] %v5143
        %5656 = vst [vmem:[%s184 + $0xa88] sm:$0xff] %v5144
        %5657 = vst [vmem:[%s184 + $0xa90] sm:$0xff] %v5145
        %5658 = vst [vmem:[%s184 + $0xa98] sm:$0xff] %v5146
        %5659 = vst [vmem:[%s184 + $0xaa0] sm:$0xff] %v5147
        %5660 = vst [vmem:[%s184 + $0xaa8] sm:$0xff] %v5148
        %5661 = vst [vmem:[%s184 + $0xab0] sm:$0xff] %v5149
        %5662 = vst [vmem:[%s184 + $0xab8] sm:$0xff] %v5150
        %5663 = vst [vmem:[%s184 + $0xac0] sm:$0xff] %v5151
        %5664 = vst [vmem:[%s184 + $0xac8] sm:$0xff] %v5152
        %5665 = vst [vmem:[%s184 + $0xad0] sm:$0xff] %v5153
        %5666 = vst [vmem:[%s184 + $0xad8] sm:$0xff] %v5154
        %5667 = vst [vmem:[%s184 + $0xae0] sm:$0xff] %v5155
        %5668 = vst [vmem:[%s184 + $0xae8] sm:$0xff] %v5156
        %5669 = vst [vmem:[%s184 + $0xaf0] sm:$0xff] %v5157
        %5670 = vst [vmem:[%s184 + $0xaf8] sm:$0xff] %v5158
        %5671 = vst [vmem:[%s184 + $0xb00] sm:$0xff] %v5159
        %5672 = vst [vmem:[%s184 + $0xb08] sm:$0xff] %v5160
        %5673 = vst [vmem:[%s184 + $0xb10] sm:$0xff] %v5161
        %5674 = vst [vmem:[%s184 + $0xb18] sm:$0xff] %v5162
        %5675 = vst [vmem:[%s184 + $0xb20] sm:$0xff] %v5163
        %5676 = vst [vmem:[%s184 + $0xb28] sm:$0xff] %v5164
        %5677 = vst [vmem:[%s184 + $0xb30] sm:$0xff] %v5165
        %5678 = vst [vmem:[%s184 + $0xb38] sm:$0xff] %v5166
        %5679 = vst [vmem:[%s184 + $0xb40] sm:$0xff] %v5167
        %5680 = vst [vmem:[%s184 + $0xb48] sm:$0xff] %v5168
        %5681 = vst [vmem:[%s184 + $0xb50] sm:$0xff] %v5169
        %5682 = vst [vmem:[%s184 + $0xb58] sm:$0xff] %v5170
        %5683 = vst [vmem:[%s184 + $0xb60] sm:$0xff] %v5171
        %5684 = vst [vmem:[%s184 + $0xb68] sm:$0xff] %v5172
        %5685 = vst [vmem:[%s184 + $0xb70] sm:$0xff] %v5173
        %5686 = vst [vmem:[%s184 + $0xb78] sm:$0xff] %v5174
        %5687 = vst [vmem:[%s184 + $0xb80] sm:$0xff] %v5175
        %5688 = vst [vmem:[%s184 + $0xb88] sm:$0xff] %v5176
        %5689 = vst [vmem:[%s184 + $0xb90] sm:$0xff] %v5177
        %5690 = vst [vmem:[%s184 + $0xb98] sm:$0xff] %v5178
        %5691 = vst [vmem:[%s184 + $0xba0] sm:$0xff] %v5179
        %5692 = vst [vmem:[%s184 + $0xba8] sm:$0xff] %v5180
        %5693 = vst [vmem:[%s184 + $0xbb0] sm:$0xff] %v5181
        %5694 = vst [vmem:[%s184 + $0xbb8] sm:$0xff] %v5182
        %5695 = vst [vmem:[%s184 + $0xbc0] sm:$0xff] %v5183
        %5696 = vst [vmem:[%s184 + $0xbc8] sm:$0xff] %v5184
        %5697 = vst [vmem:[%s184 + $0xbd0] sm:$0xff] %v5185
        %5698 = vst [vmem:[%s184 + $0xbd8] sm:$0xff] %v5186
        %5699 = vst [vmem:[%s184 + $0xbe0] sm:$0xff] %v5187
        %5700 = vst [vmem:[%s184 + $0xbe8] sm:$0xff] %v5188
        %5701 = vst [vmem:[%s184 + $0xbf0] sm:$0xff] %v5189
        %5702 = vst [vmem:[%s184 + $0xbf8] sm:$0xff] %v5190
        %5703 = vst [vmem:[%s184 + $0xc00] sm:$0xff] %v5191
        %5704 = vst [vmem:[%s184 + $0xc08] sm:$0xff] %v5192
        %5705 = vst [vmem:[%s184 + $0xc10] sm:$0xff] %v5193
        %5706 = vst [vmem:[%s184 + $0xc18] sm:$0xff] %v5194
        %5707 = vst [vmem:[%s184 + $0xc20] sm:$0xff] %v5195
        %5708 = vst [vmem:[%s184 + $0xc28] sm:$0xff] %v5196
        %5709 = vst [vmem:[%s184 + $0xc30] sm:$0xff] %v5197
        %5710 = vst [vmem:[%s184 + $0xc38] sm:$0xff] %v5198
        %5711 = vst [vmem:[%s184 + $0xc40] sm:$0xff] %v5199
        %5712 = vst [vmem:[%s184 + $0xc48] sm:$0xff] %v5200
        %5713 = vst [vmem:[%s184 + $0xc50] sm:$0xff] %v5201
        %5714 = vst [vmem:[%s184 + $0xc58] sm:$0xff] %v5202
        %5715 = vst [vmem:[%s184 + $0xc60] sm:$0xff] %v5203
        %5716 = vst [vmem:[%s184 + $0xc68] sm:$0xff] %v5204
        %5717 = vst [vmem:[%s184 + $0xc70] sm:$0xff] %v5205
        %5718 = vst [vmem:[%s184 + $0xc78] sm:$0xff] %v5206
        %5719 = vst [vmem:[%s184 + $0xc80] sm:$0xff] %v5207
        %5720 = vst [vmem:[%s184 + $0xc88] sm:$0xff] %v5208
        %5721 = vst [vmem:[%s184 + $0xc90] sm:$0xff] %v5209
        %5722 = vst [vmem:[%s184 + $0xc98] sm:$0xff] %v5210
        %5723 = vst [vmem:[%s184 + $0xca0] sm:$0xff] %v5211
        %5724 = vst [vmem:[%s184 + $0xca8] sm:$0xff] %v5212
        %5725 = vst [vmem:[%s184 + $0xcb0] sm:$0xff] %v5213
        %5726 = vst [vmem:[%s184 + $0xcb8] sm:$0xff] %v5214
        %5727 = vst [vmem:[%s184 + $0xcc0] sm:$0xff] %v5215
        %5728 = vst [vmem:[%s184 + $0xcc8] sm:$0xff] %v5216
        %5729 = vst [vmem:[%s184 + $0xcd0] sm:$0xff] %v5217
        %5730 = vst [vmem:[%s184 + $0xcd8] sm:$0xff] %v5218
        %5731 = vst [vmem:[%s184 + $0xce0] sm:$0xff] %v5219
        %5732 = vst [vmem:[%s184 + $0xce8] sm:$0xff] %v5220
        %5733 = vst [vmem:[%s184 + $0xcf0] sm:$0xff] %v5221
        %5734 = vst [vmem:[%s184 + $0xcf8] sm:$0xff] %v5222
        %5735 = vst [vmem:[%s184 + $0xd00] sm:$0xff] %v5223
        %5736 = vst [vmem:[%s184 + $0xd08] sm:$0xff] %v5224
        %5737 = vst [vmem:[%s184 + $0xd10] sm:$0xff] %v5225
        %5738 = vst [vmem:[%s184 + $0xd18] sm:$0xff] %v5226
        %5739 = vst [vmem:[%s184 + $0xd20] sm:$0xff] %v5227
        %5740 = vst [vmem:[%s184 + $0xd28] sm:$0xff] %v5228
        %5741 = vst [vmem:[%s184 + $0xd30] sm:$0xff] %v5229
        %5742 = vst [vmem:[%s184 + $0xd38] sm:$0xff] %v5230
        %5743 = vst [vmem:[%s184 + $0xd40] sm:$0xff] %v5231
        %5744 = vst [vmem:[%s184 + $0xd48] sm:$0xff] %v5232
        %5745 = vst [vmem:[%s184 + $0xd50] sm:$0xff] %v5233
        %5746 = vst [vmem:[%s184 + $0xd58] sm:$0xff] %v5234
        %5747 = vst [vmem:[%s184 + $0xd60] sm:$0xff] %v5235
        %5748 = vst [vmem:[%s184 + $0xd68] sm:$0xff] %v5236
        %5749 = vst [vmem:[%s184 + $0xd70] sm:$0xff] %v5237
        %5750 = vst [vmem:[%s184 + $0xd78] sm:$0xff] %v5238
        %5751 = vst [vmem:[%s184 + $0xd80] sm:$0xff] %v5239
        %5752 = vst [vmem:[%s184 + $0xd88] sm:$0xff] %v5240
        %5753 = vst [vmem:[%s184 + $0xd90] sm:$0xff] %v5241
        %5754 = vst [vmem:[%s184 + $0xd98] sm:$0xff] %v5242
        %5755 = vst [vmem:[%s184 + $0xda0] sm:$0xff] %v5243
        %5756 = vst [vmem:[%s184 + $0xda8] sm:$0xff] %v5244
        %5757 = vst [vmem:[%s184 + $0xdb0] sm:$0xff] %v5245
        %5758 = vst [vmem:[%s184 + $0xdb8] sm:$0xff] %v5246
        %5759 = vst [vmem:[%s184 + $0xdc0] sm:$0xff] %v5247
        %5760 = vst [vmem:[%s184 + $0xdc8] sm:$0xff] %v5248
        %5761 = vst [vmem:[%s184 + $0xdd0] sm:$0xff] %v5249
        %5762 = vst [vmem:[%s184 + $0xdd8] sm:$0xff] %v5250
        %5763 = vst [vmem:[%s184 + $0xde0] sm:$0xff] %v5251
        %5764 = vst [vmem:[%s184 + $0xde8] sm:$0xff] %v5252
        %5765 = vst [vmem:[%s184 + $0xdf0] sm:$0xff] %v5253
        %5766 = vst [vmem:[%s184 + $0xdf8] sm:$0xff] %v5254
        %5767 = vst [vmem:[%s184 + $0xe00] sm:$0xff] %v5255
        %5768 = vst [vmem:[%s184 + $0xe08] sm:$0xff] %v5256
        %5769 = vst [vmem:[%s184 + $0xe10] sm:$0xff] %v5257
        %5770 = vst [vmem:[%s184 + $0xe18] sm:$0xff] %v5258
        %5771 = vst [vmem:[%s184 + $0xe20] sm:$0xff] %v5259
        %5772 = vst [vmem:[%s184 + $0xe28] sm:$0xff] %v5260
        %5773 = vst [vmem:[%s184 + $0xe30] sm:$0xff] %v5261
        %5774 = vst [vmem:[%s184 + $0xe38] sm:$0xff] %v5262
        %5775 = vst [vmem:[%s184 + $0xe40] sm:$0xff] %v5263
        %5776 = vst [vmem:[%s184 + $0xe48] sm:$0xff] %v5264
        %5777 = vst [vmem:[%s184 + $0xe50] sm:$0xff] %v5265
        %5778 = vst [vmem:[%s184 + $0xe58] sm:$0xff] %v5266
        %5779 = vst [vmem:[%s184 + $0xe60] sm:$0xff] %v5267
        %5780 = vst [vmem:[%s184 + $0xe68] sm:$0xff] %v5268
        %5781 = vst [vmem:[%s184 + $0xe70] sm:$0xff] %v5269
        %5782 = vst [vmem:[%s184 + $0xe78] sm:$0xff] %v5270
        %5783 = vst [vmem:[%s184 + $0xe80] sm:$0xff] %v5271
        %5784 = vst [vmem:[%s184 + $0xe88] sm:$0xff] %v5272
        %5785 = vst [vmem:[%s184 + $0xe90] sm:$0xff] %v5273
        %5786 = vst [vmem:[%s184 + $0xe98] sm:$0xff] %v5274
        %5787 = vst [vmem:[%s184 + $0xea0] sm:$0xff] %v5275
        %5788 = vst [vmem:[%s184 + $0xea8] sm:$0xff] %v5276
        %5789 = vst [vmem:[%s184 + $0xeb0] sm:$0xff] %v5277
        %5790 = vst [vmem:[%s184 + $0xeb8] sm:$0xff] %v5278
        %5791 = vst [vmem:[%s184 + $0xec0] sm:$0xff] %v5279
        %5792 = vst [vmem:[%s184 + $0xec8] sm:$0xff] %v5280
        %5793 = vst [vmem:[%s184 + $0xed0] sm:$0xff] %v5281
        %5794 = vst [vmem:[%s184 + $0xed8] sm:$0xff] %v5282
        %5795 = vst [vmem:[%s184 + $0xee0] sm:$0xff] %v5283
        %5796 = vst [vmem:[%s184 + $0xee8] sm:$0xff] %v5284
        %5797 = vst [vmem:[%s184 + $0xef0] sm:$0xff] %v5285
        %5798 = vst [vmem:[%s184 + $0xef8] sm:$0xff] %v5286
        %5799 = vst [vmem:[%s184 + $0xf00] sm:$0xff] %v5287
        %5800 = vst [vmem:[%s184 + $0xf08] sm:$0xff] %v5288
        %5801 = vst [vmem:[%s184 + $0xf10] sm:$0xff] %v5289
        %5802 = vst [vmem:[%s184 + $0xf18] sm:$0xff] %v5290
        %5803 = vst [vmem:[%s184 + $0xf20] sm:$0xff] %v5291
        %5804 = vst [vmem:[%s184 + $0xf28] sm:$0xff] %v5292
        %5805 = vst [vmem:[%s184 + $0xf30] sm:$0xff] %v5293
        %5806 = vst [vmem:[%s184 + $0xf38] sm:$0xff] %v5294
        %5807 = vst [vmem:[%s184 + $0xf40] sm:$0xff] %v5295
        %5808 = vst [vmem:[%s184 + $0xf48] sm:$0xff] %v5296
        %5809 = vst [vmem:[%s184 + $0xf50] sm:$0xff] %v5297
        %5810 = vst [vmem:[%s184 + $0xf58] sm:$0xff] %v5298
        %5811 = vst [vmem:[%s184 + $0xf60] sm:$0xff] %v5299
        %5812 = vst [vmem:[%s184 + $0xf68] sm:$0xff] %v5300
        %5813 = vst [vmem:[%s184 + $0xf70] sm:$0xff] %v5301
        %5814 = vst [vmem:[%s184 + $0xf78] sm:$0xff] %v5302
        %5815 = vst [vmem:[%s184 + $0xf80] sm:$0xff] %v5303
        %5816 = vst [vmem:[%s184 + $0xf88] sm:$0xff] %v5304
        %5817 = vst [vmem:[%s184 + $0xf90] sm:$0xff] %v5305
        %5818 = vst [vmem:[%s184 + $0xf98] sm:$0xff] %v5306
        %5819 = vst [vmem:[%s184 + $0xfa0] sm:$0xff] %v5307
        %5820 = vst [vmem:[%s184 + $0xfa8] sm:$0xff] %v5308
        %5821 = vst [vmem:[%s184 + $0xfb0] sm:$0xff] %v5309
        %5822 = vst [vmem:[%s184 + $0xfb8] sm:$0xff] %v5310
        %5823 = vst [vmem:[%s184 + $0xfc0] sm:$0xff] %v5311
        %5824 = vst [vmem:[%s184 + $0xfc8] sm:$0xff] %v5312
        %5825 = vst [vmem:[%s184 + $0xfd0] sm:$0xff] %v5313
        %5826 = vst [vmem:[%s184 + $0xfd8] sm:$0xff] %v5314
        %5827 = vst [vmem:[%s184 + $0xfe0] sm:$0xff] %v5315
        %5828 = vst [vmem:[%s184 + $0xfe8] sm:$0xff] %v5316
        %5829 = vst [vmem:[%s184 + $0xff0] sm:$0xff] %v5317
        %5830 = vst [vmem:[%s184 + $0xff8] sm:$0xff] %v5318
        %s5831 = sand.u32 %s75, 1
        %s5832 = scalar_lea.sflag [#allocation4], %s5831
        %s5833 = sand.u32 %s75, 1
        %s5834 = smul.addr %s5833, 4096
        %s5835 = scalar_lea.vmem [#allocation7], %s5834
        // Predicated region
        $region37: #{tpu_custom_call.1} parent=27 // pred_check
          %p5836 = pneg %p85
        $region38: #{tpu_custom_call.1} parent=27 // pred_check_branch
          %5838 = sbr.rel (%p5836) target = $region40
        $region39: #{tpu_custom_call.1} parent=27 // pred_region
          %s5839 = smul.u32 512, %s20
          %s5840 = ssub.s32 640, %s5839
          %p5841 = scmp.lt.s32.totalorder %s5840, 512
          %s5842 = scalar_select %p5841, %s5840, 512
          %s5843 = smul.u32 8, %s5842
          %s5844 = ssub.s32 4096, %s5843
          %s5845 = sshll.u32 %s5844, 4
          %5846 = vsyncadd %s5832, %s5845
          %p5847 = scmp.ne.s32.totalorder 0, %s5843
          %s5848 = smul.addr %s5839, 8
          %s5849 = scalar_lea.hbm %s2, %s5848
          %s5850 = smul.u32 8, %s5842
          %s5851 = sshll.u32 %s5835, 4
          %s5852 = int_to_ptr.vmem [resolvable:$true] %s5851
          %s5853 = sshll.u32 %s5849, 4
          %s5854 = int_to_ptr.hbm [resolvable:$true] %s5853
          %s5855 = sshll.u32 %s5850, 4
          %5859 = dma.vmem_to_hbm [thread:$0]  (%p5847), %s5852, %s5855, %s5854, %s5832, 128, 128, 8
        $region40: #{tpu_custom_call.1} parent=27 // pred_fallthru
          _
      $region28: #{tpu_custom_call.1} parent=5 // pred_fallthru
        _
      %p5860 = scmp.le.s32.totalorder 2, %s15
      // Predicated region
      $region41: #{tpu_custom_call.1} parent=5 // pred_check
        %p5861 = pneg %p5860
      $region42: #{tpu_custom_call.1} parent=5 // pred_check_branch
        %5863 = sbr.rel (%p5861) target = $region44
      $region43: #{tpu_custom_call.1} parent=5 // pred_region
        %s5864 = ssub.s32 %s15, 2
        // Predicated region
        $region45: #{tpu_custom_call.1} parent=43 // pred_check
          %p5865 = pneg %p91
        $region46: #{tpu_custom_call.1} parent=43 // pred_check_branch
          %5867 = sbr.rel (%p5865) target = $region48
        $region47: #{tpu_custom_call.1} parent=43 // pred_region
          %s5868 = sand.u32 %s76, 1
          %s5869 = scalar_lea.sflag [#allocation4], %s5868
          %s5870 = sand.u32 %s76, 1
          %s5871 = smul.addr %s5870, 4096
          %s5872 = scalar_lea.vmem [#allocation7], %s5871
          %5874 = dma.done %s5869, 65536
        $region48: #{tpu_custom_call.1} parent=43 // pred_fallthru
          _
      $region44: #{tpu_custom_call.1} parent=5 // pred_fallthru
        _
    $region6: #{tpu_custom_call.1} parent=1 // loop_footer
      %s19 = sadd.s32 1, %s15
    $region7: #{tpu_custom_call.1} parent=1 // loop_footer_branch
      %14 = sbr.rel target = $region3
    $region8: #{tpu_custom_call.1} parent=1 // loop_exit
      _
    %5875 = vsyncpa [#allocation3], 1
    %s5876 = scalar_lea.sflag [#allocation3], 1
    %5877 = vsyncpa %s5876, 1
    %5878 = vsyncpa [#allocation4], 1
    %s5879 = scalar_lea.sflag [#allocation4], 1
    %5880 = vsyncpa %s5879, 1
    %5881 = vsyncpa [#allocation5], 1
    %s5882 = scalar_lea.sflag [#allocation5], 1
    %5883 = vsyncpa %s5882, 1

</llo_original>
